<compile_context>
chip_gen: v7x
topology: tpu7x:2x2x1
jax: 0.10.0
libtpu: 0.0.40
codegen_flags: <defaults>
</compile_context>

<pallas_src>
import functools

import jax
import jax.numpy as jnp
from jax.experimental import pallas as pl
from jax.experimental.pallas import tpu as pltpu

BN_EPS = 1e-5  # PyTorch BatchNorm2d default


def _round_up(x, m):
    return (x + m - 1) // m * m


def _conv_t_bn_relu_kernel(x_ref, w_ref, b_ref, g_ref, beta_ref, o_ref,
                           sum_ref, sq_ref, scale_ref, shift_ref,
                           *, p_out, wp, w_valid, cout, count):
    """Two-phase fused kernel.

    grid = (phase, n):
      phase 0 : conv + bias -> accumulate per-channel sum / sum-of-squares (scratch)
      phase 1 : conv + bias -> folded BatchNorm (one FMA) + ReLU -> store narrow output

    x_ref    : (1, R_pad, Cin_pad)    flattened zero-padded image (row-major over Hp x Wp)
    w_ref    : (9, Cin_pad, Cout_pad) flipped / in-out-swapped taps
    b_ref    : (1, Cout_pad)          conv-transpose bias
    g_ref    : (1, Cout_pad)          BN gamma
    beta_ref : (1, Cout_pad)          BN beta
    o_ref    : (1, P_out, Cout)       narrow output slab (pad channels dropped)
    scratch  : four (1, Cout_pad) f32 VMEM buffers persisting across the whole grid.
    """
    phase = pl.program_id(0)
    n = pl.program_id(1)
    cout_pad = w_ref.shape[2]

    # conv-transpose as 9 shift-accumulated sub-GEMMs (needed by both phases).
    # Output flat row p needs input flat row p + kh*Wp + kw (static shifts).
    acc = jnp.zeros((p_out, cout_pad), jnp.float32)
    for kh in range(3):
        for kw in range(3):
            s = kh * wp + kw
            xs = x_ref[0, pl.ds(s, p_out), :]                      # (P_out, Cin_pad)
            acc = acc + jnp.dot(xs, w_ref[kh * 3 + kw],
                                preferred_element_type=jnp.float32)
    y = acc + b_ref[...]

    @pl.when(jnp.logical_and(phase == 0, n == 0))
    def _init_stats():
        sum_ref[...] = jnp.zeros_like(sum_ref)
        sq_ref[...] = jnp.zeros_like(sq_ref)

    @pl.when(phase == 0)
    def _accumulate_stats():
        # Mask width-pad columns (w >= W) riding along in the flattened layout so the
        # BatchNorm statistics only see real output pixels.
        col = jax.lax.broadcasted_iota(jnp.int32, y.shape, 0) % wp
        ym = jnp.where(col < w_valid, y, 0.0)
        sum_ref[...] += jnp.sum(ym, axis=0, keepdims=True)
        sq_ref[...] += jnp.sum(ym * ym, axis=0, keepdims=True)

    @pl.when(jnp.logical_and(phase == 1, n == 0))
    def _fold_stats():
        mean = sum_ref[...] * (1.0 / count)
        var = jnp.maximum(sq_ref[...] * (1.0 / count) - mean * mean, 0.0)
        inv = jax.lax.rsqrt(var + BN_EPS)
        scale_ref[...] = g_ref[...] * inv
        shift_ref[...] = beta_ref[...] - mean * g_ref[...] * inv

    @pl.when(phase == 1)
    def _normalize_store():
        out = jnp.maximum(y * scale_ref[...] + shift_ref[...], 0.0)
        o_ref[0] = out[:, :cout]                                    # drop pad channels


def conv_T_block_forward(x_nchw, w_t, bias, gamma, beta):
    """Forward of conv_T_block.

    x_nchw : (N, Cin, H, W)
    w_t    : (Cin, Cout, 3, 3)   -- ConvTranspose2d weight layout
    bias, gamma, beta : (Cout,)
    returns (N, Cout, H, W)
    """
    N, Cin, H, W = x_nchw.shape
    Cout = w_t.shape[1]
    Hp, Wp = H + 2, W + 2                        # pad = k - 1 - p = 1 on each side
    P_out = H * Wp                               # output rows incl. width-pad columns
    Cin_pad = max(8, _round_up(Cin, 8))          # sublane-friendly K
    Cout_pad = _round_up(Cout, 128)              # lane-dense N dim for the MXU / stats
    R_pad = _round_up(Hp * Wp + 2 * Wp + 2, 8)   # room for the largest tap shift

    # ---- wrapper-side layout prep (cheap XLA ops; NO 9x im2col) -----------------
    x = jnp.transpose(x_nchw, (0, 2, 3, 1)).astype(jnp.float32)          # NHWC
    x = jnp.pad(x, ((0, 0), (1, 1), (1, 1), (0, Cin_pad - Cin)))         # spatial + chan pad
    x_flat = x.reshape(N, Hp * Wp, Cin_pad)
    x_flat = jnp.pad(x_flat, ((0, 0), (0, R_pad - Hp * Wp), (0, 0)))     # (N, R_pad, Cin_pad)

    # Equivalent regular-conv taps: spatially flipped, in/out channels swapped.
    taps = [w_t[:, :, 2 - kh, 2 - kw] for kh in range(3) for kw in range(3)]
    w9 = jnp.stack(taps, axis=0).astype(jnp.float32)                     # (9, Cin, Cout)
    w9 = jnp.pad(w9, ((0, 0), (0, Cin_pad - Cin), (0, Cout_pad - Cout)))

    b_pad = jnp.pad(bias.astype(jnp.float32), (0, Cout_pad - Cout)).reshape(1, Cout_pad)
    g_pad = jnp.pad(gamma.astype(jnp.float32), (0, Cout_pad - Cout)).reshape(1, Cout_pad)
    beta_pad = jnp.pad(beta.astype(jnp.float32), (0, Cout_pad - Cout)).reshape(1, Cout_pad)

    kernel = functools.partial(
        _conv_t_bn_relu_kernel,
        p_out=P_out, wp=Wp, w_valid=W, cout=Cout, count=float(N * H * W))

    out = pl.pallas_call(
        kernel,
        out_shape=jax.ShapeDtypeStruct((N, P_out, Cout), jnp.float32),
        grid=(2, N),                              # (phase, batch); batch iterates fastest
        in_specs=[
            pl.BlockSpec((1, R_pad, Cin_pad), lambda p, n: (n, 0, 0)),
            pl.BlockSpec((9, Cin_pad, Cout_pad), lambda p, n: (0, 0, 0)),
            pl.BlockSpec((1, Cout_pad), lambda p, n: (0, 0)),
            pl.BlockSpec((1, Cout_pad), lambda p, n: (0, 0)),
            pl.BlockSpec((1, Cout_pad), lambda p, n: (0, 0)),
        ],
        # phase 0 parks the (unwritten) output on block 0 -> no flush until phase 1
        # has written it; phase 1 maps block n normally (monotone, never revisited).
        out_specs=pl.BlockSpec((1, P_out, Cout), lambda p, n: (p * n, 0, 0)),
        scratch_shapes=[pltpu.VMEM((1, Cout_pad), jnp.float32)] * 4,
        compiler_params=pltpu.CompilerParams(
            dimension_semantics=("arbitrary", "arbitrary")),
    )(x_flat, w9, b_pad, g_pad, beta_pad)

    # drop width-pad columns, back to NCHW (tiny, narrow array)
    out = out.reshape(N, H, Wp, Cout)[:, :, :W, :]
    return jnp.transpose(out, (0, 3, 1, 2))


def reference_forward(x_nchw, w_t, bias, gamma, beta):
    """Independent reference: transposed conv by its scatter definition + BN + ReLU."""
    N, Cin, H, W = x_nchw.shape
    Cout = w_t.shape[1]
    Hp, Wp = H + 2, W + 2                                         # (H-1)*1 + 3
    y = jnp.zeros((N, Cout, Hp, Wp), jnp.float32)
    for kh in range(3):
        for kw in range(3):
            contrib = jnp.einsum('nchw,co->nohw', x_nchw, w_t[:, :, kh, kw])
            y = y.at[:, :, kh:kh + H, kw:kw + W].add(contrib)
    y = y[:, :, 1:1 + H, 1:1 + W] + bias[None, :, None, None]     # crop padding=1
    mean = y.mean(axis=(0, 2, 3), keepdims=True)
    var = ((y - mean) ** 2).mean(axis=(0, 2, 3), keepdims=True)
    y = (y - mean) * jax.lax.rsqrt(var + BN_EPS)
    y = y * gamma[None, :, None, None] + beta[None, :, None, None]
    return jnp.maximum(y, 0.0)


if __name__ == "__main__":
    N, Cin, Cout, H, W = 2, 4, 8, 16, 16

    key = jax.random.PRNGKey(0)
    kx, kw, kb, kg, kbeta = jax.random.split(key, 5)
    x = jax.random.normal(kx, (N, Cin, H, W), jnp.float32)
    # ConvTranspose2d weight shape: (in_ch, out_ch, kH, kW)
    w_t = jax.random.normal(kw, (Cin, Cout, 3, 3), jnp.float32) * 0.2
    bias = jax.random.normal(kb, (Cout,), jnp.float32) * 0.1
    gamma = 1.0 + 0.1 * jax.random.normal(kg, (Cout,), jnp.float32)
    beta = 0.1 * jax.random.normal(kbeta, (Cout,), jnp.float32)

    out = conv_T_block_forward(x, w_t, bias, gamma, beta)
    jax.block_until_ready(out)

    ref = reference_forward(x, w_t, bias, gamma, beta)
    assert out.shape == (N, Cout, H, W)
    assert jnp.allclose(out, ref, rtol=2e-3, atol=2e-3), float(jnp.abs(out - ref).max())

    print("KERNEL_OK")
</pallas_src>

<mosaic_0001>
module attributes {stable_mosaic.version = 11 : i64} {
  func.func @_conv_t_bn_relu_kernel(%arg0: i32, %arg1: i32, %arg2: memref<1x368x8xf32, #tpu.memory_space<vmem>>, %arg3: memref<9x8x128xf32, #tpu.memory_space<vmem>>, %arg4: memref<1x128xf32, #tpu.memory_space<vmem>>, %arg5: memref<1x128xf32, #tpu.memory_space<vmem>>, %arg6: memref<1x128xf32, #tpu.memory_space<vmem>>, %arg7: memref<1x288x8xf32, #tpu.memory_space<vmem>>, %arg8: memref<1x128xf32, #tpu.memory_space<vmem>>, %arg9: memref<1x128xf32, #tpu.memory_space<vmem>>, %arg10: memref<1x128xf32, #tpu.memory_space<vmem>>, %arg11: memref<1x128xf32, #tpu.memory_space<vmem>>) attributes {dimension_semantics = [#tpu.dimension_semantics<arbitrary>, #tpu.dimension_semantics<arbitrary>], iteration_bounds = array<i64: 2, 2>, scalar_prefetch = 0 : i64, scratch_operands = 4 : i64, tpu.core_type = #tpu.core_type<tc>, window_params = [{transform_indices = @transform_0, window_bounds = array<i64: 1, 368, 8>}, {pipeline_mode = #tpu.pipeline_mode<synchronous>, transform_indices = @transform_1, window_bounds = array<i64: 9, 8, 128>}, {pipeline_mode = #tpu.pipeline_mode<synchronous>, transform_indices = @transform_2, window_bounds = array<i64: 1, 128>}, {pipeline_mode = #tpu.pipeline_mode<synchronous>, transform_indices = @transform_3, window_bounds = array<i64: 1, 128>}, {pipeline_mode = #tpu.pipeline_mode<synchronous>, transform_indices = @transform_4, window_bounds = array<i64: 1, 128>}, {transform_indices = @transform_5, window_bounds = array<i64: 1, 288, 8>}]} {
    %cst = arith.constant 0.000000e+00 : f32
    %0 = vector.broadcast %cst : f32 to vector<288x128xf32>
    %c0 = arith.constant 0 : index
    %c0_0 = arith.constant 0 : index
    %c0_1 = arith.constant 0 : index
    %1 = vector.load %arg2[%c0, %c0_0, %c0_1] : memref<1x368x8xf32, #tpu.memory_space<vmem>>, vector<1x288x8xf32>
    %2 = vector.shape_cast %1 : vector<1x288x8xf32> to vector<288x8xf32>
    %c0_2 = arith.constant 0 : index
    %c0_3 = arith.constant 0 : index
    %c0_4 = arith.constant 0 : index
    %3 = vector.load %arg3[%c0_2, %c0_3, %c0_4] : memref<9x8x128xf32, #tpu.memory_space<vmem>>, vector<1x8x128xf32>
    %4 = vector.shape_cast %3 : vector<1x8x128xf32> to vector<8x128xf32>
    %cst_5 = arith.constant dense<0.000000e+00> : vector<288x128xf32>
    %5 = tpu.matmul %2, %4, %cst_5 {dimension_numbers = #tpu.dot_dimension_numbers<[1], [0], [0], [1], [0, 0, 1, 1], [], []>} : vector<288x8xf32>, vector<8x128xf32>, vector<288x128xf32> -> vector<288x128xf32>
    %6 = arith.addf %0, %5 : vector<288x128xf32>
    %c0_6 = arith.constant 0 : index
    %c1 = arith.constant 1 : index
    %c0_7 = arith.constant 0 : index
    %7 = vector.load %arg2[%c0_6, %c1, %c0_7] : memref<1x368x8xf32, #tpu.memory_space<vmem>>, vector<1x288x8xf32>
    %8 = vector.shape_cast %7 : vector<1x288x8xf32> to vector<288x8xf32>
    %c1_8 = arith.constant 1 : index
    %c0_9 = arith.constant 0 : index
    %c0_10 = arith.constant 0 : index
    %9 = vector.load %arg3[%c1_8, %c0_9, %c0_10] : memref<9x8x128xf32, #tpu.memory_space<vmem>>, vector<1x8x128xf32>
    %10 = vector.shape_cast %9 : vector<1x8x128xf32> to vector<8x128xf32>
    %cst_11 = arith.constant dense<0.000000e+00> : vector<288x128xf32>
    %11 = tpu.matmul %8, %10, %cst_11 {dimension_numbers = #tpu.dot_dimension_numbers<[1], [0], [0], [1], [0, 0, 1, 1], [], []>} : vector<288x8xf32>, vector<8x128xf32>, vector<288x128xf32> -> vector<288x128xf32>
    %12 = arith.addf %6, %11 : vector<288x128xf32>
    %c0_12 = arith.constant 0 : index
    %c2 = arith.constant 2 : index
    %c0_13 = arith.constant 0 : index
    %13 = vector.load %arg2[%c0_12, %c2, %c0_13] : memref<1x368x8xf32, #tpu.memory_space<vmem>>, vector<1x288x8xf32>
    %14 = vector.shape_cast %13 : vector<1x288x8xf32> to vector<288x8xf32>
    %c2_14 = arith.constant 2 : index
    %c0_15 = arith.constant 0 : index
    %c0_16 = arith.constant 0 : index
    %15 = vector.load %arg3[%c2_14, %c0_15, %c0_16] : memref<9x8x128xf32, #tpu.memory_space<vmem>>, vector<1x8x128xf32>
    %16 = vector.shape_cast %15 : vector<1x8x128xf32> to vector<8x128xf32>
    %cst_17 = arith.constant dense<0.000000e+00> : vector<288x128xf32>
    %17 = tpu.matmul %14, %16, %cst_17 {dimension_numbers = #tpu.dot_dimension_numbers<[1], [0], [0], [1], [0, 0, 1, 1], [], []>} : vector<288x8xf32>, vector<8x128xf32>, vector<288x128xf32> -> vector<288x128xf32>
    %18 = arith.addf %12, %17 : vector<288x128xf32>
    %c0_18 = arith.constant 0 : index
    %c18 = arith.constant 18 : index
    %c0_19 = arith.constant 0 : index
    %19 = vector.load %arg2[%c0_18, %c18, %c0_19] : memref<1x368x8xf32, #tpu.memory_space<vmem>>, vector<1x288x8xf32>
    %20 = vector.shape_cast %19 : vector<1x288x8xf32> to vector<288x8xf32>
    %c3 = arith.constant 3 : index
    %c0_20 = arith.constant 0 : index
    %c0_21 = arith.constant 0 : index
    %21 = vector.load %arg3[%c3, %c0_20, %c0_21] : memref<9x8x128xf32, #tpu.memory_space<vmem>>, vector<1x8x128xf32>
    %22 = vector.shape_cast %21 : vector<1x8x128xf32> to vector<8x128xf32>
    %cst_22 = arith.constant dense<0.000000e+00> : vector<288x128xf32>
    %23 = tpu.matmul %20, %22, %cst_22 {dimension_numbers = #tpu.dot_dimension_numbers<[1], [0], [0], [1], [0, 0, 1, 1], [], []>} : vector<288x8xf32>, vector<8x128xf32>, vector<288x128xf32> -> vector<288x128xf32>
    %24 = arith.addf %18, %23 : vector<288x128xf32>
    %c0_23 = arith.constant 0 : index
    %c19 = arith.constant 19 : index
    %c0_24 = arith.constant 0 : index
    %25 = vector.load %arg2[%c0_23, %c19, %c0_24] : memref<1x368x8xf32, #tpu.memory_space<vmem>>, vector<1x288x8xf32>
    %26 = vector.shape_cast %25 : vector<1x288x8xf32> to vector<288x8xf32>
    %c4 = arith.constant 4 : index
    %c0_25 = arith.constant 0 : index
    %c0_26 = arith.constant 0 : index
    %27 = vector.load %arg3[%c4, %c0_25, %c0_26] : memref<9x8x128xf32, #tpu.memory_space<vmem>>, vector<1x8x128xf32>
    %28 = vector.shape_cast %27 : vector<1x8x128xf32> to vector<8x128xf32>
    %cst_27 = arith.constant dense<0.000000e+00> : vector<288x128xf32>
    %29 = tpu.matmul %26, %28, %cst_27 {dimension_numbers = #tpu.dot_dimension_numbers<[1], [0], [0], [1], [0, 0, 1, 1], [], []>} : vector<288x8xf32>, vector<8x128xf32>, vector<288x128xf32> -> vector<288x128xf32>
    %30 = arith.addf %24, %29 : vector<288x128xf32>
    %c0_28 = arith.constant 0 : index
    %c20 = arith.constant 20 : index
    %c0_29 = arith.constant 0 : index
    %31 = vector.load %arg2[%c0_28, %c20, %c0_29] : memref<1x368x8xf32, #tpu.memory_space<vmem>>, vector<1x288x8xf32>
    %32 = vector.shape_cast %31 : vector<1x288x8xf32> to vector<288x8xf32>
    %c5 = arith.constant 5 : index
    %c0_30 = arith.constant 0 : index
    %c0_31 = arith.constant 0 : index
    %33 = vector.load %arg3[%c5, %c0_30, %c0_31] : memref<9x8x128xf32, #tpu.memory_space<vmem>>, vector<1x8x128xf32>
    %34 = vector.shape_cast %33 : vector<1x8x128xf32> to vector<8x128xf32>
    %cst_32 = arith.constant dense<0.000000e+00> : vector<288x128xf32>
    %35 = tpu.matmul %32, %34, %cst_32 {dimension_numbers = #tpu.dot_dimension_numbers<[1], [0], [0], [1], [0, 0, 1, 1], [], []>} : vector<288x8xf32>, vector<8x128xf32>, vector<288x128xf32> -> vector<288x128xf32>
    %36 = arith.addf %30, %35 : vector<288x128xf32>
    %c0_33 = arith.constant 0 : index
    %c36 = arith.constant 36 : index
    %c0_34 = arith.constant 0 : index
    %37 = vector.load %arg2[%c0_33, %c36, %c0_34] : memref<1x368x8xf32, #tpu.memory_space<vmem>>, vector<1x288x8xf32>
    %38 = vector.shape_cast %37 : vector<1x288x8xf32> to vector<288x8xf32>
    %c6 = arith.constant 6 : index
    %c0_35 = arith.constant 0 : index
    %c0_36 = arith.constant 0 : index
    %39 = vector.load %arg3[%c6, %c0_35, %c0_36] : memref<9x8x128xf32, #tpu.memory_space<vmem>>, vector<1x8x128xf32>
    %40 = vector.shape_cast %39 : vector<1x8x128xf32> to vector<8x128xf32>
    %cst_37 = arith.constant dense<0.000000e+00> : vector<288x128xf32>
    %41 = tpu.matmul %38, %40, %cst_37 {dimension_numbers = #tpu.dot_dimension_numbers<[1], [0], [0], [1], [0, 0, 1, 1], [], []>} : vector<288x8xf32>, vector<8x128xf32>, vector<288x128xf32> -> vector<288x128xf32>
    %42 = arith.addf %36, %41 : vector<288x128xf32>
    %c0_38 = arith.constant 0 : index
    %c37 = arith.constant 37 : index
    %c0_39 = arith.constant 0 : index
    %43 = vector.load %arg2[%c0_38, %c37, %c0_39] : memref<1x368x8xf32, #tpu.memory_space<vmem>>, vector<1x288x8xf32>
    %44 = vector.shape_cast %43 : vector<1x288x8xf32> to vector<288x8xf32>
    %c7 = arith.constant 7 : index
    %c0_40 = arith.constant 0 : index
    %c0_41 = arith.constant 0 : index
    %45 = vector.load %arg3[%c7, %c0_40, %c0_41] : memref<9x8x128xf32, #tpu.memory_space<vmem>>, vector<1x8x128xf32>
    %46 = vector.shape_cast %45 : vector<1x8x128xf32> to vector<8x128xf32>
    %cst_42 = arith.constant dense<0.000000e+00> : vector<288x128xf32>
    %47 = tpu.matmul %44, %46, %cst_42 {dimension_numbers = #tpu.dot_dimension_numbers<[1], [0], [0], [1], [0, 0, 1, 1], [], []>} : vector<288x8xf32>, vector<8x128xf32>, vector<288x128xf32> -> vector<288x128xf32>
    %48 = arith.addf %42, %47 : vector<288x128xf32>
    %c0_43 = arith.constant 0 : index
    %c38 = arith.constant 38 : index
    %c0_44 = arith.constant 0 : index
    %49 = vector.load %arg2[%c0_43, %c38, %c0_44] : memref<1x368x8xf32, #tpu.memory_space<vmem>>, vector<1x288x8xf32>
    %50 = vector.shape_cast %49 : vector<1x288x8xf32> to vector<288x8xf32>
    %c8 = arith.constant 8 : index
    %c0_45 = arith.constant 0 : index
    %c0_46 = arith.constant 0 : index
    %51 = vector.load %arg3[%c8, %c0_45, %c0_46] : memref<9x8x128xf32, #tpu.memory_space<vmem>>, vector<1x8x128xf32>
    %52 = vector.shape_cast %51 : vector<1x8x128xf32> to vector<8x128xf32>
    %cst_47 = arith.constant dense<0.000000e+00> : vector<288x128xf32>
    %53 = tpu.matmul %50, %52, %cst_47 {dimension_numbers = #tpu.dot_dimension_numbers<[1], [0], [0], [1], [0, 0, 1, 1], [], []>} : vector<288x8xf32>, vector<8x128xf32>, vector<288x128xf32> -> vector<288x128xf32>
    %54 = arith.addf %48, %53 : vector<288x128xf32>
    %c0_48 = arith.constant 0 : index
    %c0_49 = arith.constant 0 : index
    %55 = vector.load %arg4[%c0_48, %c0_49] : memref<1x128xf32, #tpu.memory_space<vmem>>, vector<1x128xf32>
    %56 = vector.broadcast %55 : vector<1x128xf32> to vector<288x128xf32>
    %57 = arith.addf %54, %56 : vector<288x128xf32>
    %c0_i32 = arith.constant 0 : i32
    %58 = arith.cmpi eq, %arg0, %c0_i32 : i32
    %c0_i32_50 = arith.constant 0 : i32
    %59 = arith.cmpi eq, %arg1, %c0_i32_50 : i32
    %60 = arith.andi %58, %59 : i1
    %61 = arith.extui %60 : i1 to i32
    %c0_i32_51 = arith.constant 0 : i32
    %62 = arith.cmpi ne, %61, %c0_i32_51 : i32
    scf.if %62 {
      %cst_58 = arith.constant 0.000000e+00 : f32
      %74 = vector.broadcast %cst_58 : f32 to vector<1x128xf32>
      %c0_59 = arith.constant 0 : index
      %c0_60 = arith.constant 0 : index
      %75 = vector.load %arg8[%c0_59, %c0_60] : memref<1x128xf32, #tpu.memory_space<vmem>>, vector<1x128xf32>
      tpu.vector_store %arg8[%c0_59, %c0_60], %74 {strides = array<i32>} : memref<1x128xf32, #tpu.memory_space<vmem>>, vector<1x128xf32>,
      %cst_61 = arith.constant 0.000000e+00 : f32
      %76 = vector.broadcast %cst_61 : f32 to vector<1x128xf32>
      %c0_62 = arith.constant 0 : index
      %c0_63 = arith.constant 0 : index
      %77 = vector.load %arg9[%c0_62, %c0_63] : memref<1x128xf32, #tpu.memory_space<vmem>>, vector<1x128xf32>
      tpu.vector_store %arg9[%c0_62, %c0_63], %76 {strides = array<i32>} : memref<1x128xf32, #tpu.memory_space<vmem>>, vector<1x128xf32>,
    } else {
    }
    %c0_i32_52 = arith.constant 0 : i32
    %63 = arith.cmpi eq, %arg0, %c0_i32_52 : i32
    %64 = arith.extui %63 : i1 to i32
    %c0_i32_53 = arith.constant 0 : i32
    %65 = arith.cmpi ne, %64, %c0_i32_53 : i32
    scf.if %65 {
      %74 = tpu.iota {dimensions = array<i32: 0>} : vector<288x128xi32>
      %c18_i32 = arith.constant 18 : i32
      %c0_i32_58 = arith.constant 0 : i32
      %75 = arith.cmpi eq, %c18_i32, %c0_i32_58 : i32
      %c1_i32_59 = arith.constant 1 : i32
      %76 = arith.select %75, %c1_i32_59, %c18_i32 : i32
      %77 = vector.broadcast %76 : i32 to vector<288x128xi32>
      %78 = arith.remsi %74, %77 : vector<288x128xi32>
      %c0_i32_60 = arith.constant 0 : i32
      %79 = vector.broadcast %c0_i32_60 : i32 to vector<288x128xi32>
      %80 = arith.cmpi ne, %78, %79 : vector<288x128xi32>
      %c0_i32_61 = arith.constant 0 : i32
      %81 = vector.broadcast %c0_i32_61 : i32 to vector<288x128xi32>
      %82 = arith.cmpi slt, %78, %81 : vector<288x128xi32>
      %c0_i32_62 = arith.constant 0 : i32
      %83 = arith.cmpi slt, %76, %c0_i32_62 : i32
      %84 = vector.broadcast %83 : i1 to vector<288x128xi1>
      %85 = vector.broadcast %84 : vector<288x128xi1> to vector<288x128xi1>
      %86 = arith.xori %82, %85 : vector<288x128xi1>
      %87 = arith.andi %86, %80 : vector<288x128xi1>
      %88 = vector.broadcast %76 : i32 to vector<288x128xi32>
      %89 = arith.addi %78, %88 : vector<288x128xi32>
      %90 = arith.select %87, %89, %78 : vector<288x128xi1>, vector<288x128xi32>
      %c16_i32 = arith.constant 16 : i32
      %91 = vector.broadcast %c16_i32 : i32 to vector<288x128xi32>
      %92 = arith.cmpi slt, %90, %91 : vector<288x128xi32>
      %cst_63 = arith.constant 0.000000e+00 : f32
      %93 = vector.broadcast %cst_63 : f32 to vector<288x128xf32>
      %94 = arith.select %92, %57, %93 : vector<288x128xi1>, vector<288x128xf32>
      %c0_64 = arith.constant 0 : index
      %c0_65 = arith.constant 0 : index
      %95 = vector.load %arg8[%c0_64, %c0_65] : memref<1x128xf32, #tpu.memory_space<vmem>>, vector<1x128xf32>
      %cst_66 = arith.constant dense<0.000000e+00> : vector<128xf32>
      %96 = vector.multi_reduction <add>, %94, %cst_66 [0] : vector<288x128xf32> to vector<128xf32>
      %97 = vector.shape_cast %96 : vector<128xf32> to vector<1x128xf32>
      %98 = arith.addf %95, %97 : vector<1x128xf32>
      %c0_67 = arith.constant 0 : index
      %c0_68 = arith.constant 0 : index
      %99 = vector.load %arg8[%c0_67, %c0_68] : memref<1x128xf32, #tpu.memory_space<vmem>>, vector<1x128xf32>
      tpu.vector_store %arg8[%c0_67, %c0_68], %98 {strides = array<i32>} : memref<1x128xf32, #tpu.memory_space<vmem>>, vector<1x128xf32>,
      %c0_69 = arith.constant 0 : index
      %c0_70 = arith.constant 0 : index
      %100 = vector.load %arg9[%c0_69, %c0_70] : memref<1x128xf32, #tpu.memory_space<vmem>>, vector<1x128xf32>
      %101 = arith.mulf %94, %94 : vector<288x128xf32>
      %cst_71 = arith.constant dense<0.000000e+00> : vector<128xf32>
      %102 = vector.multi_reduction <add>, %101, %cst_71 [0] : vector<288x128xf32> to vector<128xf32>
      %103 = vector.shape_cast %102 : vector<128xf32> to vector<1x128xf32>
      %104 = arith.addf %100, %103 : vector<1x128xf32>
      %c0_72 = arith.constant 0 : index
      %c0_73 = arith.constant 0 : index
      %105 = vector.load %arg9[%c0_72, %c0_73] : memref<1x128xf32, #tpu.memory_space<vmem>>, vector<1x128xf32>
      tpu.vector_store %arg9[%c0_72, %c0_73], %104 {strides = array<i32>} : memref<1x128xf32, #tpu.memory_space<vmem>>, vector<1x128xf32>,
    } else {
    }
    %c1_i32 = arith.constant 1 : i32
    %66 = arith.cmpi eq, %arg0, %c1_i32 : i32
    %c0_i32_54 = arith.constant 0 : i32
    %67 = arith.cmpi eq, %arg1, %c0_i32_54 : i32
    %68 = arith.andi %66, %67 : i1
    %69 = arith.extui %68 : i1 to i32
    %c0_i32_55 = arith.constant 0 : i32
    %70 = arith.cmpi ne, %69, %c0_i32_55 : i32
    scf.if %70 {
      %c0_58 = arith.constant 0 : index
      %c0_59 = arith.constant 0 : index
      %74 = vector.load %arg8[%c0_58, %c0_59] : memref<1x128xf32, #tpu.memory_space<vmem>>, vector<1x128xf32>
      %cst_60 = arith.constant 0.001953125 : f32
      %75 = vector.broadcast %cst_60 : f32 to vector<1x128xf32>
      %76 = arith.mulf %74, %75 : vector<1x128xf32>
      %c0_61 = arith.constant 0 : index
      %c0_62 = arith.constant 0 : index
      %77 = vector.load %arg9[%c0_61, %c0_62] : memref<1x128xf32, #tpu.memory_space<vmem>>, vector<1x128xf32>
      %cst_63 = arith.constant 0.001953125 : f32
      %78 = vector.broadcast %cst_63 : f32 to vector<1x128xf32>
      %79 = arith.mulf %77, %78 : vector<1x128xf32>
      %80 = arith.mulf %76, %76 : vector<1x128xf32>
      %81 = arith.subf %79, %80 : vector<1x128xf32>
      %cst_64 = arith.constant 0.000000e+00 : f32
      %82 = vector.broadcast %cst_64 : f32 to vector<1x128xf32>
      %83 = arith.maximumf %81, %82 : vector<1x128xf32>
      %cst_65 = arith.constant 9.99999974E-6 : f32
      %84 = vector.broadcast %cst_65 : f32 to vector<1x128xf32>
      %85 = arith.addf %83, %84 : vector<1x128xf32>
      %86 = math.rsqrt %85 : vector<1x128xf32>
      %c0_66 = arith.constant 0 : index
      %c0_67 = arith.constant 0 : index
      %87 = vector.load %arg5[%c0_66, %c0_67] : memref<1x128xf32, #tpu.memory_space<vmem>>, vector<1x128xf32>
      %88 = arith.mulf %87, %86 : vector<1x128xf32>
      %c0_68 = arith.constant 0 : index
      %c0_69 = arith.constant 0 : index
      %89 = vector.load %arg10[%c0_68, %c0_69] : memref<1x128xf32, #tpu.memory_space<vmem>>, vector<1x128xf32>
      tpu.vector_store %arg10[%c0_68, %c0_69], %88 {strides = array<i32>} : memref<1x128xf32, #tpu.memory_space<vmem>>, vector<1x128xf32>,
      %c0_70 = arith.constant 0 : index
      %c0_71 = arith.constant 0 : index
      %90 = vector.load %arg6[%c0_70, %c0_71] : memref<1x128xf32, #tpu.memory_space<vmem>>, vector<1x128xf32>
      %c0_72 = arith.constant 0 : index
      %c0_73 = arith.constant 0 : index
      %91 = vector.load %arg5[%c0_72, %c0_73] : memref<1x128xf32, #tpu.memory_space<vmem>>, vector<1x128xf32>
      %92 = arith.mulf %76, %91 : vector<1x128xf32>
      %93 = arith.mulf %92, %86 : vector<1x128xf32>
      %94 = arith.subf %90, %93 : vector<1x128xf32>
      %c0_74 = arith.constant 0 : index
      %c0_75 = arith.constant 0 : index
      %95 = vector.load %arg11[%c0_74, %c0_75] : memref<1x128xf32, #tpu.memory_space<vmem>>, vector<1x128xf32>
      tpu.vector_store %arg11[%c0_74, %c0_75], %94 {strides = array<i32>} : memref<1x128xf32, #tpu.memory_space<vmem>>, vector<1x128xf32>,
    } else {
    }
    %c1_i32_56 = arith.constant 1 : i32
    %71 = arith.cmpi eq, %arg0, %c1_i32_56 : i32
    %72 = arith.extui %71 : i1 to i32
    %c0_i32_57 = arith.constant 0 : i32
    %73 = arith.cmpi ne, %72, %c0_i32_57 : i32
    scf.if %73 {
      %c0_58 = arith.constant 0 : index
      %c0_59 = arith.constant 0 : index
      %74 = vector.load %arg10[%c0_58, %c0_59] : memref<1x128xf32, #tpu.memory_space<vmem>>, vector<1x128xf32>
      %75 = vector.broadcast %74 : vector<1x128xf32> to vector<288x128xf32>
      %76 = arith.mulf %57, %75 : vector<288x128xf32>
      %c0_60 = arith.constant 0 : index
      %c0_61 = arith.constant 0 : index
      %77 = vector.load %arg11[%c0_60, %c0_61] : memref<1x128xf32, #tpu.memory_space<vmem>>, vector<1x128xf32>
      %78 = vector.broadcast %77 : vector<1x128xf32> to vector<288x128xf32>
      %79 = arith.addf %76, %78 : vector<288x128xf32>
      %cst_62 = arith.constant 0.000000e+00 : f32
      %80 = vector.broadcast %cst_62 : f32 to vector<288x128xf32>
      %81 = arith.maximumf %79, %80 : vector<288x128xf32>
      %82 = vector.extract_strided_slice %81 {offsets = [0, 0], sizes = [288, 8], strides = [1, 1]} : vector<288x128xf32> to vector<288x8xf32>
      %c0_63 = arith.constant 0 : index
      %c0_64 = arith.constant 0 : index
      %c0_65 = arith.constant 0 : index
      %83 = vector.load %arg7[%c0_63, %c0_64, %c0_65] : memref<1x288x8xf32, #tpu.memory_space<vmem>>, vector<1x288x8xf32>
      %84 = vector.shape_cast %83 : vector<1x288x8xf32> to vector<288x8xf32>
      %85 = vector.shape_cast %82 : vector<288x8xf32> to vector<1x288x8xf32>
      tpu.vector_store %arg7[%c0_63, %c0_64, %c0_65], %85 {strides = array<i32>} : memref<1x288x8xf32, #tpu.memory_space<vmem>>, vector<1x288x8xf32>,
    } else {
    }
    return
  }
  func.func @transform_0(%arg0: i32, %arg1: i32) -> (i32, i32, i32) {
    %c0_i32 = arith.constant 0 : i32
    %c0_i32_0 = arith.constant 0 : i32
    %c0_i32_1 = arith.constant 0 : i32
    return %arg1, %c0_i32, %c0_i32_0 : i32, i32, i32
  }
  func.func @transform_1(%arg0: i32, %arg1: i32) -> (i32, i32, i32) {
    %c0_i32 = arith.constant 0 : i32
    %c0_i32_0 = arith.constant 0 : i32
    %c0_i32_1 = arith.constant 0 : i32
    %c0_i32_2 = arith.constant 0 : i32
    return %c0_i32, %c0_i32_0, %c0_i32_1 : i32, i32, i32
  }
  func.func @transform_2(%arg0: i32, %arg1: i32) -> (i32, i32) {
    %c0_i32 = arith.constant 0 : i32
    %c0_i32_0 = arith.constant 0 : i32
    %c0_i32_1 = arith.constant 0 : i32
    return %c0_i32, %c0_i32_0 : i32, i32
  }
  func.func @transform_3(%arg0: i32, %arg1: i32) -> (i32, i32) {
    %c0_i32 = arith.constant 0 : i32
    %c0_i32_0 = arith.constant 0 : i32
    %c0_i32_1 = arith.constant 0 : i32
    return %c0_i32, %c0_i32_0 : i32, i32
  }
  func.func @transform_4(%arg0: i32, %arg1: i32) -> (i32, i32) {
    %c0_i32 = arith.constant 0 : i32
    %c0_i32_0 = arith.constant 0 : i32
    %c0_i32_1 = arith.constant 0 : i32
    return %c0_i32, %c0_i32_0 : i32, i32
  }
  func.func @transform_5(%arg0: i32, %arg1: i32) -> (i32, i32, i32) {
    %0 = arith.muli %arg0, %arg1 : i32
    %c0_i32 = arith.constant 0 : i32
    %c0_i32_0 = arith.constant 0 : i32
    %c0_i32_1 = arith.constant 0 : i32
    return %0, %c0_i32, %c0_i32_0 : i32, i32, i32
  }
}

</mosaic_0001>

<llo_original>
// kernel: tpu_custom_call.1
$region0: #{tpu_custom_call.1}
  #allocation0 [shape = 'u32[]', space=smem, size = 0x4, offset = 0x4, fixed_abs, tag = 'smem constant byte address 0x4 - core index']
  #allocation1 [shape = 'u32[144,128]{1,0:T(1,128)}', space=vmem, size = 0x12000, scoped, tag = 'internal scratch']
  #allocation2 [shape = 'f32[1,128]{1,0:T(1,128)}', space=vmem, size = 0x200, scoped, tag = 'scratch operand']
  #allocation3 [shape = 'f32[1,128]{1,0:T(1,128)}', space=vmem, size = 0x200, scoped, tag = 'scratch operand']
  #allocation4 [shape = 'f32[1,128]{1,0:T(1,128)}', space=vmem, size = 0x200, scoped, tag = 'scratch operand']
  #allocation5 [shape = 'f32[1,128]{1,0:T(1,128)}', space=vmem, size = 0x200, scoped, tag = 'scratch operand']
  %s0 = inlined_call_operand.vmem [shape: f32[2,368,8], index: 0, kind: input, shape index: {}]
  %s1 = inlined_call_operand.vmem [shape: f32[9,8,128], index: 1, kind: input, shape index: {}]
  %s2 = inlined_call_operand.vmem [shape: f32[1,128], index: 2, kind: input, shape index: {}]
  %s3 = inlined_call_operand.vmem [shape: f32[1,128], index: 3, kind: input, shape index: {}]
  %s4 = inlined_call_operand.vmem [shape: f32[1,128], index: 4, kind: input, shape index: {}]
  %s5 = inlined_call_operand.vmem [shape: f32[2,288,8], index: 5, kind: output, shape index: {}]
  %s6 = sld [smem:[#allocation0]]
  $region69: #{tpu_custom_call.1} parent=0
    _
  %s8 = ssub.s32 1, %s6
  %s9 = scalar_select 0, %s8, %s6
  loop: start=0, step=1, limit=6
  $region2: #{tpu_custom_call.1} parent=0 // loop_pre_header
    _
  $region3: #{tpu_custom_call.1} parent=0 // loop_header
    %s11 = sphi 0, %s15
    %p12 = scmp.ge.s32.totalorder %s11, 6
    %s18 = sphi 0, %s30
    %s19 = sphi 0, %s26
    %s20 = sphi 0, %s18
    %s21 = sphi 0, %s19
    %s22 = sphi 0, %s20
    %s23 = sphi 0, %s21
    %s33 = sphi 0, %s35
    %s36 = sphi 0, %s33
    %s37 = sphi 0, %s36
    %s53 = sphi 0, %s37
    %s57 = sphi 0, %s57
    %s59 = sphi 0, %s57
    %s60 = sphi 0, %s59
    %s74 = sphi 0, %s60
    %s78 = sphi 0, %s78
    %s80 = sphi 0, %s78
    %s81 = sphi 0, %s80
    %s95 = sphi 0, %s81
    %s99 = sphi 0, %s99
    %s101 = sphi 0, %s99
    %s102 = sphi 0, %s101
    %s116 = sphi 0, %s102
    %s120 = sphi 0, %s120
    %s122 = sphi 0, %s120
    %s123 = sphi 0, %s122
    %s137 = sphi 0, %s123
    %s145 = sphi 0, %s147
    %s148 = sphi 0, %s145
    %s149 = sphi 0, %s148
    %s165 = sphi 0, %s149
  $region4: #{tpu_custom_call.1} parent=0 // loop_header_branch
    %14 = sbr.rel (%p12) target = $region8
  $region5: #{tpu_custom_call.1} parent=0 // loop_body
    %s16 = ssub.s32 %s11, 1
    %s17 = ssub.s32 %s11, 2
    %s24 = sadd.s32 1, %s19
    %p25 = scmp.ge.s32.totalorder %s24, 2
    %s26 = scalar_select %p25, 0, %s24
    %s27 = sadd.s32 1, %s18
    %s28 = scalar_select %p25, %s27, %s18
    %p29 = scmp.ge.s32.totalorder %s28, 2
    %s30 = scalar_select %p29, 0, %s28
    %s31 = ssub.s32 %s19, %s26
    %p32 = scmp.eq.s32.totalorder %s31, 0
    %s34 = sadd.s32 %s33, 1
    %s35 = scalar_select %p32, %s33, %s34
    %p38 = pneg %p32
    %p39 = scmp.eq.s32.totalorder %s11, 3
    %p40 = por %p38, %p39
    %p41 = scmp.ne.s32.totalorder %s33, %s36
    %p42 = scmp.eq.s32.totalorder %s11, 0
    %p43 = por %p41, %p42
    %p44 = scmp.ne.s32.totalorder %s33, %s36
    %p45 = scmp.eq.s32.totalorder %s16, 3
    %p46 = por %p44, %p45
    %p47 = scmp.ne.s32.totalorder %s36, %s37
    %p48 = scmp.eq.s32.totalorder %s16, 0
    %p49 = por %p47, %p48
    %p50 = scmp.ne.s32.totalorder %s36, %s37
    %p51 = scmp.eq.s32.totalorder %s17, 3
    %p52 = por %p50, %p51
    %p54 = scmp.ne.s32.totalorder %s37, %s53
    %p55 = scmp.eq.s32.totalorder %s17, 0
    %p56 = por %p54, %p55
    %s58 = sadd.s32 %s57, 1
    %p61 = scmp.eq.s32.totalorder %s11, 3
    %p62 = scmp.ne.s32.totalorder %s57, %s59
    %p63 = scmp.eq.s32.totalorder %s11, 0
    %p64 = por %p62, %p63
    %p65 = scmp.ne.s32.totalorder %s57, %s59
    %p66 = scmp.eq.s32.totalorder %s16, 3
    %p67 = por %p65, %p66
    %p68 = scmp.ne.s32.totalorder %s59, %s60
    %p69 = scmp.eq.s32.totalorder %s16, 0
    %p70 = por %p68, %p69
    %p71 = scmp.ne.s32.totalorder %s59, %s60
    %p72 = scmp.eq.s32.totalorder %s17, 3
    %p73 = por %p71, %p72
    %p75 = scmp.ne.s32.totalorder %s60, %s74
    %p76 = scmp.eq.s32.totalorder %s17, 0
    %p77 = por %p75, %p76
    %s79 = sadd.s32 %s78, 1
    %p82 = scmp.eq.s32.totalorder %s11, 3
    %p83 = scmp.ne.s32.totalorder %s78, %s80
    %p84 = scmp.eq.s32.totalorder %s11, 0
    %p85 = por %p83, %p84
    %p86 = scmp.ne.s32.totalorder %s78, %s80
    %p87 = scmp.eq.s32.totalorder %s16, 3
    %p88 = por %p86, %p87
    %p89 = scmp.ne.s32.totalorder %s80, %s81
    %p90 = scmp.eq.s32.totalorder %s16, 0
    %p91 = por %p89, %p90
    %p92 = scmp.ne.s32.totalorder %s80, %s81
    %p93 = scmp.eq.s32.totalorder %s17, 3
    %p94 = por %p92, %p93
    %p96 = scmp.ne.s32.totalorder %s81, %s95
    %p97 = scmp.eq.s32.totalorder %s17, 0
    %p98 = por %p96, %p97
    %s100 = sadd.s32 %s99, 1
    %p103 = scmp.eq.s32.totalorder %s11, 3
    %p104 = scmp.ne.s32.totalorder %s99, %s101
    %p105 = scmp.eq.s32.totalorder %s11, 0
    %p106 = por %p104, %p105
    %p107 = scmp.ne.s32.totalorder %s99, %s101
    %p108 = scmp.eq.s32.totalorder %s16, 3
    %p109 = por %p107, %p108
    %p110 = scmp.ne.s32.totalorder %s101, %s102
    %p111 = scmp.eq.s32.totalorder %s16, 0
    %p112 = por %p110, %p111
    %p113 = scmp.ne.s32.totalorder %s101, %s102
    %p114 = scmp.eq.s32.totalorder %s17, 3
    %p115 = por %p113, %p114
    %p117 = scmp.ne.s32.totalorder %s102, %s116
    %p118 = scmp.eq.s32.totalorder %s17, 0
    %p119 = por %p117, %p118
    %s121 = sadd.s32 %s120, 1
    %p124 = scmp.eq.s32.totalorder %s11, 3
    %p125 = scmp.ne.s32.totalorder %s120, %s122
    %p126 = scmp.eq.s32.totalorder %s11, 0
    %p127 = por %p125, %p126
    %p128 = scmp.ne.s32.totalorder %s120, %s122
    %p129 = scmp.eq.s32.totalorder %s16, 3
    %p130 = por %p128, %p129
    %p131 = scmp.ne.s32.totalorder %s122, %s123
    %p132 = scmp.eq.s32.totalorder %s16, 0
    %p133 = por %p131, %p132
    %p134 = scmp.ne.s32.totalorder %s122, %s123
    %p135 = scmp.eq.s32.totalorder %s17, 3
    %p136 = por %p134, %p135
    %p138 = scmp.ne.s32.totalorder %s123, %s137
    %p139 = scmp.eq.s32.totalorder %s17, 0
    %p140 = por %p138, %p139
    %s141 = smul.u32 %s18, %s19
    %s142 = smul.u32 %s30, %s26
    %s143 = ssub.s32 %s141, %s142
    %p144 = scmp.eq.s32.totalorder %s143, 0
    %s146 = sadd.s32 %s145, 1
    %s147 = scalar_select %p144, %s145, %s146
    %p150 = pneg %p144
    %p151 = scmp.eq.s32.totalorder %s11, 3
    %p152 = por %p150, %p151
    %p153 = scmp.ne.s32.totalorder %s145, %s148
    %p154 = scmp.eq.s32.totalorder %s11, 0
    %p155 = por %p153, %p154
    %p156 = scmp.ne.s32.totalorder %s145, %s148
    %p157 = scmp.eq.s32.totalorder %s16, 3
    %p158 = por %p156, %p157
    %p159 = scmp.ne.s32.totalorder %s148, %s149
    %p160 = scmp.eq.s32.totalorder %s16, 0
    %p161 = por %p159, %p160
    %p162 = scmp.ne.s32.totalorder %s148, %s149
    %p163 = scmp.eq.s32.totalorder %s17, 3
    %p164 = por %p162, %p163
    %p166 = scmp.ne.s32.totalorder %s149, %s165
    %p167 = scmp.eq.s32.totalorder %s17, 0
    %p168 = por %p166, %p167
    %p169 = scmp.le.s32.totalorder 1, %s11
    %p170 = scmp.lt.s32.totalorder %s11, 5
    %p171 = pnand %p169, %p170
    %p172 = pneg %p171
    // Predicated region
    $region9: #{tpu_custom_call.1} parent=5 // pred_check
      _
    $region10: #{tpu_custom_call.1} parent=5 // pred_check_branch
      %174 = sbr.rel (%p171) target = $region12
    $region11: #{tpu_custom_call.1} parent=5 // pred_region
      %s175 = ssub.s32 %s11, 1
      // Predicated region
      $region13: #{tpu_custom_call.1} parent=11 // pred_check
        %p176 = pneg %p70
      $region14: #{tpu_custom_call.1} parent=11 // pred_check_branch
        %178 = sbr.rel (%p176) target = $region16
      $region15: #{tpu_custom_call.1} parent=11 // pred_region
        _
      $region16: #{tpu_custom_call.1} parent=11 // pred_fallthru
        _
      // Predicated region
      $region17: #{tpu_custom_call.1} parent=11 // pred_check
        %p179 = pneg %p91
      $region18: #{tpu_custom_call.1} parent=11 // pred_check_branch
        %181 = sbr.rel (%p179) target = $region20
      $region19: #{tpu_custom_call.1} parent=11 // pred_region
        _
      $region20: #{tpu_custom_call.1} parent=11 // pred_fallthru
        _
      // Predicated region
      $region21: #{tpu_custom_call.1} parent=11 // pred_check
        %p182 = pneg %p112
      $region22: #{tpu_custom_call.1} parent=11 // pred_check_branch
        %184 = sbr.rel (%p182) target = $region24
      $region23: #{tpu_custom_call.1} parent=11 // pred_region
        _
      $region24: #{tpu_custom_call.1} parent=11 // pred_fallthru
        _
      // Predicated region
      $region25: #{tpu_custom_call.1} parent=11 // pred_check
        %p185 = pneg %p133
      $region26: #{tpu_custom_call.1} parent=11 // pred_check_branch
        %187 = sbr.rel (%p185) target = $region28
      $region27: #{tpu_custom_call.1} parent=11 // pred_region
        _
      $region28: #{tpu_custom_call.1} parent=11 // pred_fallthru
        _
    $region12: #{tpu_custom_call.1} parent=5 // pred_fallthru
      _
    %p188 = scmp.lt.s32.totalorder %s11, 4
    // Predicated region
    $region29: #{tpu_custom_call.1} parent=5 // pred_check
      %p189 = pneg %p188
    $region30: #{tpu_custom_call.1} parent=5 // pred_check_branch
      %191 = sbr.rel (%p189) target = $region32
    $region31: #{tpu_custom_call.1} parent=5 // pred_region
      // Predicated region
      $region33: #{tpu_custom_call.1} parent=31 // pred_check
        %p192 = pneg %p43
      $region34: #{tpu_custom_call.1} parent=31 // pred_check_branch
        %194 = sbr.rel (%p192) target = $region36
      $region35: #{tpu_custom_call.1} parent=31 // pred_region
        %p195 = scmp.lt.s32.totalorder %s19, 1
        %s196 = scalar_select %p195, %s19, 1
        %s197 = smul.addr %s196, 46
        %s198 = smul.addr %s197, 8
        %s199 = scalar_lea.vmem %s0, %s198
      $region36: #{tpu_custom_call.1} parent=31 // pred_fallthru
        _
    $region32: #{tpu_custom_call.1} parent=5 // pred_fallthru
      _
    %p200 = scmp.le.s32.totalorder 1, %s11
    %p201 = scmp.lt.s32.totalorder %s11, 5
    %p202 = pnand %p200, %p201
    %p203 = pneg %p202
    // Predicated region
    $region37: #{tpu_custom_call.1} parent=5 // pred_check
      _
    $region38: #{tpu_custom_call.1} parent=5 // pred_check_branch
      %205 = sbr.rel (%p202) target = $region40
    $region39: #{tpu_custom_call.1} parent=5 // pred_region
      %s206 = ssub.s32 %s11, 1
      %p207 = scmp.lt.s32.totalorder %s21, 1
      %s208 = scalar_select %p207, %s21, 1
      %s209 = smul.addr %s208, 46
      %s210 = smul.addr %s209, 8
      %s211 = scalar_lea.vmem %s0, %s210
      %p212 = pneg %p49
      %p213 = pneg %p46
      %p214 = pneg %p70
      %p215 = pneg %p67
      %p216 = pneg %p91
      %p217 = pneg %p88
      %p218 = pneg %p112
      %p219 = pneg %p109
      %p220 = pneg %p133
      %p221 = pneg %p130
      %p222 = pneg %p161
      %p223 = pneg %p158
      %s224 = smul.u32 %s20, %s21
      %p225 = scmp.lt.s32.totalorder %s224, 1
      %s226 = scalar_select %p225, %s224, 1
      %s227 = smul.addr %s226, 36
      %s228 = smul.addr %s227, 8
      %s229 = scalar_lea.vmem %s5, %s228
      %p230 = scmp.lt.s32.totalorder %s21, 1
      %s231 = scalar_select %p230, %s21, 1
      %s232 = smul.addr %s231, 46
      %s233 = smul.addr %s232, 8
      %s234 = scalar_lea.vmem %s0, %s233
      %s235 = smul.u32 %s20, %s21
      %p236 = scmp.lt.s32.totalorder %s235, 1
      %s237 = scalar_select %p236, %s235, 1
      %s238 = smul.addr %s237, 36
      %s239 = smul.addr %s238, 8
      %s240 = scalar_lea.vmem %s5, %s239
      %s241 = smul.u32 %s20, %s21
      %v242 = vld [vmem:[%s234] sm:$0xff]
      %v243 = vld [vmem:[%s234 + $0x8] sm:$0xff]
      %v244 = vld [vmem:[%s234 + $0x10] sm:$0xff]
      %v245 = vld [vmem:[%s234 + $0x18] sm:$0xff]
      %v246 = vld [vmem:[%s234 + $0x20] sm:$0xff]
      %v247 = vld [vmem:[%s234 + $0x28] sm:$0xff]
      %v248 = vld [vmem:[%s234 + $0x30] sm:$0xff]
      %v249 = vld [vmem:[%s234 + $0x38] sm:$0xff]
      %v250 = vld [vmem:[%s234 + $0x40] sm:$0xff]
      %v251 = vld [vmem:[%s234 + $0x48] sm:$0xff]
      %v252 = vld [vmem:[%s234 + $0x50] sm:$0xff]
      %v253 = vld [vmem:[%s234 + $0x58] sm:$0xff]
      %v254 = vld [vmem:[%s234 + $0x60] sm:$0xff]
      %v255 = vld [vmem:[%s234 + $0x68] sm:$0xff]
      %v256 = vld [vmem:[%s234 + $0x70] sm:$0xff]
      %v257 = vld [vmem:[%s234 + $0x78] sm:$0xff]
      %v258 = vld [vmem:[%s234 + $0x80] sm:$0xff]
      %v259 = vld [vmem:[%s234 + $0x88] sm:$0xff]
      %v260 = vld [vmem:[%s234 + $0x90] sm:$0xff]
      %v261 = vld [vmem:[%s234 + $0x98] sm:$0xff]
      %v262 = vld [vmem:[%s234 + $0xa0] sm:$0xff]
      %v263 = vld [vmem:[%s234 + $0xa8] sm:$0xff]
      %v264 = vld [vmem:[%s234 + $0xb0] sm:$0xff]
      %v265 = vld [vmem:[%s234 + $0xb8] sm:$0xff]
      %v266 = vld [vmem:[%s234 + $0xc0] sm:$0xff]
      %v267 = vld [vmem:[%s234 + $0xc8] sm:$0xff]
      %v268 = vld [vmem:[%s234 + $0xd0] sm:$0xff]
      %v269 = vld [vmem:[%s234 + $0xd8] sm:$0xff]
      %v270 = vld [vmem:[%s234 + $0xe0] sm:$0xff]
      %v271 = vld [vmem:[%s234 + $0xe8] sm:$0xff]
      %v272 = vld [vmem:[%s234 + $0xf0] sm:$0xff]
      %v273 = vld [vmem:[%s234 + $0xf8] sm:$0xff]
      %v274 = vld [vmem:[%s234 + $0x100] sm:$0xff]
      %v275 = vld [vmem:[%s234 + $0x108] sm:$0xff]
      %v276 = vld [vmem:[%s234 + $0x110] sm:$0xff]
      %v277 = vld [vmem:[%s234 + $0x118] sm:$0xff]
      %v278 = vld [vmem:[%s1] sm:$0xff]
      %v279 = vld [vmem:[%s234 + $0x1] sm:$0xff]
      %v280 = vld [vmem:[%s234 + $0x9] sm:$0xff]
      %v281 = vld [vmem:[%s234 + $0x11] sm:$0xff]
      %v282 = vld [vmem:[%s234 + $0x19] sm:$0xff]
      %v283 = vld [vmem:[%s234 + $0x21] sm:$0xff]
      %v284 = vld [vmem:[%s234 + $0x29] sm:$0xff]
      %v285 = vld [vmem:[%s234 + $0x31] sm:$0xff]
      %v286 = vld [vmem:[%s234 + $0x39] sm:$0xff]
      %v287 = vld [vmem:[%s234 + $0x41] sm:$0xff]
      %v288 = vld [vmem:[%s234 + $0x49] sm:$0xff]
      %v289 = vld [vmem:[%s234 + $0x51] sm:$0xff]
      %v290 = vld [vmem:[%s234 + $0x59] sm:$0xff]
      %v291 = vld [vmem:[%s234 + $0x61] sm:$0xff]
      %v292 = vld [vmem:[%s234 + $0x69] sm:$0xff]
      %v293 = vld [vmem:[%s234 + $0x71] sm:$0xff]
      %v294 = vld [vmem:[%s234 + $0x79] sm:$0xff]
      %v295 = vld [vmem:[%s234 + $0x81] sm:$0xff]
      %v296 = vld [vmem:[%s234 + $0x89] sm:$0xff]
      %v297 = vld [vmem:[%s234 + $0x91] sm:$0xff]
      %v298 = vld [vmem:[%s234 + $0x99] sm:$0xff]
      %v299 = vld [vmem:[%s234 + $0xa1] sm:$0xff]
      %v300 = vld [vmem:[%s234 + $0xa9] sm:$0xff]
      %v301 = vld [vmem:[%s234 + $0xb1] sm:$0xff]
      %v302 = vld [vmem:[%s234 + $0xb9] sm:$0xff]
      %v303 = vld [vmem:[%s234 + $0xc1] sm:$0xff]
      %v304 = vld [vmem:[%s234 + $0xc9] sm:$0xff]
      %v305 = vld [vmem:[%s234 + $0xd1] sm:$0xff]
      %v306 = vld [vmem:[%s234 + $0xd9] sm:$0xff]
      %v307 = vld [vmem:[%s234 + $0xe1] sm:$0xff]
      %v308 = vld [vmem:[%s234 + $0xe9] sm:$0xff]
      %v309 = vld [vmem:[%s234 + $0xf1] sm:$0xff]
      %v310 = vld [vmem:[%s234 + $0xf9] sm:$0xff]
      %v311 = vld [vmem:[%s234 + $0x101] sm:$0xff]
      %v312 = vld [vmem:[%s234 + $0x109] sm:$0xff]
      %v313 = vld [vmem:[%s234 + $0x111] sm:$0xff]
      %v314 = vld [vmem:[%s234 + $0x119] sm:$0xff]
      %s315 = scalar_lea.vmem %s1, 8
      %v316 = vld [vmem:[%s315] sm:$0xff]
      %vm317 = vcmask 64512
      %v319 = vsel %vm317, %v279, 0
      %v322 = vsel %vm317, %v280, 0
      %v325 = vsel %vm317, %v281, 0
      %v328 = vsel %vm317, %v282, 0
      %v331 = vsel %vm317, %v283, 0
      %v334 = vsel %vm317, %v284, 0
      %v337 = vsel %vm317, %v285, 0
      %v340 = vsel %vm317, %v286, 0
      %v343 = vsel %vm317, %v287, 0
      %v346 = vsel %vm317, %v288, 0
      %v349 = vsel %vm317, %v289, 0
      %v352 = vsel %vm317, %v290, 0
      %v355 = vsel %vm317, %v291, 0
      %v358 = vsel %vm317, %v292, 0
      %v361 = vsel %vm317, %v293, 0
      %v364 = vsel %vm317, %v294, 0
      %v367 = vsel %vm317, %v295, 0
      %v370 = vsel %vm317, %v296, 0
      %v373 = vsel %vm317, %v297, 0
      %v376 = vsel %vm317, %v298, 0
      %v379 = vsel %vm317, %v299, 0
      %v382 = vsel %vm317, %v300, 0
      %v385 = vsel %vm317, %v301, 0
      %v388 = vsel %vm317, %v302, 0
      %v391 = vsel %vm317, %v303, 0
      %v394 = vsel %vm317, %v304, 0
      %v397 = vsel %vm317, %v305, 0
      %v400 = vsel %vm317, %v306, 0
      %v403 = vsel %vm317, %v307, 0
      %v406 = vsel %vm317, %v308, 0
      %v409 = vsel %vm317, %v309, 0
      %v412 = vsel %vm317, %v310, 0
      %v415 = vsel %vm317, %v311, 0
      %v418 = vsel %vm317, %v312, 0
      %v421 = vsel %vm317, %v313, 0
      %v424 = vsel %vm317, %v314, 0
      %426 = vmatprep.subr.mxu0 0.0
      %427 = vmatpush1.msra.mxu0 %v316
      %428 = vmatprep.subr.mxu0 0.0
      %429 = vmatpush1.msra.mxu0 0.0
      %430 = vmatprep.subr.mxu0 0.0
      %431 = vmatpush1.msra.mxu0 0.0
      %432 = vmatprep.subr.mxu0 0.0
      %433 = vmatpush1.msra.mxu0 0.0
      %434 = vmatprep.subr.mxu0 0.0
      %435 = vmatpush1.msra.mxu0 0.0
      %436 = vmatprep.subr.mxu0 0.0
      %437 = vmatpush1.msra.mxu0 0.0
      %438 = vmatprep.subr.mxu0 0.0
      %439 = vmatpush1.msra.mxu0 0.0
      %440 = vmatprep.subr.mxu0 0.0
      %441 = vmatpush1.msra.mxu0 0.0
      %442 = vmatprep.subr.mxu0 0.0
      %443 = vmatpush1.msra.mxu0 0.0
      %444 = vmatprep.subr.mxu0 0.0
      %445 = vmatpush1.msra.mxu0 0.0
      %446 = vmatprep.subr.mxu0 0.0
      %447 = vmatpush1.msra.mxu0 0.0
      %448 = vmatprep.subr.mxu0 0.0
      %449 = vmatpush1.msra.mxu0 0.0
      %450 = vmatprep.subr.mxu0 0.0
      %451 = vmatpush1.msra.mxu0 0.0
      %452 = vmatprep.subr.mxu0 0.0
      %453 = vmatpush1.msra.mxu0 0.0
      %454 = vmatprep.subr.mxu0 0.0
      %455 = vmatpush1.msra.mxu0 0.0
      %456 = vmatprep.subr.mxu0 0.0
      %457 = vmatpush1.msra.mxu0 0.0
      %458 = vmatprep.subr.mxu0 0.0
      %459 = vmatpush1.msra.mxu0 0.0
      %460 = vmatprep.subr.mxu0 0.0
      %461 = vmatpush1.msra.mxu0 0.0
      %462 = vmatprep.subr.mxu0 0.0
      %463 = vmatpush1.msra.mxu0 0.0
      %464 = vmatprep.subr.mxu0 0.0
      %465 = vmatpush1.msra.mxu0 0.0
      %466 = vmatprep.subr.mxu0 0.0
      %467 = vmatpush1.msra.mxu0 0.0
      %468 = vmatprep.subr.mxu0 0.0
      %469 = vmatpush1.msra.mxu0 0.0
      %470 = vmatprep.subr.mxu0 0.0
      %471 = vmatpush1.msra.mxu0 0.0
      %472 = vmatprep.subr.mxu0 0.0
      %473 = vmatpush1.msra.mxu0 0.0
      %474 = vmatprep.subr.mxu0 0.0
      %475 = vmatpush1.msra.mxu0 0.0
      %476 = vmatprep.subr.mxu0 0.0
      %477 = vmatpush1.msra.mxu0 0.0
      %478 = vmatprep.subr.mxu0 0.0
      %479 = vmatpush1.msra.mxu0 0.0
      %480 = vmatprep.subr.mxu0 0.0
      %481 = vmatpush1.msra.mxu0 0.0
      %482 = vmatprep.subr.mxu0 0.0
      %483 = vmatpush1.msra.mxu0 0.0
      %484 = vmatprep.subr.mxu0 0.0
      %485 = vmatpush1.msra.mxu0 0.0
      %486 = vmatprep.subr.mxu0 0.0
      %487 = vmatpush1.msra.mxu0 0.0
      %488 = vmatprep.subr.mxu0 0.0
      %489 = vmatpush1.msra.mxu0 0.0
      %490 = vmatprep.mubr.f32.mxu0 0.0
      %491 = vmatmul.mubr.f32.gmra.mrb[0].mxu0 %v319
      %v492 = vpop.f32.mrb[0].mxu0
      %v493 = vadd.f32 0.0, %v492
      %v494 = vpop.f32.mrb[0].mxu0
      %495 = vmatprep.mubr.f32.mxu0 0.0
      %496 = vmatmul.mubr.f32.gmra.mrb[0].mxu0 %v322
      %v497 = vpop.f32.mrb[0].mxu0
      %v498 = vadd.f32 0.0, %v497
      %v499 = vpop.f32.mrb[0].mxu0
      %500 = vmatprep.mubr.f32.mxu0 0.0
      %501 = vmatmul.mubr.f32.gmra.mrb[0].mxu0 %v325
      %v502 = vpop.f32.mrb[0].mxu0
      %v503 = vadd.f32 0.0, %v502
      %v504 = vpop.f32.mrb[0].mxu0
      %505 = vmatprep.mubr.f32.mxu0 0.0
      %506 = vmatmul.mubr.f32.gmra.mrb[0].mxu0 %v328
      %v507 = vpop.f32.mrb[0].mxu0
      %v508 = vadd.f32 0.0, %v507
      %v509 = vpop.f32.mrb[0].mxu0
      %510 = vmatprep.mubr.f32.mxu0 0.0
      %511 = vmatmul.mubr.f32.gmra.mrb[0].mxu0 %v331
      %v512 = vpop.f32.mrb[0].mxu0
      %v513 = vadd.f32 0.0, %v512
      %v514 = vpop.f32.mrb[0].mxu0
      %515 = vmatprep.mubr.f32.mxu0 0.0
      %516 = vmatmul.mubr.f32.gmra.mrb[0].mxu0 %v334
      %v517 = vpop.f32.mrb[0].mxu0
      %v518 = vadd.f32 0.0, %v517
      %v519 = vpop.f32.mrb[0].mxu0
      %520 = vmatprep.mubr.f32.mxu0 0.0
      %521 = vmatmul.mubr.f32.gmra.mrb[0].mxu0 %v337
      %v522 = vpop.f32.mrb[0].mxu0
      %v523 = vadd.f32 0.0, %v522
      %v524 = vpop.f32.mrb[0].mxu0
      %525 = vmatprep.mubr.f32.mxu0 0.0
      %526 = vmatmul.mubr.f32.gmra.mrb[0].mxu0 %v340
      %v527 = vpop.f32.mrb[0].mxu0
      %v528 = vadd.f32 0.0, %v527
      %v529 = vpop.f32.mrb[0].mxu0
      %530 = vmatprep.mubr.f32.mxu0 0.0
      %531 = vmatmul.mubr.f32.gmra.mrb[0].mxu0 %v343
      %v532 = vpop.f32.mrb[0].mxu0
      %v533 = vadd.f32 0.0, %v532
      %v534 = vpop.f32.mrb[0].mxu0
      %535 = vmatprep.mubr.f32.mxu0 0.0
      %536 = vmatmul.mubr.f32.gmra.mrb[0].mxu0 %v346
      %v537 = vpop.f32.mrb[0].mxu0
      %v538 = vadd.f32 0.0, %v537
      %v539 = vpop.f32.mrb[0].mxu0
      %540 = vmatprep.mubr.f32.mxu0 0.0
      %541 = vmatmul.mubr.f32.gmra.mrb[0].mxu0 %v349
      %v542 = vpop.f32.mrb[0].mxu0
      %v543 = vadd.f32 0.0, %v542
      %v544 = vpop.f32.mrb[0].mxu0
      %545 = vmatprep.mubr.f32.mxu0 0.0
      %546 = vmatmul.mubr.f32.gmra.mrb[0].mxu0 %v352
      %v547 = vpop.f32.mrb[0].mxu0
      %v548 = vadd.f32 0.0, %v547
      %v549 = vpop.f32.mrb[0].mxu0
      %550 = vmatprep.mubr.f32.mxu0 0.0
      %551 = vmatmul.mubr.f32.gmra.mrb[0].mxu0 %v355
      %v552 = vpop.f32.mrb[0].mxu0
      %v553 = vadd.f32 0.0, %v552
      %v554 = vpop.f32.mrb[0].mxu0
      %555 = vmatprep.mubr.f32.mxu0 0.0
      %556 = vmatmul.mubr.f32.gmra.mrb[0].mxu0 %v358
      %v557 = vpop.f32.mrb[0].mxu0
      %v558 = vadd.f32 0.0, %v557
      %v559 = vpop.f32.mrb[0].mxu0
      %560 = vmatprep.mubr.f32.mxu0 0.0
      %561 = vmatmul.mubr.f32.gmra.mrb[0].mxu0 %v361
      %v562 = vpop.f32.mrb[0].mxu0
      %v563 = vadd.f32 0.0, %v562
      %v564 = vpop.f32.mrb[0].mxu0
      %565 = vmatprep.mubr.f32.mxu0 0.0
      %566 = vmatmul.mubr.f32.gmra.mrb[0].mxu0 %v364
      %v567 = vpop.f32.mrb[0].mxu0
      %v568 = vadd.f32 0.0, %v567
      %v569 = vpop.f32.mrb[0].mxu0
      %570 = vmatprep.mubr.f32.mxu0 0.0
      %571 = vmatmul.mubr.f32.gmra.mrb[0].mxu0 %v367
      %v572 = vpop.f32.mrb[0].mxu0
      %v573 = vadd.f32 0.0, %v572
      %v574 = vpop.f32.mrb[0].mxu0
      %575 = vmatprep.mubr.f32.mxu0 0.0
      %576 = vmatmul.mubr.f32.gmra.mrb[0].mxu0 %v370
      %v577 = vpop.f32.mrb[0].mxu0
      %v578 = vadd.f32 0.0, %v577
      %v579 = vpop.f32.mrb[0].mxu0
      %580 = vmatprep.mubr.f32.mxu0 0.0
      %581 = vmatmul.mubr.f32.gmra.mrb[0].mxu0 %v373
      %v582 = vpop.f32.mrb[0].mxu0
      %v583 = vadd.f32 0.0, %v582
      %v584 = vpop.f32.mrb[0].mxu0
      %585 = vmatprep.mubr.f32.mxu0 0.0
      %586 = vmatmul.mubr.f32.gmra.mrb[0].mxu0 %v376
      %v587 = vpop.f32.mrb[0].mxu0
      %v588 = vadd.f32 0.0, %v587
      %v589 = vpop.f32.mrb[0].mxu0
      %590 = vmatprep.mubr.f32.mxu0 0.0
      %591 = vmatmul.mubr.f32.gmra.mrb[0].mxu0 %v379
      %v592 = vpop.f32.mrb[0].mxu0
      %v593 = vadd.f32 0.0, %v592
      %v594 = vpop.f32.mrb[0].mxu0
      %595 = vmatprep.mubr.f32.mxu0 0.0
      %596 = vmatmul.mubr.f32.gmra.mrb[0].mxu0 %v382
      %v597 = vpop.f32.mrb[0].mxu0
      %v598 = vadd.f32 0.0, %v597
      %v599 = vpop.f32.mrb[0].mxu0
      %600 = vmatprep.mubr.f32.mxu0 0.0
      %601 = vmatmul.mubr.f32.gmra.mrb[0].mxu0 %v385
      %v602 = vpop.f32.mrb[0].mxu0
      %v603 = vadd.f32 0.0, %v602
      %v604 = vpop.f32.mrb[0].mxu0
      %605 = vmatprep.mubr.f32.mxu0 0.0
      %606 = vmatmul.mubr.f32.gmra.mrb[0].mxu0 %v388
      %v607 = vpop.f32.mrb[0].mxu0
      %v608 = vadd.f32 0.0, %v607
      %v609 = vpop.f32.mrb[0].mxu0
      %610 = vmatprep.mubr.f32.mxu0 0.0
      %611 = vmatmul.mubr.f32.gmra.mrb[0].mxu0 %v391
      %v612 = vpop.f32.mrb[0].mxu0
      %v613 = vadd.f32 0.0, %v612
      %v614 = vpop.f32.mrb[0].mxu0
      %615 = vmatprep.mubr.f32.mxu0 0.0
      %616 = vmatmul.mubr.f32.gmra.mrb[0].mxu0 %v394
      %v617 = vpop.f32.mrb[0].mxu0
      %v618 = vadd.f32 0.0, %v617
      %v619 = vpop.f32.mrb[0].mxu0
      %620 = vmatprep.mubr.f32.mxu0 0.0
      %621 = vmatmul.mubr.f32.gmra.mrb[0].mxu0 %v397
      %v622 = vpop.f32.mrb[0].mxu0
      %v623 = vadd.f32 0.0, %v622
      %v624 = vpop.f32.mrb[0].mxu0
      %625 = vmatprep.mubr.f32.mxu0 0.0
      %626 = vmatmul.mubr.f32.gmra.mrb[0].mxu0 %v400
      %v627 = vpop.f32.mrb[0].mxu0
      %v628 = vadd.f32 0.0, %v627
      %v629 = vpop.f32.mrb[0].mxu0
      %630 = vmatprep.mubr.f32.mxu0 0.0
      %631 = vmatmul.mubr.f32.gmra.mrb[0].mxu0 %v403
      %v632 = vpop.f32.mrb[0].mxu0
      %v633 = vadd.f32 0.0, %v632
      %v634 = vpop.f32.mrb[0].mxu0
      %635 = vmatprep.mubr.f32.mxu0 0.0
      %636 = vmatmul.mubr.f32.gmra.mrb[0].mxu0 %v406
      %v637 = vpop.f32.mrb[0].mxu0
      %v638 = vadd.f32 0.0, %v637
      %v639 = vpop.f32.mrb[0].mxu0
      %640 = vmatprep.mubr.f32.mxu0 0.0
      %641 = vmatmul.mubr.f32.gmra.mrb[0].mxu0 %v409
      %v642 = vpop.f32.mrb[0].mxu0
      %v643 = vadd.f32 0.0, %v642
      %v644 = vpop.f32.mrb[0].mxu0
      %645 = vmatprep.mubr.f32.mxu0 0.0
      %646 = vmatmul.mubr.f32.gmra.mrb[0].mxu0 %v412
      %v647 = vpop.f32.mrb[0].mxu0
      %v648 = vadd.f32 0.0, %v647
      %v649 = vpop.f32.mrb[0].mxu0
      %650 = vmatprep.mubr.f32.mxu0 0.0
      %651 = vmatmul.mubr.f32.gmra.mrb[0].mxu0 %v415
      %v652 = vpop.f32.mrb[0].mxu0
      %v653 = vadd.f32 0.0, %v652
      %v654 = vpop.f32.mrb[0].mxu0
      %655 = vmatprep.mubr.f32.mxu0 0.0
      %656 = vmatmul.mubr.f32.gmra.mrb[0].mxu0 %v418
      %v657 = vpop.f32.mrb[0].mxu0
      %v658 = vadd.f32 0.0, %v657
      %v659 = vpop.f32.mrb[0].mxu0
      %660 = vmatprep.mubr.f32.mxu0 0.0
      %661 = vmatmul.mubr.f32.gmra.mrb[0].mxu0 %v421
      %v662 = vpop.f32.mrb[0].mxu0
      %v663 = vadd.f32 0.0, %v662
      %v664 = vpop.f32.mrb[0].mxu0
      %665 = vmatprep.mubr.f32.mxu0 0.0
      %666 = vmatmul.mubr.f32.gmra.mrb[0].mxu0 %v424
      %v667 = vpop.f32.mrb[0].mxu0
      %v668 = vadd.f32 0.0, %v667
      %v669 = vpop.f32.mrb[0].mxu0
      %670 = vdwg.mxu0
      %v672 = vsel %vm317, %v242, 0
      %v675 = vsel %vm317, %v243, 0
      %v678 = vsel %vm317, %v244, 0
      %v681 = vsel %vm317, %v245, 0
      %v684 = vsel %vm317, %v246, 0
      %v687 = vsel %vm317, %v247, 0
      %v690 = vsel %vm317, %v248, 0
      %v693 = vsel %vm317, %v249, 0
      %v696 = vsel %vm317, %v250, 0
      %v699 = vsel %vm317, %v251, 0
      %v702 = vsel %vm317, %v252, 0
      %v705 = vsel %vm317, %v253, 0
      %v708 = vsel %vm317, %v254, 0
      %v711 = vsel %vm317, %v255, 0
      %v714 = vsel %vm317, %v256, 0
      %v717 = vsel %vm317, %v257, 0
      %v720 = vsel %vm317, %v258, 0
      %v723 = vsel %vm317, %v259, 0
      %v726 = vsel %vm317, %v260, 0
      %v729 = vsel %vm317, %v261, 0
      %v732 = vsel %vm317, %v262, 0
      %v735 = vsel %vm317, %v263, 0
      %v738 = vsel %vm317, %v264, 0
      %v741 = vsel %vm317, %v265, 0
      %v744 = vsel %vm317, %v266, 0
      %v747 = vsel %vm317, %v267, 0
      %v750 = vsel %vm317, %v268, 0
      %v753 = vsel %vm317, %v269, 0
      %v756 = vsel %vm317, %v270, 0
      %v759 = vsel %vm317, %v271, 0
      %v762 = vsel %vm317, %v272, 0
      %v765 = vsel %vm317, %v273, 0
      %v768 = vsel %vm317, %v274, 0
      %v771 = vsel %vm317, %v275, 0
      %v774 = vsel %vm317, %v276, 0
      %v777 = vsel %vm317, %v277, 0
      %779 = vmatprep.subr.mxu0 0.0
      %780 = vmatpush1.msra.mxu0 %v278
      %781 = vmatprep.subr.mxu0 0.0
      %782 = vmatpush1.msra.mxu0 0.0
      %783 = vmatprep.subr.mxu0 0.0
      %784 = vmatpush1.msra.mxu0 0.0
      %785 = vmatprep.subr.mxu0 0.0
      %786 = vmatpush1.msra.mxu0 0.0
      %787 = vmatprep.subr.mxu0 0.0
      %788 = vmatpush1.msra.mxu0 0.0
      %789 = vmatprep.subr.mxu0 0.0
      %790 = vmatpush1.msra.mxu0 0.0
      %791 = vmatprep.subr.mxu0 0.0
      %792 = vmatpush1.msra.mxu0 0.0
      %793 = vmatprep.subr.mxu0 0.0
      %794 = vmatpush1.msra.mxu0 0.0
      %795 = vmatprep.subr.mxu0 0.0
      %796 = vmatpush1.msra.mxu0 0.0
      %797 = vmatprep.subr.mxu0 0.0
      %798 = vmatpush1.msra.mxu0 0.0
      %799 = vmatprep.subr.mxu0 0.0
      %800 = vmatpush1.msra.mxu0 0.0
      %801 = vmatprep.subr.mxu0 0.0
      %802 = vmatpush1.msra.mxu0 0.0
      %803 = vmatprep.subr.mxu0 0.0
      %804 = vmatpush1.msra.mxu0 0.0
      %805 = vmatprep.subr.mxu0 0.0
      %806 = vmatpush1.msra.mxu0 0.0
      %807 = vmatprep.subr.mxu0 0.0
      %808 = vmatpush1.msra.mxu0 0.0
      %809 = vmatprep.subr.mxu0 0.0
      %810 = vmatpush1.msra.mxu0 0.0
      %811 = vmatprep.subr.mxu0 0.0
      %812 = vmatpush1.msra.mxu0 0.0
      %813 = vmatprep.subr.mxu0 0.0
      %814 = vmatpush1.msra.mxu0 0.0
      %815 = vmatprep.subr.mxu0 0.0
      %816 = vmatpush1.msra.mxu0 0.0
      %817 = vmatprep.subr.mxu0 0.0
      %818 = vmatpush1.msra.mxu0 0.0
      %819 = vmatprep.subr.mxu0 0.0
      %820 = vmatpush1.msra.mxu0 0.0
      %821 = vmatprep.subr.mxu0 0.0
      %822 = vmatpush1.msra.mxu0 0.0
      %823 = vmatprep.subr.mxu0 0.0
      %824 = vmatpush1.msra.mxu0 0.0
      %825 = vmatprep.subr.mxu0 0.0
      %826 = vmatpush1.msra.mxu0 0.0
      %827 = vmatprep.subr.mxu0 0.0
      %828 = vmatpush1.msra.mxu0 0.0
      %829 = vmatprep.subr.mxu0 0.0
      %830 = vmatpush1.msra.mxu0 0.0
      %831 = vmatprep.subr.mxu0 0.0
      %832 = vmatpush1.msra.mxu0 0.0
      %833 = vmatprep.subr.mxu0 0.0
      %834 = vmatpush1.msra.mxu0 0.0
      %835 = vmatprep.subr.mxu0 0.0
      %836 = vmatpush1.msra.mxu0 0.0
      %837 = vmatprep.subr.mxu0 0.0
      %838 = vmatpush1.msra.mxu0 0.0
      %839 = vmatprep.subr.mxu0 0.0
      %840 = vmatpush1.msra.mxu0 0.0
      %841 = vmatprep.subr.mxu0 0.0
      %842 = vmatpush1.msra.mxu0 0.0
      %843 = vmatprep.mubr.f32.mxu0 0.0
      %844 = vmatmul.mubr.f32.gmra.mrb[0].mxu0 %v672
      %v845 = vpop.f32.mrb[0].mxu0
      %v846 = vadd.f32 %v493, %v845
      %v847 = vpop.f32.mrb[0].mxu0
      %848 = vmatprep.mubr.f32.mxu0 0.0
      %849 = vmatmul.mubr.f32.gmra.mrb[0].mxu0 %v675
      %v850 = vpop.f32.mrb[0].mxu0
      %v851 = vadd.f32 %v498, %v850
      %v852 = vpop.f32.mrb[0].mxu0
      %853 = vmatprep.mubr.f32.mxu0 0.0
      %854 = vmatmul.mubr.f32.gmra.mrb[0].mxu0 %v678
      %v855 = vpop.f32.mrb[0].mxu0
      %v856 = vadd.f32 %v503, %v855
      %v857 = vpop.f32.mrb[0].mxu0
      %858 = vmatprep.mubr.f32.mxu0 0.0
      %859 = vmatmul.mubr.f32.gmra.mrb[0].mxu0 %v681
      %v860 = vpop.f32.mrb[0].mxu0
      %v861 = vadd.f32 %v508, %v860
      %v862 = vpop.f32.mrb[0].mxu0
      %863 = vmatprep.mubr.f32.mxu0 0.0
      %864 = vmatmul.mubr.f32.gmra.mrb[0].mxu0 %v684
      %v865 = vpop.f32.mrb[0].mxu0
      %v866 = vadd.f32 %v513, %v865
      %v867 = vpop.f32.mrb[0].mxu0
      %868 = vmatprep.mubr.f32.mxu0 0.0
      %869 = vmatmul.mubr.f32.gmra.mrb[0].mxu0 %v687
      %v870 = vpop.f32.mrb[0].mxu0
      %v871 = vadd.f32 %v518, %v870
      %v872 = vpop.f32.mrb[0].mxu0
      %873 = vmatprep.mubr.f32.mxu0 0.0
      %874 = vmatmul.mubr.f32.gmra.mrb[0].mxu0 %v690
      %v875 = vpop.f32.mrb[0].mxu0
      %v876 = vadd.f32 %v523, %v875
      %v877 = vpop.f32.mrb[0].mxu0
      %878 = vmatprep.mubr.f32.mxu0 0.0
      %879 = vmatmul.mubr.f32.gmra.mrb[0].mxu0 %v693
      %v880 = vpop.f32.mrb[0].mxu0
      %v881 = vadd.f32 %v528, %v880
      %v882 = vpop.f32.mrb[0].mxu0
      %883 = vmatprep.mubr.f32.mxu0 0.0
      %884 = vmatmul.mubr.f32.gmra.mrb[0].mxu0 %v696
      %v885 = vpop.f32.mrb[0].mxu0
      %v886 = vadd.f32 %v533, %v885
      %v887 = vpop.f32.mrb[0].mxu0
      %888 = vmatprep.mubr.f32.mxu0 0.0
      %889 = vmatmul.mubr.f32.gmra.mrb[0].mxu0 %v699
      %v890 = vpop.f32.mrb[0].mxu0
      %v891 = vadd.f32 %v538, %v890
      %v892 = vpop.f32.mrb[0].mxu0
      %893 = vmatprep.mubr.f32.mxu0 0.0
      %894 = vmatmul.mubr.f32.gmra.mrb[0].mxu0 %v702
      %v895 = vpop.f32.mrb[0].mxu0
      %v896 = vadd.f32 %v543, %v895
      %v897 = vpop.f32.mrb[0].mxu0
      %898 = vmatprep.mubr.f32.mxu0 0.0
      %899 = vmatmul.mubr.f32.gmra.mrb[0].mxu0 %v705
      %v900 = vpop.f32.mrb[0].mxu0
      %v901 = vadd.f32 %v548, %v900
      %v902 = vpop.f32.mrb[0].mxu0
      %903 = vmatprep.mubr.f32.mxu0 0.0
      %904 = vmatmul.mubr.f32.gmra.mrb[0].mxu0 %v708
      %v905 = vpop.f32.mrb[0].mxu0
      %v906 = vadd.f32 %v553, %v905
      %v907 = vpop.f32.mrb[0].mxu0
      %908 = vmatprep.mubr.f32.mxu0 0.0
      %909 = vmatmul.mubr.f32.gmra.mrb[0].mxu0 %v711
      %v910 = vpop.f32.mrb[0].mxu0
      %v911 = vadd.f32 %v558, %v910
      %v912 = vpop.f32.mrb[0].mxu0
      %913 = vmatprep.mubr.f32.mxu0 0.0
      %914 = vmatmul.mubr.f32.gmra.mrb[0].mxu0 %v714
      %v915 = vpop.f32.mrb[0].mxu0
      %v916 = vadd.f32 %v563, %v915
      %v917 = vpop.f32.mrb[0].mxu0
      %918 = vmatprep.mubr.f32.mxu0 0.0
      %919 = vmatmul.mubr.f32.gmra.mrb[0].mxu0 %v717
      %v920 = vpop.f32.mrb[0].mxu0
      %v921 = vadd.f32 %v568, %v920
      %v922 = vpop.f32.mrb[0].mxu0
      %923 = vmatprep.mubr.f32.mxu0 0.0
      %924 = vmatmul.mubr.f32.gmra.mrb[0].mxu0 %v720
      %v925 = vpop.f32.mrb[0].mxu0
      %v926 = vadd.f32 %v573, %v925
      %v927 = vpop.f32.mrb[0].mxu0
      %928 = vmatprep.mubr.f32.mxu0 0.0
      %929 = vmatmul.mubr.f32.gmra.mrb[0].mxu0 %v723
      %v930 = vpop.f32.mrb[0].mxu0
      %v931 = vadd.f32 %v578, %v930
      %v932 = vpop.f32.mrb[0].mxu0
      %933 = vmatprep.mubr.f32.mxu0 0.0
      %934 = vmatmul.mubr.f32.gmra.mrb[0].mxu0 %v726
      %v935 = vpop.f32.mrb[0].mxu0
      %v936 = vadd.f32 %v583, %v935
      %v937 = vpop.f32.mrb[0].mxu0
      %938 = vmatprep.mubr.f32.mxu0 0.0
      %939 = vmatmul.mubr.f32.gmra.mrb[0].mxu0 %v729
      %v940 = vpop.f32.mrb[0].mxu0
      %v941 = vadd.f32 %v588, %v940
      %v942 = vpop.f32.mrb[0].mxu0
      %943 = vmatprep.mubr.f32.mxu0 0.0
      %944 = vmatmul.mubr.f32.gmra.mrb[0].mxu0 %v732
      %v945 = vpop.f32.mrb[0].mxu0
      %v946 = vadd.f32 %v593, %v945
      %v947 = vpop.f32.mrb[0].mxu0
      %948 = vmatprep.mubr.f32.mxu0 0.0
      %949 = vmatmul.mubr.f32.gmra.mrb[0].mxu0 %v735
      %v950 = vpop.f32.mrb[0].mxu0
      %v951 = vadd.f32 %v598, %v950
      %v952 = vpop.f32.mrb[0].mxu0
      %953 = vmatprep.mubr.f32.mxu0 0.0
      %954 = vmatmul.mubr.f32.gmra.mrb[0].mxu0 %v738
      %v955 = vpop.f32.mrb[0].mxu0
      %v956 = vadd.f32 %v603, %v955
      %v957 = vpop.f32.mrb[0].mxu0
      %958 = vmatprep.mubr.f32.mxu0 0.0
      %959 = vmatmul.mubr.f32.gmra.mrb[0].mxu0 %v741
      %v960 = vpop.f32.mrb[0].mxu0
      %v961 = vadd.f32 %v608, %v960
      %v962 = vpop.f32.mrb[0].mxu0
      %963 = vmatprep.mubr.f32.mxu0 0.0
      %964 = vmatmul.mubr.f32.gmra.mrb[0].mxu0 %v744
      %v965 = vpop.f32.mrb[0].mxu0
      %v966 = vadd.f32 %v613, %v965
      %v967 = vpop.f32.mrb[0].mxu0
      %968 = vmatprep.mubr.f32.mxu0 0.0
      %969 = vmatmul.mubr.f32.gmra.mrb[0].mxu0 %v747
      %v970 = vpop.f32.mrb[0].mxu0
      %v971 = vadd.f32 %v618, %v970
      %v972 = vpop.f32.mrb[0].mxu0
      %973 = vmatprep.mubr.f32.mxu0 0.0
      %974 = vmatmul.mubr.f32.gmra.mrb[0].mxu0 %v750
      %v975 = vpop.f32.mrb[0].mxu0
      %v976 = vadd.f32 %v623, %v975
      %v977 = vpop.f32.mrb[0].mxu0
      %978 = vmatprep.mubr.f32.mxu0 0.0
      %979 = vmatmul.mubr.f32.gmra.mrb[0].mxu0 %v753
      %v980 = vpop.f32.mrb[0].mxu0
      %v981 = vadd.f32 %v628, %v980
      %v982 = vpop.f32.mrb[0].mxu0
      %983 = vmatprep.mubr.f32.mxu0 0.0
      %984 = vmatmul.mubr.f32.gmra.mrb[0].mxu0 %v756
      %v985 = vpop.f32.mrb[0].mxu0
      %v986 = vadd.f32 %v633, %v985
      %v987 = vpop.f32.mrb[0].mxu0
      %988 = vmatprep.mubr.f32.mxu0 0.0
      %989 = vmatmul.mubr.f32.gmra.mrb[0].mxu0 %v759
      %v990 = vpop.f32.mrb[0].mxu0
      %v991 = vadd.f32 %v638, %v990
      %v992 = vpop.f32.mrb[0].mxu0
      %993 = vmatprep.mubr.f32.mxu0 0.0
      %994 = vmatmul.mubr.f32.gmra.mrb[0].mxu0 %v762
      %v995 = vpop.f32.mrb[0].mxu0
      %v996 = vadd.f32 %v643, %v995
      %v997 = vpop.f32.mrb[0].mxu0
      %998 = vmatprep.mubr.f32.mxu0 0.0
      %999 = vmatmul.mubr.f32.gmra.mrb[0].mxu0 %v765
      %v1000 = vpop.f32.mrb[0].mxu0
      %v1001 = vadd.f32 %v648, %v1000
      %v1002 = vpop.f32.mrb[0].mxu0
      %1003 = vmatprep.mubr.f32.mxu0 0.0
      %1004 = vmatmul.mubr.f32.gmra.mrb[0].mxu0 %v768
      %v1005 = vpop.f32.mrb[0].mxu0
      %v1006 = vadd.f32 %v653, %v1005
      %v1007 = vpop.f32.mrb[0].mxu0
      %1008 = vmatprep.mubr.f32.mxu0 0.0
      %1009 = vmatmul.mubr.f32.gmra.mrb[0].mxu0 %v771
      %v1010 = vpop.f32.mrb[0].mxu0
      %v1011 = vadd.f32 %v658, %v1010
      %v1012 = vpop.f32.mrb[0].mxu0
      %1013 = vmatprep.mubr.f32.mxu0 0.0
      %1014 = vmatmul.mubr.f32.gmra.mrb[0].mxu0 %v774
      %v1015 = vpop.f32.mrb[0].mxu0
      %v1016 = vadd.f32 %v663, %v1015
      %v1017 = vpop.f32.mrb[0].mxu0
      %1018 = vmatprep.mubr.f32.mxu0 0.0
      %1019 = vmatmul.mubr.f32.gmra.mrb[0].mxu0 %v777
      %v1020 = vpop.f32.mrb[0].mxu0
      %v1021 = vadd.f32 %v668, %v1020
      %v1022 = vpop.f32.mrb[0].mxu0
      %1023 = vdwg.mxu0
      %v1024 = vld [vmem:[%s234 + $0x2] sm:$0xff]
      %v1025 = vld [vmem:[%s234 + $0xa] sm:$0xff]
      %v1026 = vld [vmem:[%s234 + $0x12] sm:$0xff]
      %v1027 = vld [vmem:[%s234 + $0x1a] sm:$0xff]
      %v1028 = vld [vmem:[%s234 + $0x22] sm:$0xff]
      %v1029 = vld [vmem:[%s234 + $0x2a] sm:$0xff]
      %v1030 = vld [vmem:[%s234 + $0x32] sm:$0xff]
      %v1031 = vld [vmem:[%s234 + $0x3a] sm:$0xff]
      %v1032 = vld [vmem:[%s234 + $0x42] sm:$0xff]
      %v1033 = vld [vmem:[%s234 + $0x4a] sm:$0xff]
      %v1034 = vld [vmem:[%s234 + $0x52] sm:$0xff]
      %v1035 = vld [vmem:[%s234 + $0x5a] sm:$0xff]
      %v1036 = vld [vmem:[%s234 + $0x62] sm:$0xff]
      %v1037 = vld [vmem:[%s234 + $0x6a] sm:$0xff]
      %v1038 = vld [vmem:[%s234 + $0x72] sm:$0xff]
      %v1039 = vld [vmem:[%s234 + $0x7a] sm:$0xff]
      %v1040 = vld [vmem:[%s234 + $0x82] sm:$0xff]
      %v1041 = vld [vmem:[%s234 + $0x8a] sm:$0xff]
      %v1042 = vld [vmem:[%s234 + $0x92] sm:$0xff]
      %v1043 = vld [vmem:[%s234 + $0x9a] sm:$0xff]
      %v1044 = vld [vmem:[%s234 + $0xa2] sm:$0xff]
      %v1045 = vld [vmem:[%s234 + $0xaa] sm:$0xff]
      %v1046 = vld [vmem:[%s234 + $0xb2] sm:$0xff]
      %v1047 = vld [vmem:[%s234 + $0xba] sm:$0xff]
      %v1048 = vld [vmem:[%s234 + $0xc2] sm:$0xff]
      %v1049 = vld [vmem:[%s234 + $0xca] sm:$0xff]
      %v1050 = vld [vmem:[%s234 + $0xd2] sm:$0xff]
      %v1051 = vld [vmem:[%s234 + $0xda] sm:$0xff]
      %v1052 = vld [vmem:[%s234 + $0xe2] sm:$0xff]
      %v1053 = vld [vmem:[%s234 + $0xea] sm:$0xff]
      %v1054 = vld [vmem:[%s234 + $0xf2] sm:$0xff]
      %v1055 = vld [vmem:[%s234 + $0xfa] sm:$0xff]
      %v1056 = vld [vmem:[%s234 + $0x102] sm:$0xff]
      %v1057 = vld [vmem:[%s234 + $0x10a] sm:$0xff]
      %v1058 = vld [vmem:[%s234 + $0x112] sm:$0xff]
      %v1059 = vld [vmem:[%s234 + $0x11a] sm:$0xff]
      %s1060 = scalar_lea.vmem %s1, 16
      %v1061 = vld [vmem:[%s1060] sm:$0xff]
      %v1063 = vsel %vm317, %v1024, 0
      %v1066 = vsel %vm317, %v1025, 0
      %v1069 = vsel %vm317, %v1026, 0
      %v1072 = vsel %vm317, %v1027, 0
      %v1075 = vsel %vm317, %v1028, 0
      %v1078 = vsel %vm317, %v1029, 0
      %v1081 = vsel %vm317, %v1030, 0
      %v1084 = vsel %vm317, %v1031, 0
      %v1087 = vsel %vm317, %v1032, 0
      %v1090 = vsel %vm317, %v1033, 0
      %v1093 = vsel %vm317, %v1034, 0
      %v1096 = vsel %vm317, %v1035, 0
      %v1099 = vsel %vm317, %v1036, 0
      %v1102 = vsel %vm317, %v1037, 0
      %v1105 = vsel %vm317, %v1038, 0
      %v1108 = vsel %vm317, %v1039, 0
      %v1111 = vsel %vm317, %v1040, 0
      %v1114 = vsel %vm317, %v1041, 0
      %v1117 = vsel %vm317, %v1042, 0
      %v1120 = vsel %vm317, %v1043, 0
      %v1123 = vsel %vm317, %v1044, 0
      %v1126 = vsel %vm317, %v1045, 0
      %v1129 = vsel %vm317, %v1046, 0
      %v1132 = vsel %vm317, %v1047, 0
      %v1135 = vsel %vm317, %v1048, 0
      %v1138 = vsel %vm317, %v1049, 0
      %v1141 = vsel %vm317, %v1050, 0
      %v1144 = vsel %vm317, %v1051, 0
      %v1147 = vsel %vm317, %v1052, 0
      %v1150 = vsel %vm317, %v1053, 0
      %v1153 = vsel %vm317, %v1054, 0
      %v1156 = vsel %vm317, %v1055, 0
      %v1159 = vsel %vm317, %v1056, 0
      %v1162 = vsel %vm317, %v1057, 0
      %v1165 = vsel %vm317, %v1058, 0
      %v1168 = vsel %vm317, %v1059, 0
      %1170 = vmatprep.subr.mxu0 0.0
      %1171 = vmatpush1.msra.mxu0 %v1061
      %1172 = vmatprep.subr.mxu0 0.0
      %1173 = vmatpush1.msra.mxu0 0.0
      %1174 = vmatprep.subr.mxu0 0.0
      %1175 = vmatpush1.msra.mxu0 0.0
      %1176 = vmatprep.subr.mxu0 0.0
      %1177 = vmatpush1.msra.mxu0 0.0
      %1178 = vmatprep.subr.mxu0 0.0
      %1179 = vmatpush1.msra.mxu0 0.0
      %1180 = vmatprep.subr.mxu0 0.0
      %1181 = vmatpush1.msra.mxu0 0.0
      %1182 = vmatprep.subr.mxu0 0.0
      %1183 = vmatpush1.msra.mxu0 0.0
      %1184 = vmatprep.subr.mxu0 0.0
      %1185 = vmatpush1.msra.mxu0 0.0
      %1186 = vmatprep.subr.mxu0 0.0
      %1187 = vmatpush1.msra.mxu0 0.0
      %1188 = vmatprep.subr.mxu0 0.0
      %1189 = vmatpush1.msra.mxu0 0.0
      %1190 = vmatprep.subr.mxu0 0.0
      %1191 = vmatpush1.msra.mxu0 0.0
      %1192 = vmatprep.subr.mxu0 0.0
      %1193 = vmatpush1.msra.mxu0 0.0
      %1194 = vmatprep.subr.mxu0 0.0
      %1195 = vmatpush1.msra.mxu0 0.0
      %1196 = vmatprep.subr.mxu0 0.0
      %1197 = vmatpush1.msra.mxu0 0.0
      %1198 = vmatprep.subr.mxu0 0.0
      %1199 = vmatpush1.msra.mxu0 0.0
      %1200 = vmatprep.subr.mxu0 0.0
      %1201 = vmatpush1.msra.mxu0 0.0
      %1202 = vmatprep.subr.mxu0 0.0
      %1203 = vmatpush1.msra.mxu0 0.0
      %1204 = vmatprep.subr.mxu0 0.0
      %1205 = vmatpush1.msra.mxu0 0.0
      %1206 = vmatprep.subr.mxu0 0.0
      %1207 = vmatpush1.msra.mxu0 0.0
      %1208 = vmatprep.subr.mxu0 0.0
      %1209 = vmatpush1.msra.mxu0 0.0
      %1210 = vmatprep.subr.mxu0 0.0
      %1211 = vmatpush1.msra.mxu0 0.0
      %1212 = vmatprep.subr.mxu0 0.0
      %1213 = vmatpush1.msra.mxu0 0.0
      %1214 = vmatprep.subr.mxu0 0.0
      %1215 = vmatpush1.msra.mxu0 0.0
      %1216 = vmatprep.subr.mxu0 0.0
      %1217 = vmatpush1.msra.mxu0 0.0
      %1218 = vmatprep.subr.mxu0 0.0
      %1219 = vmatpush1.msra.mxu0 0.0
      %1220 = vmatprep.subr.mxu0 0.0
      %1221 = vmatpush1.msra.mxu0 0.0
      %1222 = vmatprep.subr.mxu0 0.0
      %1223 = vmatpush1.msra.mxu0 0.0
      %1224 = vmatprep.subr.mxu0 0.0
      %1225 = vmatpush1.msra.mxu0 0.0
      %1226 = vmatprep.subr.mxu0 0.0
      %1227 = vmatpush1.msra.mxu0 0.0
      %1228 = vmatprep.subr.mxu0 0.0
      %1229 = vmatpush1.msra.mxu0 0.0
      %1230 = vmatprep.subr.mxu0 0.0
      %1231 = vmatpush1.msra.mxu0 0.0
      %1232 = vmatprep.subr.mxu0 0.0
      %1233 = vmatpush1.msra.mxu0 0.0
      %1234 = vmatprep.mubr.f32.mxu0 0.0
      %1235 = vmatmul.mubr.f32.gmra.mrb[0].mxu0 %v1063
      %v1236 = vpop.f32.mrb[0].mxu0
      %v1237 = vadd.f32 0.0, %v1236
      %v1238 = vpop.f32.mrb[0].mxu0
      %1239 = vmatprep.mubr.f32.mxu0 0.0
      %1240 = vmatmul.mubr.f32.gmra.mrb[0].mxu0 %v1066
      %v1241 = vpop.f32.mrb[0].mxu0
      %v1242 = vadd.f32 0.0, %v1241
      %v1243 = vpop.f32.mrb[0].mxu0
      %1244 = vmatprep.mubr.f32.mxu0 0.0
      %1245 = vmatmul.mubr.f32.gmra.mrb[0].mxu0 %v1069
      %v1246 = vpop.f32.mrb[0].mxu0
      %v1247 = vadd.f32 0.0, %v1246
      %v1248 = vpop.f32.mrb[0].mxu0
      %1249 = vmatprep.mubr.f32.mxu0 0.0
      %1250 = vmatmul.mubr.f32.gmra.mrb[0].mxu0 %v1072
      %v1251 = vpop.f32.mrb[0].mxu0
      %v1252 = vadd.f32 0.0, %v1251
      %v1253 = vpop.f32.mrb[0].mxu0
      %1254 = vmatprep.mubr.f32.mxu0 0.0
      %1255 = vmatmul.mubr.f32.gmra.mrb[0].mxu0 %v1075
      %v1256 = vpop.f32.mrb[0].mxu0
      %v1257 = vadd.f32 0.0, %v1256
      %v1258 = vpop.f32.mrb[0].mxu0
      %1259 = vmatprep.mubr.f32.mxu0 0.0
      %1260 = vmatmul.mubr.f32.gmra.mrb[0].mxu0 %v1078
      %v1261 = vpop.f32.mrb[0].mxu0
      %v1262 = vadd.f32 0.0, %v1261
      %v1263 = vpop.f32.mrb[0].mxu0
      %1264 = vmatprep.mubr.f32.mxu0 0.0
      %1265 = vmatmul.mubr.f32.gmra.mrb[0].mxu0 %v1081
      %v1266 = vpop.f32.mrb[0].mxu0
      %v1267 = vadd.f32 0.0, %v1266
      %v1268 = vpop.f32.mrb[0].mxu0
      %1269 = vmatprep.mubr.f32.mxu0 0.0
      %1270 = vmatmul.mubr.f32.gmra.mrb[0].mxu0 %v1084
      %v1271 = vpop.f32.mrb[0].mxu0
      %v1272 = vadd.f32 0.0, %v1271
      %v1273 = vpop.f32.mrb[0].mxu0
      %1274 = vmatprep.mubr.f32.mxu0 0.0
      %1275 = vmatmul.mubr.f32.gmra.mrb[0].mxu0 %v1087
      %v1276 = vpop.f32.mrb[0].mxu0
      %v1277 = vadd.f32 0.0, %v1276
      %v1278 = vpop.f32.mrb[0].mxu0
      %1279 = vmatprep.mubr.f32.mxu0 0.0
      %1280 = vmatmul.mubr.f32.gmra.mrb[0].mxu0 %v1090
      %v1281 = vpop.f32.mrb[0].mxu0
      %v1282 = vadd.f32 0.0, %v1281
      %v1283 = vpop.f32.mrb[0].mxu0
      %1284 = vmatprep.mubr.f32.mxu0 0.0
      %1285 = vmatmul.mubr.f32.gmra.mrb[0].mxu0 %v1093
      %v1286 = vpop.f32.mrb[0].mxu0
      %v1287 = vadd.f32 0.0, %v1286
      %v1288 = vpop.f32.mrb[0].mxu0
      %1289 = vmatprep.mubr.f32.mxu0 0.0
      %1290 = vmatmul.mubr.f32.gmra.mrb[0].mxu0 %v1096
      %v1291 = vpop.f32.mrb[0].mxu0
      %v1292 = vadd.f32 0.0, %v1291
      %v1293 = vpop.f32.mrb[0].mxu0
      %1294 = vmatprep.mubr.f32.mxu0 0.0
      %1295 = vmatmul.mubr.f32.gmra.mrb[0].mxu0 %v1099
      %v1296 = vpop.f32.mrb[0].mxu0
      %v1297 = vadd.f32 0.0, %v1296
      %v1298 = vpop.f32.mrb[0].mxu0
      %1299 = vmatprep.mubr.f32.mxu0 0.0
      %1300 = vmatmul.mubr.f32.gmra.mrb[0].mxu0 %v1102
      %v1301 = vpop.f32.mrb[0].mxu0
      %v1302 = vadd.f32 0.0, %v1301
      %v1303 = vpop.f32.mrb[0].mxu0
      %1304 = vmatprep.mubr.f32.mxu0 0.0
      %1305 = vmatmul.mubr.f32.gmra.mrb[0].mxu0 %v1105
      %v1306 = vpop.f32.mrb[0].mxu0
      %v1307 = vadd.f32 0.0, %v1306
      %v1308 = vpop.f32.mrb[0].mxu0
      %1309 = vmatprep.mubr.f32.mxu0 0.0
      %1310 = vmatmul.mubr.f32.gmra.mrb[0].mxu0 %v1108
      %v1311 = vpop.f32.mrb[0].mxu0
      %v1312 = vadd.f32 0.0, %v1311
      %v1313 = vpop.f32.mrb[0].mxu0
      %1314 = vmatprep.mubr.f32.mxu0 0.0
      %1315 = vmatmul.mubr.f32.gmra.mrb[0].mxu0 %v1111
      %v1316 = vpop.f32.mrb[0].mxu0
      %v1317 = vadd.f32 0.0, %v1316
      %v1318 = vpop.f32.mrb[0].mxu0
      %1319 = vmatprep.mubr.f32.mxu0 0.0
      %1320 = vmatmul.mubr.f32.gmra.mrb[0].mxu0 %v1114
      %v1321 = vpop.f32.mrb[0].mxu0
      %v1322 = vadd.f32 0.0, %v1321
      %v1323 = vpop.f32.mrb[0].mxu0
      %1324 = vmatprep.mubr.f32.mxu0 0.0
      %1325 = vmatmul.mubr.f32.gmra.mrb[0].mxu0 %v1117
      %v1326 = vpop.f32.mrb[0].mxu0
      %v1327 = vadd.f32 0.0, %v1326
      %v1328 = vpop.f32.mrb[0].mxu0
      %1329 = vmatprep.mubr.f32.mxu0 0.0
      %1330 = vmatmul.mubr.f32.gmra.mrb[0].mxu0 %v1120
      %v1331 = vpop.f32.mrb[0].mxu0
      %v1332 = vadd.f32 0.0, %v1331
      %v1333 = vpop.f32.mrb[0].mxu0
      %1334 = vmatprep.mubr.f32.mxu0 0.0
      %1335 = vmatmul.mubr.f32.gmra.mrb[0].mxu0 %v1123
      %v1336 = vpop.f32.mrb[0].mxu0
      %v1337 = vadd.f32 0.0, %v1336
      %v1338 = vpop.f32.mrb[0].mxu0
      %1339 = vmatprep.mubr.f32.mxu0 0.0
      %1340 = vmatmul.mubr.f32.gmra.mrb[0].mxu0 %v1126
      %v1341 = vpop.f32.mrb[0].mxu0
      %v1342 = vadd.f32 0.0, %v1341
      %v1343 = vpop.f32.mrb[0].mxu0
      %1344 = vmatprep.mubr.f32.mxu0 0.0
      %1345 = vmatmul.mubr.f32.gmra.mrb[0].mxu0 %v1129
      %v1346 = vpop.f32.mrb[0].mxu0
      %v1347 = vadd.f32 0.0, %v1346
      %v1348 = vpop.f32.mrb[0].mxu0
      %1349 = vmatprep.mubr.f32.mxu0 0.0
      %1350 = vmatmul.mubr.f32.gmra.mrb[0].mxu0 %v1132
      %v1351 = vpop.f32.mrb[0].mxu0
      %v1352 = vadd.f32 0.0, %v1351
      %v1353 = vpop.f32.mrb[0].mxu0
      %1354 = vmatprep.mubr.f32.mxu0 0.0
      %1355 = vmatmul.mubr.f32.gmra.mrb[0].mxu0 %v1135
      %v1356 = vpop.f32.mrb[0].mxu0
      %v1357 = vadd.f32 0.0, %v1356
      %v1358 = vpop.f32.mrb[0].mxu0
      %1359 = vmatprep.mubr.f32.mxu0 0.0
      %1360 = vmatmul.mubr.f32.gmra.mrb[0].mxu0 %v1138
      %v1361 = vpop.f32.mrb[0].mxu0
      %v1362 = vadd.f32 0.0, %v1361
      %v1363 = vpop.f32.mrb[0].mxu0
      %1364 = vmatprep.mubr.f32.mxu0 0.0
      %1365 = vmatmul.mubr.f32.gmra.mrb[0].mxu0 %v1141
      %v1366 = vpop.f32.mrb[0].mxu0
      %v1367 = vadd.f32 0.0, %v1366
      %v1368 = vpop.f32.mrb[0].mxu0
      %1369 = vmatprep.mubr.f32.mxu0 0.0
      %1370 = vmatmul.mubr.f32.gmra.mrb[0].mxu0 %v1144
      %v1371 = vpop.f32.mrb[0].mxu0
      %v1372 = vadd.f32 0.0, %v1371
      %v1373 = vpop.f32.mrb[0].mxu0
      %1374 = vmatprep.mubr.f32.mxu0 0.0
      %1375 = vmatmul.mubr.f32.gmra.mrb[0].mxu0 %v1147
      %v1376 = vpop.f32.mrb[0].mxu0
      %v1377 = vadd.f32 0.0, %v1376
      %v1378 = vpop.f32.mrb[0].mxu0
      %1379 = vmatprep.mubr.f32.mxu0 0.0
      %1380 = vmatmul.mubr.f32.gmra.mrb[0].mxu0 %v1150
      %v1381 = vpop.f32.mrb[0].mxu0
      %v1382 = vadd.f32 0.0, %v1381
      %v1383 = vpop.f32.mrb[0].mxu0
      %1384 = vmatprep.mubr.f32.mxu0 0.0
      %1385 = vmatmul.mubr.f32.gmra.mrb[0].mxu0 %v1153
      %v1386 = vpop.f32.mrb[0].mxu0
      %v1387 = vadd.f32 0.0, %v1386
      %v1388 = vpop.f32.mrb[0].mxu0
      %1389 = vmatprep.mubr.f32.mxu0 0.0
      %1390 = vmatmul.mubr.f32.gmra.mrb[0].mxu0 %v1156
      %v1391 = vpop.f32.mrb[0].mxu0
      %v1392 = vadd.f32 0.0, %v1391
      %v1393 = vpop.f32.mrb[0].mxu0
      %1394 = vmatprep.mubr.f32.mxu0 0.0
      %1395 = vmatmul.mubr.f32.gmra.mrb[0].mxu0 %v1159
      %v1396 = vpop.f32.mrb[0].mxu0
      %v1397 = vadd.f32 0.0, %v1396
      %v1398 = vpop.f32.mrb[0].mxu0
      %1399 = vmatprep.mubr.f32.mxu0 0.0
      %1400 = vmatmul.mubr.f32.gmra.mrb[0].mxu0 %v1162
      %v1401 = vpop.f32.mrb[0].mxu0
      %v1402 = vadd.f32 0.0, %v1401
      %v1403 = vpop.f32.mrb[0].mxu0
      %1404 = vmatprep.mubr.f32.mxu0 0.0
      %1405 = vmatmul.mubr.f32.gmra.mrb[0].mxu0 %v1165
      %v1406 = vpop.f32.mrb[0].mxu0
      %v1407 = vadd.f32 0.0, %v1406
      %v1408 = vpop.f32.mrb[0].mxu0
      %1409 = vmatprep.mubr.f32.mxu0 0.0
      %1410 = vmatmul.mubr.f32.gmra.mrb[0].mxu0 %v1168
      %v1411 = vpop.f32.mrb[0].mxu0
      %v1412 = vadd.f32 0.0, %v1411
      %v1413 = vpop.f32.mrb[0].mxu0
      %1414 = vdwg.mxu0
      %v1415 = vadd.f32 %v846, %v1237
      %v1416 = vadd.f32 %v851, %v1242
      %v1417 = vadd.f32 %v856, %v1247
      %v1418 = vadd.f32 %v861, %v1252
      %v1419 = vadd.f32 %v866, %v1257
      %v1420 = vadd.f32 %v871, %v1262
      %v1421 = vadd.f32 %v876, %v1267
      %v1422 = vadd.f32 %v881, %v1272
      %v1423 = vadd.f32 %v886, %v1277
      %v1424 = vadd.f32 %v891, %v1282
      %v1425 = vadd.f32 %v896, %v1287
      %v1426 = vadd.f32 %v901, %v1292
      %v1427 = vadd.f32 %v906, %v1297
      %v1428 = vadd.f32 %v911, %v1302
      %v1429 = vadd.f32 %v916, %v1307
      %v1430 = vadd.f32 %v921, %v1312
      %v1431 = vadd.f32 %v926, %v1317
      %v1432 = vadd.f32 %v931, %v1322
      %v1433 = vadd.f32 %v936, %v1327
      %v1434 = vadd.f32 %v941, %v1332
      %v1435 = vadd.f32 %v946, %v1337
      %v1436 = vadd.f32 %v951, %v1342
      %v1437 = vadd.f32 %v956, %v1347
      %v1438 = vadd.f32 %v961, %v1352
      %v1439 = vadd.f32 %v966, %v1357
      %v1440 = vadd.f32 %v971, %v1362
      %v1441 = vadd.f32 %v976, %v1367
      %v1442 = vadd.f32 %v981, %v1372
      %v1443 = vadd.f32 %v986, %v1377
      %v1444 = vadd.f32 %v991, %v1382
      %v1445 = vadd.f32 %v996, %v1387
      %v1446 = vadd.f32 %v1001, %v1392
      %v1447 = vadd.f32 %v1006, %v1397
      %v1448 = vadd.f32 %v1011, %v1402
      %v1449 = vadd.f32 %v1016, %v1407
      %v1450 = vadd.f32 %v1021, %v1412
      %v1451 = vld [vmem:[%s234 + $0x12] sm:$0xff]
      %v1452 = vld [vmem:[%s234 + $0x1a] sm:$0xff]
      %v1453 = vld [vmem:[%s234 + $0x22] sm:$0xff]
      %v1454 = vld [vmem:[%s234 + $0x2a] sm:$0xff]
      %v1455 = vld [vmem:[%s234 + $0x32] sm:$0xff]
      %v1456 = vld [vmem:[%s234 + $0x3a] sm:$0xff]
      %v1457 = vld [vmem:[%s234 + $0x42] sm:$0xff]
      %v1458 = vld [vmem:[%s234 + $0x4a] sm:$0xff]
      %v1459 = vld [vmem:[%s234 + $0x52] sm:$0xff]
      %v1460 = vld [vmem:[%s234 + $0x5a] sm:$0xff]
      %v1461 = vld [vmem:[%s234 + $0x62] sm:$0xff]
      %v1462 = vld [vmem:[%s234 + $0x6a] sm:$0xff]
      %v1463 = vld [vmem:[%s234 + $0x72] sm:$0xff]
      %v1464 = vld [vmem:[%s234 + $0x7a] sm:$0xff]
      %v1465 = vld [vmem:[%s234 + $0x82] sm:$0xff]
      %v1466 = vld [vmem:[%s234 + $0x8a] sm:$0xff]
      %v1467 = vld [vmem:[%s234 + $0x92] sm:$0xff]
      %v1468 = vld [vmem:[%s234 + $0x9a] sm:$0xff]
      %v1469 = vld [vmem:[%s234 + $0xa2] sm:$0xff]
      %v1470 = vld [vmem:[%s234 + $0xaa] sm:$0xff]
      %v1471 = vld [vmem:[%s234 + $0xb2] sm:$0xff]
      %v1472 = vld [vmem:[%s234 + $0xba] sm:$0xff]
      %v1473 = vld [vmem:[%s234 + $0xc2] sm:$0xff]
      %v1474 = vld [vmem:[%s234 + $0xca] sm:$0xff]
      %v1475 = vld [vmem:[%s234 + $0xd2] sm:$0xff]
      %v1476 = vld [vmem:[%s234 + $0xda] sm:$0xff]
      %v1477 = vld [vmem:[%s234 + $0xe2] sm:$0xff]
      %v1478 = vld [vmem:[%s234 + $0xea] sm:$0xff]
      %v1479 = vld [vmem:[%s234 + $0xf2] sm:$0xff]
      %v1480 = vld [vmem:[%s234 + $0xfa] sm:$0xff]
      %v1481 = vld [vmem:[%s234 + $0x102] sm:$0xff]
      %v1482 = vld [vmem:[%s234 + $0x10a] sm:$0xff]
      %v1483 = vld [vmem:[%s234 + $0x112] sm:$0xff]
      %v1484 = vld [vmem:[%s234 + $0x11a] sm:$0xff]
      %v1485 = vld [vmem:[%s234 + $0x122] sm:$0xff]
      %v1486 = vld [vmem:[%s234 + $0x12a] sm:$0xff]
      %s1487 = scalar_lea.vmem %s1, 24
      %v1488 = vld [vmem:[%s1487] sm:$0xff]
      %v1490 = vsel %vm317, %v1451, 0
      %v1493 = vsel %vm317, %v1452, 0
      %v1496 = vsel %vm317, %v1453, 0
      %v1499 = vsel %vm317, %v1454, 0
      %v1502 = vsel %vm317, %v1455, 0
      %v1505 = vsel %vm317, %v1456, 0
      %v1508 = vsel %vm317, %v1457, 0
      %v1511 = vsel %vm317, %v1458, 0
      %v1514 = vsel %vm317, %v1459, 0
      %v1517 = vsel %vm317, %v1460, 0
      %v1520 = vsel %vm317, %v1461, 0
      %v1523 = vsel %vm317, %v1462, 0
      %v1526 = vsel %vm317, %v1463, 0
      %v1529 = vsel %vm317, %v1464, 0
      %v1532 = vsel %vm317, %v1465, 0
      %v1535 = vsel %vm317, %v1466, 0
      %v1538 = vsel %vm317, %v1467, 0
      %v1541 = vsel %vm317, %v1468, 0
      %v1544 = vsel %vm317, %v1469, 0
      %v1547 = vsel %vm317, %v1470, 0
      %v1550 = vsel %vm317, %v1471, 0
      %v1553 = vsel %vm317, %v1472, 0
      %v1556 = vsel %vm317, %v1473, 0
      %v1559 = vsel %vm317, %v1474, 0
      %v1562 = vsel %vm317, %v1475, 0
      %v1565 = vsel %vm317, %v1476, 0
      %v1568 = vsel %vm317, %v1477, 0
      %v1571 = vsel %vm317, %v1478, 0
      %v1574 = vsel %vm317, %v1479, 0
      %v1577 = vsel %vm317, %v1480, 0
      %v1580 = vsel %vm317, %v1481, 0
      %v1583 = vsel %vm317, %v1482, 0
      %v1586 = vsel %vm317, %v1483, 0
      %v1589 = vsel %vm317, %v1484, 0
      %v1592 = vsel %vm317, %v1485, 0
      %v1595 = vsel %vm317, %v1486, 0
      %1597 = vmatprep.subr.mxu0 0.0
      %1598 = vmatpush1.msra.mxu0 %v1488
      %1599 = vmatprep.subr.mxu0 0.0
      %1600 = vmatpush1.msra.mxu0 0.0
      %1601 = vmatprep.subr.mxu0 0.0
      %1602 = vmatpush1.msra.mxu0 0.0
      %1603 = vmatprep.subr.mxu0 0.0
      %1604 = vmatpush1.msra.mxu0 0.0
      %1605 = vmatprep.subr.mxu0 0.0
      %1606 = vmatpush1.msra.mxu0 0.0
      %1607 = vmatprep.subr.mxu0 0.0
      %1608 = vmatpush1.msra.mxu0 0.0
      %1609 = vmatprep.subr.mxu0 0.0
      %1610 = vmatpush1.msra.mxu0 0.0
      %1611 = vmatprep.subr.mxu0 0.0
      %1612 = vmatpush1.msra.mxu0 0.0
      %1613 = vmatprep.subr.mxu0 0.0
      %1614 = vmatpush1.msra.mxu0 0.0
      %1615 = vmatprep.subr.mxu0 0.0
      %1616 = vmatpush1.msra.mxu0 0.0
      %1617 = vmatprep.subr.mxu0 0.0
      %1618 = vmatpush1.msra.mxu0 0.0
      %1619 = vmatprep.subr.mxu0 0.0
      %1620 = vmatpush1.msra.mxu0 0.0
      %1621 = vmatprep.subr.mxu0 0.0
      %1622 = vmatpush1.msra.mxu0 0.0
      %1623 = vmatprep.subr.mxu0 0.0
      %1624 = vmatpush1.msra.mxu0 0.0
      %1625 = vmatprep.subr.mxu0 0.0
      %1626 = vmatpush1.msra.mxu0 0.0
      %1627 = vmatprep.subr.mxu0 0.0
      %1628 = vmatpush1.msra.mxu0 0.0
      %1629 = vmatprep.subr.mxu0 0.0
      %1630 = vmatpush1.msra.mxu0 0.0
      %1631 = vmatprep.subr.mxu0 0.0
      %1632 = vmatpush1.msra.mxu0 0.0
      %1633 = vmatprep.subr.mxu0 0.0
      %1634 = vmatpush1.msra.mxu0 0.0
      %1635 = vmatprep.subr.mxu0 0.0
      %1636 = vmatpush1.msra.mxu0 0.0
      %1637 = vmatprep.subr.mxu0 0.0
      %1638 = vmatpush1.msra.mxu0 0.0
      %1639 = vmatprep.subr.mxu0 0.0
      %1640 = vmatpush1.msra.mxu0 0.0
      %1641 = vmatprep.subr.mxu0 0.0
      %1642 = vmatpush1.msra.mxu0 0.0
      %1643 = vmatprep.subr.mxu0 0.0
      %1644 = vmatpush1.msra.mxu0 0.0
      %1645 = vmatprep.subr.mxu0 0.0
      %1646 = vmatpush1.msra.mxu0 0.0
      %1647 = vmatprep.subr.mxu0 0.0
      %1648 = vmatpush1.msra.mxu0 0.0
      %1649 = vmatprep.subr.mxu0 0.0
      %1650 = vmatpush1.msra.mxu0 0.0
      %1651 = vmatprep.subr.mxu0 0.0
      %1652 = vmatpush1.msra.mxu0 0.0
      %1653 = vmatprep.subr.mxu0 0.0
      %1654 = vmatpush1.msra.mxu0 0.0
      %1655 = vmatprep.subr.mxu0 0.0
      %1656 = vmatpush1.msra.mxu0 0.0
      %1657 = vmatprep.subr.mxu0 0.0
      %1658 = vmatpush1.msra.mxu0 0.0
      %1659 = vmatprep.subr.mxu0 0.0
      %1660 = vmatpush1.msra.mxu0 0.0
      %1661 = vmatprep.mubr.f32.mxu0 0.0
      %1662 = vmatmul.mubr.f32.gmra.mrb[0].mxu0 %v1490
      %v1663 = vpop.f32.mrb[0].mxu0
      %v1664 = vadd.f32 0.0, %v1663
      %v1665 = vpop.f32.mrb[0].mxu0
      %1666 = vmatprep.mubr.f32.mxu0 0.0
      %1667 = vmatmul.mubr.f32.gmra.mrb[0].mxu0 %v1493
      %v1668 = vpop.f32.mrb[0].mxu0
      %v1669 = vadd.f32 0.0, %v1668
      %v1670 = vpop.f32.mrb[0].mxu0
      %1671 = vmatprep.mubr.f32.mxu0 0.0
      %1672 = vmatmul.mubr.f32.gmra.mrb[0].mxu0 %v1496
      %v1673 = vpop.f32.mrb[0].mxu0
      %v1674 = vadd.f32 0.0, %v1673
      %v1675 = vpop.f32.mrb[0].mxu0
      %1676 = vmatprep.mubr.f32.mxu0 0.0
      %1677 = vmatmul.mubr.f32.gmra.mrb[0].mxu0 %v1499
      %v1678 = vpop.f32.mrb[0].mxu0
      %v1679 = vadd.f32 0.0, %v1678
      %v1680 = vpop.f32.mrb[0].mxu0
      %1681 = vmatprep.mubr.f32.mxu0 0.0
      %1682 = vmatmul.mubr.f32.gmra.mrb[0].mxu0 %v1502
      %v1683 = vpop.f32.mrb[0].mxu0
      %v1684 = vadd.f32 0.0, %v1683
      %v1685 = vpop.f32.mrb[0].mxu0
      %1686 = vmatprep.mubr.f32.mxu0 0.0
      %1687 = vmatmul.mubr.f32.gmra.mrb[0].mxu0 %v1505
      %v1688 = vpop.f32.mrb[0].mxu0
      %v1689 = vadd.f32 0.0, %v1688
      %v1690 = vpop.f32.mrb[0].mxu0
      %1691 = vmatprep.mubr.f32.mxu0 0.0
      %1692 = vmatmul.mubr.f32.gmra.mrb[0].mxu0 %v1508
      %v1693 = vpop.f32.mrb[0].mxu0
      %v1694 = vadd.f32 0.0, %v1693
      %v1695 = vpop.f32.mrb[0].mxu0
      %1696 = vmatprep.mubr.f32.mxu0 0.0
      %1697 = vmatmul.mubr.f32.gmra.mrb[0].mxu0 %v1511
      %v1698 = vpop.f32.mrb[0].mxu0
      %v1699 = vadd.f32 0.0, %v1698
      %v1700 = vpop.f32.mrb[0].mxu0
      %1701 = vmatprep.mubr.f32.mxu0 0.0
      %1702 = vmatmul.mubr.f32.gmra.mrb[0].mxu0 %v1514
      %v1703 = vpop.f32.mrb[0].mxu0
      %v1704 = vadd.f32 0.0, %v1703
      %v1705 = vpop.f32.mrb[0].mxu0
      %1706 = vmatprep.mubr.f32.mxu0 0.0
      %1707 = vmatmul.mubr.f32.gmra.mrb[0].mxu0 %v1517
      %v1708 = vpop.f32.mrb[0].mxu0
      %v1709 = vadd.f32 0.0, %v1708
      %v1710 = vpop.f32.mrb[0].mxu0
      %1711 = vmatprep.mubr.f32.mxu0 0.0
      %1712 = vmatmul.mubr.f32.gmra.mrb[0].mxu0 %v1520
      %v1713 = vpop.f32.mrb[0].mxu0
      %v1714 = vadd.f32 0.0, %v1713
      %v1715 = vpop.f32.mrb[0].mxu0
      %1716 = vmatprep.mubr.f32.mxu0 0.0
      %1717 = vmatmul.mubr.f32.gmra.mrb[0].mxu0 %v1523
      %v1718 = vpop.f32.mrb[0].mxu0
      %v1719 = vadd.f32 0.0, %v1718
      %v1720 = vpop.f32.mrb[0].mxu0
      %1721 = vmatprep.mubr.f32.mxu0 0.0
      %1722 = vmatmul.mubr.f32.gmra.mrb[0].mxu0 %v1526
      %v1723 = vpop.f32.mrb[0].mxu0
      %v1724 = vadd.f32 0.0, %v1723
      %v1725 = vpop.f32.mrb[0].mxu0
      %1726 = vmatprep.mubr.f32.mxu0 0.0
      %1727 = vmatmul.mubr.f32.gmra.mrb[0].mxu0 %v1529
      %v1728 = vpop.f32.mrb[0].mxu0
      %v1729 = vadd.f32 0.0, %v1728
      %v1730 = vpop.f32.mrb[0].mxu0
      %1731 = vmatprep.mubr.f32.mxu0 0.0
      %1732 = vmatmul.mubr.f32.gmra.mrb[0].mxu0 %v1532
      %v1733 = vpop.f32.mrb[0].mxu0
      %v1734 = vadd.f32 0.0, %v1733
      %v1735 = vpop.f32.mrb[0].mxu0
      %1736 = vmatprep.mubr.f32.mxu0 0.0
      %1737 = vmatmul.mubr.f32.gmra.mrb[0].mxu0 %v1535
      %v1738 = vpop.f32.mrb[0].mxu0
      %v1739 = vadd.f32 0.0, %v1738
      %v1740 = vpop.f32.mrb[0].mxu0
      %1741 = vmatprep.mubr.f32.mxu0 0.0
      %1742 = vmatmul.mubr.f32.gmra.mrb[0].mxu0 %v1538
      %v1743 = vpop.f32.mrb[0].mxu0
      %v1744 = vadd.f32 0.0, %v1743
      %v1745 = vpop.f32.mrb[0].mxu0
      %1746 = vmatprep.mubr.f32.mxu0 0.0
      %1747 = vmatmul.mubr.f32.gmra.mrb[0].mxu0 %v1541
      %v1748 = vpop.f32.mrb[0].mxu0
      %v1749 = vadd.f32 0.0, %v1748
      %v1750 = vpop.f32.mrb[0].mxu0
      %1751 = vmatprep.mubr.f32.mxu0 0.0
      %1752 = vmatmul.mubr.f32.gmra.mrb[0].mxu0 %v1544
      %v1753 = vpop.f32.mrb[0].mxu0
      %v1754 = vadd.f32 0.0, %v1753
      %v1755 = vpop.f32.mrb[0].mxu0
      %1756 = vmatprep.mubr.f32.mxu0 0.0
      %1757 = vmatmul.mubr.f32.gmra.mrb[0].mxu0 %v1547
      %v1758 = vpop.f32.mrb[0].mxu0
      %v1759 = vadd.f32 0.0, %v1758
      %v1760 = vpop.f32.mrb[0].mxu0
      %1761 = vmatprep.mubr.f32.mxu0 0.0
      %1762 = vmatmul.mubr.f32.gmra.mrb[0].mxu0 %v1550
      %v1763 = vpop.f32.mrb[0].mxu0
      %v1764 = vadd.f32 0.0, %v1763
      %v1765 = vpop.f32.mrb[0].mxu0
      %1766 = vmatprep.mubr.f32.mxu0 0.0
      %1767 = vmatmul.mubr.f32.gmra.mrb[0].mxu0 %v1553
      %v1768 = vpop.f32.mrb[0].mxu0
      %v1769 = vadd.f32 0.0, %v1768
      %v1770 = vpop.f32.mrb[0].mxu0
      %1771 = vmatprep.mubr.f32.mxu0 0.0
      %1772 = vmatmul.mubr.f32.gmra.mrb[0].mxu0 %v1556
      %v1773 = vpop.f32.mrb[0].mxu0
      %v1774 = vadd.f32 0.0, %v1773
      %v1775 = vpop.f32.mrb[0].mxu0
      %1776 = vmatprep.mubr.f32.mxu0 0.0
      %1777 = vmatmul.mubr.f32.gmra.mrb[0].mxu0 %v1559
      %v1778 = vpop.f32.mrb[0].mxu0
      %v1779 = vadd.f32 0.0, %v1778
      %v1780 = vpop.f32.mrb[0].mxu0
      %1781 = vmatprep.mubr.f32.mxu0 0.0
      %1782 = vmatmul.mubr.f32.gmra.mrb[0].mxu0 %v1562
      %v1783 = vpop.f32.mrb[0].mxu0
      %v1784 = vadd.f32 0.0, %v1783
      %v1785 = vpop.f32.mrb[0].mxu0
      %1786 = vmatprep.mubr.f32.mxu0 0.0
      %1787 = vmatmul.mubr.f32.gmra.mrb[0].mxu0 %v1565
      %v1788 = vpop.f32.mrb[0].mxu0
      %v1789 = vadd.f32 0.0, %v1788
      %v1790 = vpop.f32.mrb[0].mxu0
      %1791 = vmatprep.mubr.f32.mxu0 0.0
      %1792 = vmatmul.mubr.f32.gmra.mrb[0].mxu0 %v1568
      %v1793 = vpop.f32.mrb[0].mxu0
      %v1794 = vadd.f32 0.0, %v1793
      %v1795 = vpop.f32.mrb[0].mxu0
      %1796 = vmatprep.mubr.f32.mxu0 0.0
      %1797 = vmatmul.mubr.f32.gmra.mrb[0].mxu0 %v1571
      %v1798 = vpop.f32.mrb[0].mxu0
      %v1799 = vadd.f32 0.0, %v1798
      %v1800 = vpop.f32.mrb[0].mxu0
      %1801 = vmatprep.mubr.f32.mxu0 0.0
      %1802 = vmatmul.mubr.f32.gmra.mrb[0].mxu0 %v1574
      %v1803 = vpop.f32.mrb[0].mxu0
      %v1804 = vadd.f32 0.0, %v1803
      %v1805 = vpop.f32.mrb[0].mxu0
      %1806 = vmatprep.mubr.f32.mxu0 0.0
      %1807 = vmatmul.mubr.f32.gmra.mrb[0].mxu0 %v1577
      %v1808 = vpop.f32.mrb[0].mxu0
      %v1809 = vadd.f32 0.0, %v1808
      %v1810 = vpop.f32.mrb[0].mxu0
      %1811 = vmatprep.mubr.f32.mxu0 0.0
      %1812 = vmatmul.mubr.f32.gmra.mrb[0].mxu0 %v1580
      %v1813 = vpop.f32.mrb[0].mxu0
      %v1814 = vadd.f32 0.0, %v1813
      %v1815 = vpop.f32.mrb[0].mxu0
      %1816 = vmatprep.mubr.f32.mxu0 0.0
      %1817 = vmatmul.mubr.f32.gmra.mrb[0].mxu0 %v1583
      %v1818 = vpop.f32.mrb[0].mxu0
      %v1819 = vadd.f32 0.0, %v1818
      %v1820 = vpop.f32.mrb[0].mxu0
      %1821 = vmatprep.mubr.f32.mxu0 0.0
      %1822 = vmatmul.mubr.f32.gmra.mrb[0].mxu0 %v1586
      %v1823 = vpop.f32.mrb[0].mxu0
      %v1824 = vadd.f32 0.0, %v1823
      %v1825 = vpop.f32.mrb[0].mxu0
      %1826 = vmatprep.mubr.f32.mxu0 0.0
      %1827 = vmatmul.mubr.f32.gmra.mrb[0].mxu0 %v1589
      %v1828 = vpop.f32.mrb[0].mxu0
      %v1829 = vadd.f32 0.0, %v1828
      %v1830 = vpop.f32.mrb[0].mxu0
      %1831 = vmatprep.mubr.f32.mxu0 0.0
      %1832 = vmatmul.mubr.f32.gmra.mrb[0].mxu0 %v1592
      %v1833 = vpop.f32.mrb[0].mxu0
      %v1834 = vadd.f32 0.0, %v1833
      %v1835 = vpop.f32.mrb[0].mxu0
      %1836 = vmatprep.mubr.f32.mxu0 0.0
      %1837 = vmatmul.mubr.f32.gmra.mrb[0].mxu0 %v1595
      %v1838 = vpop.f32.mrb[0].mxu0
      %v1839 = vadd.f32 0.0, %v1838
      %v1840 = vpop.f32.mrb[0].mxu0
      %1841 = vdwg.mxu0
      %v1842 = vadd.f32 %v1415, %v1664
      %v1843 = vadd.f32 %v1416, %v1669
      %v1844 = vadd.f32 %v1417, %v1674
      %v1845 = vadd.f32 %v1418, %v1679
      %v1846 = vadd.f32 %v1419, %v1684
      %v1847 = vadd.f32 %v1420, %v1689
      %v1848 = vadd.f32 %v1421, %v1694
      %v1849 = vadd.f32 %v1422, %v1699
      %v1850 = vadd.f32 %v1423, %v1704
      %v1851 = vadd.f32 %v1424, %v1709
      %v1852 = vadd.f32 %v1425, %v1714
      %v1853 = vadd.f32 %v1426, %v1719
      %v1854 = vadd.f32 %v1427, %v1724
      %v1855 = vadd.f32 %v1428, %v1729
      %v1856 = vadd.f32 %v1429, %v1734
      %v1857 = vadd.f32 %v1430, %v1739
      %v1858 = vadd.f32 %v1431, %v1744
      %v1859 = vadd.f32 %v1432, %v1749
      %v1860 = vadd.f32 %v1433, %v1754
      %v1861 = vadd.f32 %v1434, %v1759
      %v1862 = vadd.f32 %v1435, %v1764
      %v1863 = vadd.f32 %v1436, %v1769
      %v1864 = vadd.f32 %v1437, %v1774
      %v1865 = vadd.f32 %v1438, %v1779
      %v1866 = vadd.f32 %v1439, %v1784
      %v1867 = vadd.f32 %v1440, %v1789
      %v1868 = vadd.f32 %v1441, %v1794
      %v1869 = vadd.f32 %v1442, %v1799
      %v1870 = vadd.f32 %v1443, %v1804
      %v1871 = vadd.f32 %v1444, %v1809
      %v1872 = vadd.f32 %v1445, %v1814
      %v1873 = vadd.f32 %v1446, %v1819
      %v1874 = vadd.f32 %v1447, %v1824
      %v1875 = vadd.f32 %v1448, %v1829
      %v1876 = vadd.f32 %v1449, %v1834
      %v1877 = vadd.f32 %v1450, %v1839
      %v1878 = vld [vmem:[%s234 + $0x13] sm:$0xff]
      %v1879 = vld [vmem:[%s234 + $0x1b] sm:$0xff]
      %v1880 = vld [vmem:[%s234 + $0x23] sm:$0xff]
      %v1881 = vld [vmem:[%s234 + $0x2b] sm:$0xff]
      %v1882 = vld [vmem:[%s234 + $0x33] sm:$0xff]
      %v1883 = vld [vmem:[%s234 + $0x3b] sm:$0xff]
      %v1884 = vld [vmem:[%s234 + $0x43] sm:$0xff]
      %v1885 = vld [vmem:[%s234 + $0x4b] sm:$0xff]
      %v1886 = vld [vmem:[%s234 + $0x53] sm:$0xff]
      %v1887 = vld [vmem:[%s234 + $0x5b] sm:$0xff]
      %v1888 = vld [vmem:[%s234 + $0x63] sm:$0xff]
      %v1889 = vld [vmem:[%s234 + $0x6b] sm:$0xff]
      %v1890 = vld [vmem:[%s234 + $0x73] sm:$0xff]
      %v1891 = vld [vmem:[%s234 + $0x7b] sm:$0xff]
      %v1892 = vld [vmem:[%s234 + $0x83] sm:$0xff]
      %v1893 = vld [vmem:[%s234 + $0x8b] sm:$0xff]
      %v1894 = vld [vmem:[%s234 + $0x93] sm:$0xff]
      %v1895 = vld [vmem:[%s234 + $0x9b] sm:$0xff]
      %v1896 = vld [vmem:[%s234 + $0xa3] sm:$0xff]
      %v1897 = vld [vmem:[%s234 + $0xab] sm:$0xff]
      %v1898 = vld [vmem:[%s234 + $0xb3] sm:$0xff]
      %v1899 = vld [vmem:[%s234 + $0xbb] sm:$0xff]
      %v1900 = vld [vmem:[%s234 + $0xc3] sm:$0xff]
      %v1901 = vld [vmem:[%s234 + $0xcb] sm:$0xff]
      %v1902 = vld [vmem:[%s234 + $0xd3] sm:$0xff]
      %v1903 = vld [vmem:[%s234 + $0xdb] sm:$0xff]
      %v1904 = vld [vmem:[%s234 + $0xe3] sm:$0xff]
      %v1905 = vld [vmem:[%s234 + $0xeb] sm:$0xff]
      %v1906 = vld [vmem:[%s234 + $0xf3] sm:$0xff]
      %v1907 = vld [vmem:[%s234 + $0xfb] sm:$0xff]
      %v1908 = vld [vmem:[%s234 + $0x103] sm:$0xff]
      %v1909 = vld [vmem:[%s234 + $0x10b] sm:$0xff]
      %v1910 = vld [vmem:[%s234 + $0x113] sm:$0xff]
      %v1911 = vld [vmem:[%s234 + $0x11b] sm:$0xff]
      %v1912 = vld [vmem:[%s234 + $0x123] sm:$0xff]
      %v1913 = vld [vmem:[%s234 + $0x12b] sm:$0xff]
      %s1914 = scalar_lea.vmem %s1, 32
      %v1915 = vld [vmem:[%s1914] sm:$0xff]
      %v1917 = vsel %vm317, %v1878, 0
      %v1920 = vsel %vm317, %v1879, 0
      %v1923 = vsel %vm317, %v1880, 0
      %v1926 = vsel %vm317, %v1881, 0
      %v1929 = vsel %vm317, %v1882, 0
      %v1932 = vsel %vm317, %v1883, 0
      %v1935 = vsel %vm317, %v1884, 0
      %v1938 = vsel %vm317, %v1885, 0
      %v1941 = vsel %vm317, %v1886, 0
      %v1944 = vsel %vm317, %v1887, 0
      %v1947 = vsel %vm317, %v1888, 0
      %v1950 = vsel %vm317, %v1889, 0
      %v1953 = vsel %vm317, %v1890, 0
      %v1956 = vsel %vm317, %v1891, 0
      %v1959 = vsel %vm317, %v1892, 0
      %v1962 = vsel %vm317, %v1893, 0
      %v1965 = vsel %vm317, %v1894, 0
      %v1968 = vsel %vm317, %v1895, 0
      %v1971 = vsel %vm317, %v1896, 0
      %v1974 = vsel %vm317, %v1897, 0
      %v1977 = vsel %vm317, %v1898, 0
      %v1980 = vsel %vm317, %v1899, 0
      %v1983 = vsel %vm317, %v1900, 0
      %v1986 = vsel %vm317, %v1901, 0
      %v1989 = vsel %vm317, %v1902, 0
      %v1992 = vsel %vm317, %v1903, 0
      %v1995 = vsel %vm317, %v1904, 0
      %v1998 = vsel %vm317, %v1905, 0
      %v2001 = vsel %vm317, %v1906, 0
      %v2004 = vsel %vm317, %v1907, 0
      %v2007 = vsel %vm317, %v1908, 0
      %v2010 = vsel %vm317, %v1909, 0
      %v2013 = vsel %vm317, %v1910, 0
      %v2016 = vsel %vm317, %v1911, 0
      %v2019 = vsel %vm317, %v1912, 0
      %v2022 = vsel %vm317, %v1913, 0
      %2024 = vmatprep.subr.mxu0 0.0
      %2025 = vmatpush1.msra.mxu0 %v1915
      %2026 = vmatprep.subr.mxu0 0.0
      %2027 = vmatpush1.msra.mxu0 0.0
      %2028 = vmatprep.subr.mxu0 0.0
      %2029 = vmatpush1.msra.mxu0 0.0
      %2030 = vmatprep.subr.mxu0 0.0
      %2031 = vmatpush1.msra.mxu0 0.0
      %2032 = vmatprep.subr.mxu0 0.0
      %2033 = vmatpush1.msra.mxu0 0.0
      %2034 = vmatprep.subr.mxu0 0.0
      %2035 = vmatpush1.msra.mxu0 0.0
      %2036 = vmatprep.subr.mxu0 0.0
      %2037 = vmatpush1.msra.mxu0 0.0
      %2038 = vmatprep.subr.mxu0 0.0
      %2039 = vmatpush1.msra.mxu0 0.0
      %2040 = vmatprep.subr.mxu0 0.0
      %2041 = vmatpush1.msra.mxu0 0.0
      %2042 = vmatprep.subr.mxu0 0.0
      %2043 = vmatpush1.msra.mxu0 0.0
      %2044 = vmatprep.subr.mxu0 0.0
      %2045 = vmatpush1.msra.mxu0 0.0
      %2046 = vmatprep.subr.mxu0 0.0
      %2047 = vmatpush1.msra.mxu0 0.0
      %2048 = vmatprep.subr.mxu0 0.0
      %2049 = vmatpush1.msra.mxu0 0.0
      %2050 = vmatprep.subr.mxu0 0.0
      %2051 = vmatpush1.msra.mxu0 0.0
      %2052 = vmatprep.subr.mxu0 0.0
      %2053 = vmatpush1.msra.mxu0 0.0
      %2054 = vmatprep.subr.mxu0 0.0
      %2055 = vmatpush1.msra.mxu0 0.0
      %2056 = vmatprep.subr.mxu0 0.0
      %2057 = vmatpush1.msra.mxu0 0.0
      %2058 = vmatprep.subr.mxu0 0.0
      %2059 = vmatpush1.msra.mxu0 0.0
      %2060 = vmatprep.subr.mxu0 0.0
      %2061 = vmatpush1.msra.mxu0 0.0
      %2062 = vmatprep.subr.mxu0 0.0
      %2063 = vmatpush1.msra.mxu0 0.0
      %2064 = vmatprep.subr.mxu0 0.0
      %2065 = vmatpush1.msra.mxu0 0.0
      %2066 = vmatprep.subr.mxu0 0.0
      %2067 = vmatpush1.msra.mxu0 0.0
      %2068 = vmatprep.subr.mxu0 0.0
      %2069 = vmatpush1.msra.mxu0 0.0
      %2070 = vmatprep.subr.mxu0 0.0
      %2071 = vmatpush1.msra.mxu0 0.0
      %2072 = vmatprep.subr.mxu0 0.0
      %2073 = vmatpush1.msra.mxu0 0.0
      %2074 = vmatprep.subr.mxu0 0.0
      %2075 = vmatpush1.msra.mxu0 0.0
      %2076 = vmatprep.subr.mxu0 0.0
      %2077 = vmatpush1.msra.mxu0 0.0
      %2078 = vmatprep.subr.mxu0 0.0
      %2079 = vmatpush1.msra.mxu0 0.0
      %2080 = vmatprep.subr.mxu0 0.0
      %2081 = vmatpush1.msra.mxu0 0.0
      %2082 = vmatprep.subr.mxu0 0.0
      %2083 = vmatpush1.msra.mxu0 0.0
      %2084 = vmatprep.subr.mxu0 0.0
      %2085 = vmatpush1.msra.mxu0 0.0
      %2086 = vmatprep.subr.mxu0 0.0
      %2087 = vmatpush1.msra.mxu0 0.0
      %2088 = vmatprep.mubr.f32.mxu0 0.0
      %2089 = vmatmul.mubr.f32.gmra.mrb[0].mxu0 %v1917
      %v2090 = vpop.f32.mrb[0].mxu0
      %v2091 = vadd.f32 0.0, %v2090
      %v2092 = vpop.f32.mrb[0].mxu0
      %2093 = vmatprep.mubr.f32.mxu0 0.0
      %2094 = vmatmul.mubr.f32.gmra.mrb[0].mxu0 %v1920
      %v2095 = vpop.f32.mrb[0].mxu0
      %v2096 = vadd.f32 0.0, %v2095
      %v2097 = vpop.f32.mrb[0].mxu0
      %2098 = vmatprep.mubr.f32.mxu0 0.0
      %2099 = vmatmul.mubr.f32.gmra.mrb[0].mxu0 %v1923
      %v2100 = vpop.f32.mrb[0].mxu0
      %v2101 = vadd.f32 0.0, %v2100
      %v2102 = vpop.f32.mrb[0].mxu0
      %2103 = vmatprep.mubr.f32.mxu0 0.0
      %2104 = vmatmul.mubr.f32.gmra.mrb[0].mxu0 %v1926
      %v2105 = vpop.f32.mrb[0].mxu0
      %v2106 = vadd.f32 0.0, %v2105
      %v2107 = vpop.f32.mrb[0].mxu0
      %2108 = vmatprep.mubr.f32.mxu0 0.0
      %2109 = vmatmul.mubr.f32.gmra.mrb[0].mxu0 %v1929
      %v2110 = vpop.f32.mrb[0].mxu0
      %v2111 = vadd.f32 0.0, %v2110
      %v2112 = vpop.f32.mrb[0].mxu0
      %2113 = vmatprep.mubr.f32.mxu0 0.0
      %2114 = vmatmul.mubr.f32.gmra.mrb[0].mxu0 %v1932
      %v2115 = vpop.f32.mrb[0].mxu0
      %v2116 = vadd.f32 0.0, %v2115
      %v2117 = vpop.f32.mrb[0].mxu0
      %2118 = vmatprep.mubr.f32.mxu0 0.0
      %2119 = vmatmul.mubr.f32.gmra.mrb[0].mxu0 %v1935
      %v2120 = vpop.f32.mrb[0].mxu0
      %v2121 = vadd.f32 0.0, %v2120
      %v2122 = vpop.f32.mrb[0].mxu0
      %2123 = vmatprep.mubr.f32.mxu0 0.0
      %2124 = vmatmul.mubr.f32.gmra.mrb[0].mxu0 %v1938
      %v2125 = vpop.f32.mrb[0].mxu0
      %v2126 = vadd.f32 0.0, %v2125
      %v2127 = vpop.f32.mrb[0].mxu0
      %2128 = vmatprep.mubr.f32.mxu0 0.0
      %2129 = vmatmul.mubr.f32.gmra.mrb[0].mxu0 %v1941
      %v2130 = vpop.f32.mrb[0].mxu0
      %v2131 = vadd.f32 0.0, %v2130
      %v2132 = vpop.f32.mrb[0].mxu0
      %2133 = vmatprep.mubr.f32.mxu0 0.0
      %2134 = vmatmul.mubr.f32.gmra.mrb[0].mxu0 %v1944
      %v2135 = vpop.f32.mrb[0].mxu0
      %v2136 = vadd.f32 0.0, %v2135
      %v2137 = vpop.f32.mrb[0].mxu0
      %2138 = vmatprep.mubr.f32.mxu0 0.0
      %2139 = vmatmul.mubr.f32.gmra.mrb[0].mxu0 %v1947
      %v2140 = vpop.f32.mrb[0].mxu0
      %v2141 = vadd.f32 0.0, %v2140
      %v2142 = vpop.f32.mrb[0].mxu0
      %2143 = vmatprep.mubr.f32.mxu0 0.0
      %2144 = vmatmul.mubr.f32.gmra.mrb[0].mxu0 %v1950
      %v2145 = vpop.f32.mrb[0].mxu0
      %v2146 = vadd.f32 0.0, %v2145
      %v2147 = vpop.f32.mrb[0].mxu0
      %2148 = vmatprep.mubr.f32.mxu0 0.0
      %2149 = vmatmul.mubr.f32.gmra.mrb[0].mxu0 %v1953
      %v2150 = vpop.f32.mrb[0].mxu0
      %v2151 = vadd.f32 0.0, %v2150
      %v2152 = vpop.f32.mrb[0].mxu0
      %2153 = vmatprep.mubr.f32.mxu0 0.0
      %2154 = vmatmul.mubr.f32.gmra.mrb[0].mxu0 %v1956
      %v2155 = vpop.f32.mrb[0].mxu0
      %v2156 = vadd.f32 0.0, %v2155
      %v2157 = vpop.f32.mrb[0].mxu0
      %2158 = vmatprep.mubr.f32.mxu0 0.0
      %2159 = vmatmul.mubr.f32.gmra.mrb[0].mxu0 %v1959
      %v2160 = vpop.f32.mrb[0].mxu0
      %v2161 = vadd.f32 0.0, %v2160
      %v2162 = vpop.f32.mrb[0].mxu0
      %2163 = vmatprep.mubr.f32.mxu0 0.0
      %2164 = vmatmul.mubr.f32.gmra.mrb[0].mxu0 %v1962
      %v2165 = vpop.f32.mrb[0].mxu0
      %v2166 = vadd.f32 0.0, %v2165
      %v2167 = vpop.f32.mrb[0].mxu0
      %2168 = vmatprep.mubr.f32.mxu0 0.0
      %2169 = vmatmul.mubr.f32.gmra.mrb[0].mxu0 %v1965
      %v2170 = vpop.f32.mrb[0].mxu0
      %v2171 = vadd.f32 0.0, %v2170
      %v2172 = vpop.f32.mrb[0].mxu0
      %2173 = vmatprep.mubr.f32.mxu0 0.0
      %2174 = vmatmul.mubr.f32.gmra.mrb[0].mxu0 %v1968
      %v2175 = vpop.f32.mrb[0].mxu0
      %v2176 = vadd.f32 0.0, %v2175
      %v2177 = vpop.f32.mrb[0].mxu0
      %2178 = vmatprep.mubr.f32.mxu0 0.0
      %2179 = vmatmul.mubr.f32.gmra.mrb[0].mxu0 %v1971
      %v2180 = vpop.f32.mrb[0].mxu0
      %v2181 = vadd.f32 0.0, %v2180
      %v2182 = vpop.f32.mrb[0].mxu0
      %2183 = vmatprep.mubr.f32.mxu0 0.0
      %2184 = vmatmul.mubr.f32.gmra.mrb[0].mxu0 %v1974
      %v2185 = vpop.f32.mrb[0].mxu0
      %v2186 = vadd.f32 0.0, %v2185
      %v2187 = vpop.f32.mrb[0].mxu0
      %2188 = vmatprep.mubr.f32.mxu0 0.0
      %2189 = vmatmul.mubr.f32.gmra.mrb[0].mxu0 %v1977
      %v2190 = vpop.f32.mrb[0].mxu0
      %v2191 = vadd.f32 0.0, %v2190
      %v2192 = vpop.f32.mrb[0].mxu0
      %2193 = vmatprep.mubr.f32.mxu0 0.0
      %2194 = vmatmul.mubr.f32.gmra.mrb[0].mxu0 %v1980
      %v2195 = vpop.f32.mrb[0].mxu0
      %v2196 = vadd.f32 0.0, %v2195
      %v2197 = vpop.f32.mrb[0].mxu0
      %2198 = vmatprep.mubr.f32.mxu0 0.0
      %2199 = vmatmul.mubr.f32.gmra.mrb[0].mxu0 %v1983
      %v2200 = vpop.f32.mrb[0].mxu0
      %v2201 = vadd.f32 0.0, %v2200
      %v2202 = vpop.f32.mrb[0].mxu0
      %2203 = vmatprep.mubr.f32.mxu0 0.0
      %2204 = vmatmul.mubr.f32.gmra.mrb[0].mxu0 %v1986
      %v2205 = vpop.f32.mrb[0].mxu0
      %v2206 = vadd.f32 0.0, %v2205
      %v2207 = vpop.f32.mrb[0].mxu0
      %2208 = vmatprep.mubr.f32.mxu0 0.0
      %2209 = vmatmul.mubr.f32.gmra.mrb[0].mxu0 %v1989
      %v2210 = vpop.f32.mrb[0].mxu0
      %v2211 = vadd.f32 0.0, %v2210
      %v2212 = vpop.f32.mrb[0].mxu0
      %2213 = vmatprep.mubr.f32.mxu0 0.0
      %2214 = vmatmul.mubr.f32.gmra.mrb[0].mxu0 %v1992
      %v2215 = vpop.f32.mrb[0].mxu0
      %v2216 = vadd.f32 0.0, %v2215
      %v2217 = vpop.f32.mrb[0].mxu0
      %2218 = vmatprep.mubr.f32.mxu0 0.0
      %2219 = vmatmul.mubr.f32.gmra.mrb[0].mxu0 %v1995
      %v2220 = vpop.f32.mrb[0].mxu0
      %v2221 = vadd.f32 0.0, %v2220
      %v2222 = vpop.f32.mrb[0].mxu0
      %2223 = vmatprep.mubr.f32.mxu0 0.0
      %2224 = vmatmul.mubr.f32.gmra.mrb[0].mxu0 %v1998
      %v2225 = vpop.f32.mrb[0].mxu0
      %v2226 = vadd.f32 0.0, %v2225
      %v2227 = vpop.f32.mrb[0].mxu0
      %2228 = vmatprep.mubr.f32.mxu0 0.0
      %2229 = vmatmul.mubr.f32.gmra.mrb[0].mxu0 %v2001
      %v2230 = vpop.f32.mrb[0].mxu0
      %v2231 = vadd.f32 0.0, %v2230
      %v2232 = vpop.f32.mrb[0].mxu0
      %2233 = vmatprep.mubr.f32.mxu0 0.0
      %2234 = vmatmul.mubr.f32.gmra.mrb[0].mxu0 %v2004
      %v2235 = vpop.f32.mrb[0].mxu0
      %v2236 = vadd.f32 0.0, %v2235
      %v2237 = vpop.f32.mrb[0].mxu0
      %2238 = vmatprep.mubr.f32.mxu0 0.0
      %2239 = vmatmul.mubr.f32.gmra.mrb[0].mxu0 %v2007
      %v2240 = vpop.f32.mrb[0].mxu0
      %v2241 = vadd.f32 0.0, %v2240
      %v2242 = vpop.f32.mrb[0].mxu0
      %2243 = vmatprep.mubr.f32.mxu0 0.0
      %2244 = vmatmul.mubr.f32.gmra.mrb[0].mxu0 %v2010
      %v2245 = vpop.f32.mrb[0].mxu0
      %v2246 = vadd.f32 0.0, %v2245
      %v2247 = vpop.f32.mrb[0].mxu0
      %2248 = vmatprep.mubr.f32.mxu0 0.0
      %2249 = vmatmul.mubr.f32.gmra.mrb[0].mxu0 %v2013
      %v2250 = vpop.f32.mrb[0].mxu0
      %v2251 = vadd.f32 0.0, %v2250
      %v2252 = vpop.f32.mrb[0].mxu0
      %2253 = vmatprep.mubr.f32.mxu0 0.0
      %2254 = vmatmul.mubr.f32.gmra.mrb[0].mxu0 %v2016
      %v2255 = vpop.f32.mrb[0].mxu0
      %v2256 = vadd.f32 0.0, %v2255
      %v2257 = vpop.f32.mrb[0].mxu0
      %2258 = vmatprep.mubr.f32.mxu0 0.0
      %2259 = vmatmul.mubr.f32.gmra.mrb[0].mxu0 %v2019
      %v2260 = vpop.f32.mrb[0].mxu0
      %v2261 = vadd.f32 0.0, %v2260
      %v2262 = vpop.f32.mrb[0].mxu0
      %2263 = vmatprep.mubr.f32.mxu0 0.0
      %2264 = vmatmul.mubr.f32.gmra.mrb[0].mxu0 %v2022
      %v2265 = vpop.f32.mrb[0].mxu0
      %v2266 = vadd.f32 0.0, %v2265
      %v2267 = vpop.f32.mrb[0].mxu0
      %2268 = vdwg.mxu0
      %v2269 = vadd.f32 %v1842, %v2091
      %v2270 = vadd.f32 %v1843, %v2096
      %v2271 = vadd.f32 %v1844, %v2101
      %v2272 = vadd.f32 %v1845, %v2106
      %v2273 = vadd.f32 %v1846, %v2111
      %v2274 = vadd.f32 %v1847, %v2116
      %v2275 = vadd.f32 %v1848, %v2121
      %v2276 = vadd.f32 %v1849, %v2126
      %v2277 = vadd.f32 %v1850, %v2131
      %v2278 = vadd.f32 %v1851, %v2136
      %v2279 = vadd.f32 %v1852, %v2141
      %v2280 = vadd.f32 %v1853, %v2146
      %v2281 = vadd.f32 %v1854, %v2151
      %v2282 = vadd.f32 %v1855, %v2156
      %v2283 = vadd.f32 %v1856, %v2161
      %v2284 = vadd.f32 %v1857, %v2166
      %v2285 = vadd.f32 %v1858, %v2171
      %v2286 = vadd.f32 %v1859, %v2176
      %v2287 = vadd.f32 %v1860, %v2181
      %v2288 = vadd.f32 %v1861, %v2186
      %v2289 = vadd.f32 %v1862, %v2191
      %v2290 = vadd.f32 %v1863, %v2196
      %v2291 = vadd.f32 %v1864, %v2201
      %v2292 = vadd.f32 %v1865, %v2206
      %v2293 = vadd.f32 %v1866, %v2211
      %v2294 = vadd.f32 %v1867, %v2216
      %v2295 = vadd.f32 %v1868, %v2221
      %v2296 = vadd.f32 %v1869, %v2226
      %v2297 = vadd.f32 %v1870, %v2231
      %v2298 = vadd.f32 %v1871, %v2236
      %v2299 = vadd.f32 %v1872, %v2241
      %v2300 = vadd.f32 %v1873, %v2246
      %v2301 = vadd.f32 %v1874, %v2251
      %v2302 = vadd.f32 %v1875, %v2256
      %v2303 = vadd.f32 %v1876, %v2261
      %v2304 = vadd.f32 %v1877, %v2266
      %v2305 = vld [vmem:[%s234 + $0x14] sm:$0xff]
      %v2306 = vld [vmem:[%s234 + $0x1c] sm:$0xff]
      %v2307 = vld [vmem:[%s234 + $0x24] sm:$0xff]
      %v2308 = vld [vmem:[%s234 + $0x2c] sm:$0xff]
      %v2309 = vld [vmem:[%s234 + $0x34] sm:$0xff]
      %v2310 = vld [vmem:[%s234 + $0x3c] sm:$0xff]
      %v2311 = vld [vmem:[%s234 + $0x44] sm:$0xff]
      %v2312 = vld [vmem:[%s234 + $0x4c] sm:$0xff]
      %v2313 = vld [vmem:[%s234 + $0x54] sm:$0xff]
      %v2314 = vld [vmem:[%s234 + $0x5c] sm:$0xff]
      %v2315 = vld [vmem:[%s234 + $0x64] sm:$0xff]
      %v2316 = vld [vmem:[%s234 + $0x6c] sm:$0xff]
      %v2317 = vld [vmem:[%s234 + $0x74] sm:$0xff]
      %v2318 = vld [vmem:[%s234 + $0x7c] sm:$0xff]
      %v2319 = vld [vmem:[%s234 + $0x84] sm:$0xff]
      %v2320 = vld [vmem:[%s234 + $0x8c] sm:$0xff]
      %v2321 = vld [vmem:[%s234 + $0x94] sm:$0xff]
      %v2322 = vld [vmem:[%s234 + $0x9c] sm:$0xff]
      %v2323 = vld [vmem:[%s234 + $0xa4] sm:$0xff]
      %v2324 = vld [vmem:[%s234 + $0xac] sm:$0xff]
      %v2325 = vld [vmem:[%s234 + $0xb4] sm:$0xff]
      %v2326 = vld [vmem:[%s234 + $0xbc] sm:$0xff]
      %v2327 = vld [vmem:[%s234 + $0xc4] sm:$0xff]
      %v2328 = vld [vmem:[%s234 + $0xcc] sm:$0xff]
      %v2329 = vld [vmem:[%s234 + $0xd4] sm:$0xff]
      %v2330 = vld [vmem:[%s234 + $0xdc] sm:$0xff]
      %v2331 = vld [vmem:[%s234 + $0xe4] sm:$0xff]
      %v2332 = vld [vmem:[%s234 + $0xec] sm:$0xff]
      %v2333 = vld [vmem:[%s234 + $0xf4] sm:$0xff]
      %v2334 = vld [vmem:[%s234 + $0xfc] sm:$0xff]
      %v2335 = vld [vmem:[%s234 + $0x104] sm:$0xff]
      %v2336 = vld [vmem:[%s234 + $0x10c] sm:$0xff]
      %v2337 = vld [vmem:[%s234 + $0x114] sm:$0xff]
      %v2338 = vld [vmem:[%s234 + $0x11c] sm:$0xff]
      %v2339 = vld [vmem:[%s234 + $0x124] sm:$0xff]
      %v2340 = vld [vmem:[%s234 + $0x12c] sm:$0xff]
      %s2341 = scalar_lea.vmem %s1, 40
      %v2342 = vld [vmem:[%s2341] sm:$0xff]
      %v2344 = vsel %vm317, %v2305, 0
      %v2347 = vsel %vm317, %v2306, 0
      %v2350 = vsel %vm317, %v2307, 0
      %v2353 = vsel %vm317, %v2308, 0
      %v2356 = vsel %vm317, %v2309, 0
      %v2359 = vsel %vm317, %v2310, 0
      %v2362 = vsel %vm317, %v2311, 0
      %v2365 = vsel %vm317, %v2312, 0
      %v2368 = vsel %vm317, %v2313, 0
      %v2371 = vsel %vm317, %v2314, 0
      %v2374 = vsel %vm317, %v2315, 0
      %v2377 = vsel %vm317, %v2316, 0
      %v2380 = vsel %vm317, %v2317, 0
      %v2383 = vsel %vm317, %v2318, 0
      %v2386 = vsel %vm317, %v2319, 0
      %v2389 = vsel %vm317, %v2320, 0
      %v2392 = vsel %vm317, %v2321, 0
      %v2395 = vsel %vm317, %v2322, 0
      %v2398 = vsel %vm317, %v2323, 0
      %v2401 = vsel %vm317, %v2324, 0
      %v2404 = vsel %vm317, %v2325, 0
      %v2407 = vsel %vm317, %v2326, 0
      %v2410 = vsel %vm317, %v2327, 0
      %v2413 = vsel %vm317, %v2328, 0
      %v2416 = vsel %vm317, %v2329, 0
      %v2419 = vsel %vm317, %v2330, 0
      %v2422 = vsel %vm317, %v2331, 0
      %v2425 = vsel %vm317, %v2332, 0
      %v2428 = vsel %vm317, %v2333, 0
      %v2431 = vsel %vm317, %v2334, 0
      %v2434 = vsel %vm317, %v2335, 0
      %v2437 = vsel %vm317, %v2336, 0
      %v2440 = vsel %vm317, %v2337, 0
      %v2443 = vsel %vm317, %v2338, 0
      %v2446 = vsel %vm317, %v2339, 0
      %v2449 = vsel %vm317, %v2340, 0
      %2451 = vmatprep.subr.mxu0 0.0
      %2452 = vmatpush1.msra.mxu0 %v2342
      %2453 = vmatprep.subr.mxu0 0.0
      %2454 = vmatpush1.msra.mxu0 0.0
      %2455 = vmatprep.subr.mxu0 0.0
      %2456 = vmatpush1.msra.mxu0 0.0
      %2457 = vmatprep.subr.mxu0 0.0
      %2458 = vmatpush1.msra.mxu0 0.0
      %2459 = vmatprep.subr.mxu0 0.0
      %2460 = vmatpush1.msra.mxu0 0.0
      %2461 = vmatprep.subr.mxu0 0.0
      %2462 = vmatpush1.msra.mxu0 0.0
      %2463 = vmatprep.subr.mxu0 0.0
      %2464 = vmatpush1.msra.mxu0 0.0
      %2465 = vmatprep.subr.mxu0 0.0
      %2466 = vmatpush1.msra.mxu0 0.0
      %2467 = vmatprep.subr.mxu0 0.0
      %2468 = vmatpush1.msra.mxu0 0.0
      %2469 = vmatprep.subr.mxu0 0.0
      %2470 = vmatpush1.msra.mxu0 0.0
      %2471 = vmatprep.subr.mxu0 0.0
      %2472 = vmatpush1.msra.mxu0 0.0
      %2473 = vmatprep.subr.mxu0 0.0
      %2474 = vmatpush1.msra.mxu0 0.0
      %2475 = vmatprep.subr.mxu0 0.0
      %2476 = vmatpush1.msra.mxu0 0.0
      %2477 = vmatprep.subr.mxu0 0.0
      %2478 = vmatpush1.msra.mxu0 0.0
      %2479 = vmatprep.subr.mxu0 0.0
      %2480 = vmatpush1.msra.mxu0 0.0
      %2481 = vmatprep.subr.mxu0 0.0
      %2482 = vmatpush1.msra.mxu0 0.0
      %2483 = vmatprep.subr.mxu0 0.0
      %2484 = vmatpush1.msra.mxu0 0.0
      %2485 = vmatprep.subr.mxu0 0.0
      %2486 = vmatpush1.msra.mxu0 0.0
      %2487 = vmatprep.subr.mxu0 0.0
      %2488 = vmatpush1.msra.mxu0 0.0
      %2489 = vmatprep.subr.mxu0 0.0
      %2490 = vmatpush1.msra.mxu0 0.0
      %2491 = vmatprep.subr.mxu0 0.0
      %2492 = vmatpush1.msra.mxu0 0.0
      %2493 = vmatprep.subr.mxu0 0.0
      %2494 = vmatpush1.msra.mxu0 0.0
      %2495 = vmatprep.subr.mxu0 0.0
      %2496 = vmatpush1.msra.mxu0 0.0
      %2497 = vmatprep.subr.mxu0 0.0
      %2498 = vmatpush1.msra.mxu0 0.0
      %2499 = vmatprep.subr.mxu0 0.0
      %2500 = vmatpush1.msra.mxu0 0.0
      %2501 = vmatprep.subr.mxu0 0.0
      %2502 = vmatpush1.msra.mxu0 0.0
      %2503 = vmatprep.subr.mxu0 0.0
      %2504 = vmatpush1.msra.mxu0 0.0
      %2505 = vmatprep.subr.mxu0 0.0
      %2506 = vmatpush1.msra.mxu0 0.0
      %2507 = vmatprep.subr.mxu0 0.0
      %2508 = vmatpush1.msra.mxu0 0.0
      %2509 = vmatprep.subr.mxu0 0.0
      %2510 = vmatpush1.msra.mxu0 0.0
      %2511 = vmatprep.subr.mxu0 0.0
      %2512 = vmatpush1.msra.mxu0 0.0
      %2513 = vmatprep.subr.mxu0 0.0
      %2514 = vmatpush1.msra.mxu0 0.0
      %2515 = vmatprep.mubr.f32.mxu0 0.0
      %2516 = vmatmul.mubr.f32.gmra.mrb[0].mxu0 %v2344
      %v2517 = vpop.f32.mrb[0].mxu0
      %v2518 = vadd.f32 0.0, %v2517
      %v2519 = vpop.f32.mrb[0].mxu0
      %2520 = vmatprep.mubr.f32.mxu0 0.0
      %2521 = vmatmul.mubr.f32.gmra.mrb[0].mxu0 %v2347
      %v2522 = vpop.f32.mrb[0].mxu0
      %v2523 = vadd.f32 0.0, %v2522
      %v2524 = vpop.f32.mrb[0].mxu0
      %2525 = vmatprep.mubr.f32.mxu0 0.0
      %2526 = vmatmul.mubr.f32.gmra.mrb[0].mxu0 %v2350
      %v2527 = vpop.f32.mrb[0].mxu0
      %v2528 = vadd.f32 0.0, %v2527
      %v2529 = vpop.f32.mrb[0].mxu0
      %2530 = vmatprep.mubr.f32.mxu0 0.0
      %2531 = vmatmul.mubr.f32.gmra.mrb[0].mxu0 %v2353
      %v2532 = vpop.f32.mrb[0].mxu0
      %v2533 = vadd.f32 0.0, %v2532
      %v2534 = vpop.f32.mrb[0].mxu0
      %2535 = vmatprep.mubr.f32.mxu0 0.0
      %2536 = vmatmul.mubr.f32.gmra.mrb[0].mxu0 %v2356
      %v2537 = vpop.f32.mrb[0].mxu0
      %v2538 = vadd.f32 0.0, %v2537
      %v2539 = vpop.f32.mrb[0].mxu0
      %2540 = vmatprep.mubr.f32.mxu0 0.0
      %2541 = vmatmul.mubr.f32.gmra.mrb[0].mxu0 %v2359
      %v2542 = vpop.f32.mrb[0].mxu0
      %v2543 = vadd.f32 0.0, %v2542
      %v2544 = vpop.f32.mrb[0].mxu0
      %2545 = vmatprep.mubr.f32.mxu0 0.0
      %2546 = vmatmul.mubr.f32.gmra.mrb[0].mxu0 %v2362
      %v2547 = vpop.f32.mrb[0].mxu0
      %v2548 = vadd.f32 0.0, %v2547
      %v2549 = vpop.f32.mrb[0].mxu0
      %2550 = vmatprep.mubr.f32.mxu0 0.0
      %2551 = vmatmul.mubr.f32.gmra.mrb[0].mxu0 %v2365
      %v2552 = vpop.f32.mrb[0].mxu0
      %v2553 = vadd.f32 0.0, %v2552
      %v2554 = vpop.f32.mrb[0].mxu0
      %2555 = vmatprep.mubr.f32.mxu0 0.0
      %2556 = vmatmul.mubr.f32.gmra.mrb[0].mxu0 %v2368
      %v2557 = vpop.f32.mrb[0].mxu0
      %v2558 = vadd.f32 0.0, %v2557
      %v2559 = vpop.f32.mrb[0].mxu0
      %2560 = vmatprep.mubr.f32.mxu0 0.0
      %2561 = vmatmul.mubr.f32.gmra.mrb[0].mxu0 %v2371
      %v2562 = vpop.f32.mrb[0].mxu0
      %v2563 = vadd.f32 0.0, %v2562
      %v2564 = vpop.f32.mrb[0].mxu0
      %2565 = vmatprep.mubr.f32.mxu0 0.0
      %2566 = vmatmul.mubr.f32.gmra.mrb[0].mxu0 %v2374
      %v2567 = vpop.f32.mrb[0].mxu0
      %v2568 = vadd.f32 0.0, %v2567
      %v2569 = vpop.f32.mrb[0].mxu0
      %2570 = vmatprep.mubr.f32.mxu0 0.0
      %2571 = vmatmul.mubr.f32.gmra.mrb[0].mxu0 %v2377
      %v2572 = vpop.f32.mrb[0].mxu0
      %v2573 = vadd.f32 0.0, %v2572
      %v2574 = vpop.f32.mrb[0].mxu0
      %2575 = vmatprep.mubr.f32.mxu0 0.0
      %2576 = vmatmul.mubr.f32.gmra.mrb[0].mxu0 %v2380
      %v2577 = vpop.f32.mrb[0].mxu0
      %v2578 = vadd.f32 0.0, %v2577
      %v2579 = vpop.f32.mrb[0].mxu0
      %2580 = vmatprep.mubr.f32.mxu0 0.0
      %2581 = vmatmul.mubr.f32.gmra.mrb[0].mxu0 %v2383
      %v2582 = vpop.f32.mrb[0].mxu0
      %v2583 = vadd.f32 0.0, %v2582
      %v2584 = vpop.f32.mrb[0].mxu0
      %2585 = vmatprep.mubr.f32.mxu0 0.0
      %2586 = vmatmul.mubr.f32.gmra.mrb[0].mxu0 %v2386
      %v2587 = vpop.f32.mrb[0].mxu0
      %v2588 = vadd.f32 0.0, %v2587
      %v2589 = vpop.f32.mrb[0].mxu0
      %2590 = vmatprep.mubr.f32.mxu0 0.0
      %2591 = vmatmul.mubr.f32.gmra.mrb[0].mxu0 %v2389
      %v2592 = vpop.f32.mrb[0].mxu0
      %v2593 = vadd.f32 0.0, %v2592
      %v2594 = vpop.f32.mrb[0].mxu0
      %2595 = vmatprep.mubr.f32.mxu0 0.0
      %2596 = vmatmul.mubr.f32.gmra.mrb[0].mxu0 %v2392
      %v2597 = vpop.f32.mrb[0].mxu0
      %v2598 = vadd.f32 0.0, %v2597
      %v2599 = vpop.f32.mrb[0].mxu0
      %2600 = vmatprep.mubr.f32.mxu0 0.0
      %2601 = vmatmul.mubr.f32.gmra.mrb[0].mxu0 %v2395
      %v2602 = vpop.f32.mrb[0].mxu0
      %v2603 = vadd.f32 0.0, %v2602
      %v2604 = vpop.f32.mrb[0].mxu0
      %2605 = vmatprep.mubr.f32.mxu0 0.0
      %2606 = vmatmul.mubr.f32.gmra.mrb[0].mxu0 %v2398
      %v2607 = vpop.f32.mrb[0].mxu0
      %v2608 = vadd.f32 0.0, %v2607
      %v2609 = vpop.f32.mrb[0].mxu0
      %2610 = vmatprep.mubr.f32.mxu0 0.0
      %2611 = vmatmul.mubr.f32.gmra.mrb[0].mxu0 %v2401
      %v2612 = vpop.f32.mrb[0].mxu0
      %v2613 = vadd.f32 0.0, %v2612
      %v2614 = vpop.f32.mrb[0].mxu0
      %2615 = vmatprep.mubr.f32.mxu0 0.0
      %2616 = vmatmul.mubr.f32.gmra.mrb[0].mxu0 %v2404
      %v2617 = vpop.f32.mrb[0].mxu0
      %v2618 = vadd.f32 0.0, %v2617
      %v2619 = vpop.f32.mrb[0].mxu0
      %2620 = vmatprep.mubr.f32.mxu0 0.0
      %2621 = vmatmul.mubr.f32.gmra.mrb[0].mxu0 %v2407
      %v2622 = vpop.f32.mrb[0].mxu0
      %v2623 = vadd.f32 0.0, %v2622
      %v2624 = vpop.f32.mrb[0].mxu0
      %2625 = vmatprep.mubr.f32.mxu0 0.0
      %2626 = vmatmul.mubr.f32.gmra.mrb[0].mxu0 %v2410
      %v2627 = vpop.f32.mrb[0].mxu0
      %v2628 = vadd.f32 0.0, %v2627
      %v2629 = vpop.f32.mrb[0].mxu0
      %2630 = vmatprep.mubr.f32.mxu0 0.0
      %2631 = vmatmul.mubr.f32.gmra.mrb[0].mxu0 %v2413
      %v2632 = vpop.f32.mrb[0].mxu0
      %v2633 = vadd.f32 0.0, %v2632
      %v2634 = vpop.f32.mrb[0].mxu0
      %2635 = vmatprep.mubr.f32.mxu0 0.0
      %2636 = vmatmul.mubr.f32.gmra.mrb[0].mxu0 %v2416
      %v2637 = vpop.f32.mrb[0].mxu0
      %v2638 = vadd.f32 0.0, %v2637
      %v2639 = vpop.f32.mrb[0].mxu0
      %2640 = vmatprep.mubr.f32.mxu0 0.0
      %2641 = vmatmul.mubr.f32.gmra.mrb[0].mxu0 %v2419
      %v2642 = vpop.f32.mrb[0].mxu0
      %v2643 = vadd.f32 0.0, %v2642
      %v2644 = vpop.f32.mrb[0].mxu0
      %2645 = vmatprep.mubr.f32.mxu0 0.0
      %2646 = vmatmul.mubr.f32.gmra.mrb[0].mxu0 %v2422
      %v2647 = vpop.f32.mrb[0].mxu0
      %v2648 = vadd.f32 0.0, %v2647
      %v2649 = vpop.f32.mrb[0].mxu0
      %2650 = vmatprep.mubr.f32.mxu0 0.0
      %2651 = vmatmul.mubr.f32.gmra.mrb[0].mxu0 %v2425
      %v2652 = vpop.f32.mrb[0].mxu0
      %v2653 = vadd.f32 0.0, %v2652
      %v2654 = vpop.f32.mrb[0].mxu0
      %2655 = vmatprep.mubr.f32.mxu0 0.0
      %2656 = vmatmul.mubr.f32.gmra.mrb[0].mxu0 %v2428
      %v2657 = vpop.f32.mrb[0].mxu0
      %v2658 = vadd.f32 0.0, %v2657
      %v2659 = vpop.f32.mrb[0].mxu0
      %2660 = vmatprep.mubr.f32.mxu0 0.0
      %2661 = vmatmul.mubr.f32.gmra.mrb[0].mxu0 %v2431
      %v2662 = vpop.f32.mrb[0].mxu0
      %v2663 = vadd.f32 0.0, %v2662
      %v2664 = vpop.f32.mrb[0].mxu0
      %2665 = vmatprep.mubr.f32.mxu0 0.0
      %2666 = vmatmul.mubr.f32.gmra.mrb[0].mxu0 %v2434
      %v2667 = vpop.f32.mrb[0].mxu0
      %v2668 = vadd.f32 0.0, %v2667
      %v2669 = vpop.f32.mrb[0].mxu0
      %2670 = vmatprep.mubr.f32.mxu0 0.0
      %2671 = vmatmul.mubr.f32.gmra.mrb[0].mxu0 %v2437
      %v2672 = vpop.f32.mrb[0].mxu0
      %v2673 = vadd.f32 0.0, %v2672
      %v2674 = vpop.f32.mrb[0].mxu0
      %2675 = vmatprep.mubr.f32.mxu0 0.0
      %2676 = vmatmul.mubr.f32.gmra.mrb[0].mxu0 %v2440
      %v2677 = vpop.f32.mrb[0].mxu0
      %v2678 = vadd.f32 0.0, %v2677
      %v2679 = vpop.f32.mrb[0].mxu0
      %2680 = vmatprep.mubr.f32.mxu0 0.0
      %2681 = vmatmul.mubr.f32.gmra.mrb[0].mxu0 %v2443
      %v2682 = vpop.f32.mrb[0].mxu0
      %v2683 = vadd.f32 0.0, %v2682
      %v2684 = vpop.f32.mrb[0].mxu0
      %2685 = vmatprep.mubr.f32.mxu0 0.0
      %2686 = vmatmul.mubr.f32.gmra.mrb[0].mxu0 %v2446
      %v2687 = vpop.f32.mrb[0].mxu0
      %v2688 = vadd.f32 0.0, %v2687
      %v2689 = vpop.f32.mrb[0].mxu0
      %2690 = vmatprep.mubr.f32.mxu0 0.0
      %2691 = vmatmul.mubr.f32.gmra.mrb[0].mxu0 %v2449
      %v2692 = vpop.f32.mrb[0].mxu0
      %v2693 = vadd.f32 0.0, %v2692
      %v2694 = vpop.f32.mrb[0].mxu0
      %2695 = vdwg.mxu0
      %v2696 = vadd.f32 %v2269, %v2518
      %v2697 = vadd.f32 %v2270, %v2523
      %v2698 = vadd.f32 %v2271, %v2528
      %v2699 = vadd.f32 %v2272, %v2533
      %v2700 = vadd.f32 %v2273, %v2538
      %v2701 = vadd.f32 %v2274, %v2543
      %v2702 = vadd.f32 %v2275, %v2548
      %v2703 = vadd.f32 %v2276, %v2553
      %v2704 = vadd.f32 %v2277, %v2558
      %v2705 = vadd.f32 %v2278, %v2563
      %v2706 = vadd.f32 %v2279, %v2568
      %v2707 = vadd.f32 %v2280, %v2573
      %v2708 = vadd.f32 %v2281, %v2578
      %v2709 = vadd.f32 %v2282, %v2583
      %v2710 = vadd.f32 %v2283, %v2588
      %v2711 = vadd.f32 %v2284, %v2593
      %v2712 = vadd.f32 %v2285, %v2598
      %v2713 = vadd.f32 %v2286, %v2603
      %v2714 = vadd.f32 %v2287, %v2608
      %v2715 = vadd.f32 %v2288, %v2613
      %v2716 = vadd.f32 %v2289, %v2618
      %v2717 = vadd.f32 %v2290, %v2623
      %v2718 = vadd.f32 %v2291, %v2628
      %v2719 = vadd.f32 %v2292, %v2633
      %v2720 = vadd.f32 %v2293, %v2638
      %v2721 = vadd.f32 %v2294, %v2643
      %v2722 = vadd.f32 %v2295, %v2648
      %v2723 = vadd.f32 %v2296, %v2653
      %v2724 = vadd.f32 %v2297, %v2658
      %v2725 = vadd.f32 %v2298, %v2663
      %v2726 = vadd.f32 %v2299, %v2668
      %v2727 = vadd.f32 %v2300, %v2673
      %v2728 = vadd.f32 %v2301, %v2678
      %v2729 = vadd.f32 %v2302, %v2683
      %v2730 = vadd.f32 %v2303, %v2688
      %v2731 = vadd.f32 %v2304, %v2693
      %v2732 = vld [vmem:[%s234 + $0x24] sm:$0xff]
      %v2733 = vld [vmem:[%s234 + $0x2c] sm:$0xff]
      %v2734 = vld [vmem:[%s234 + $0x34] sm:$0xff]
      %v2735 = vld [vmem:[%s234 + $0x3c] sm:$0xff]
      %v2736 = vld [vmem:[%s234 + $0x44] sm:$0xff]
      %v2737 = vld [vmem:[%s234 + $0x4c] sm:$0xff]
      %v2738 = vld [vmem:[%s234 + $0x54] sm:$0xff]
      %v2739 = vld [vmem:[%s234 + $0x5c] sm:$0xff]
      %v2740 = vld [vmem:[%s234 + $0x64] sm:$0xff]
      %v2741 = vld [vmem:[%s234 + $0x6c] sm:$0xff]
      %v2742 = vld [vmem:[%s234 + $0x74] sm:$0xff]
      %v2743 = vld [vmem:[%s234 + $0x7c] sm:$0xff]
      %v2744 = vld [vmem:[%s234 + $0x84] sm:$0xff]
      %v2745 = vld [vmem:[%s234 + $0x8c] sm:$0xff]
      %v2746 = vld [vmem:[%s234 + $0x94] sm:$0xff]
      %v2747 = vld [vmem:[%s234 + $0x9c] sm:$0xff]
      %v2748 = vld [vmem:[%s234 + $0xa4] sm:$0xff]
      %v2749 = vld [vmem:[%s234 + $0xac] sm:$0xff]
      %v2750 = vld [vmem:[%s234 + $0xb4] sm:$0xff]
      %v2751 = vld [vmem:[%s234 + $0xbc] sm:$0xff]
      %v2752 = vld [vmem:[%s234 + $0xc4] sm:$0xff]
      %v2753 = vld [vmem:[%s234 + $0xcc] sm:$0xff]
      %v2754 = vld [vmem:[%s234 + $0xd4] sm:$0xff]
      %v2755 = vld [vmem:[%s234 + $0xdc] sm:$0xff]
      %v2756 = vld [vmem:[%s234 + $0xe4] sm:$0xff]
      %v2757 = vld [vmem:[%s234 + $0xec] sm:$0xff]
      %v2758 = vld [vmem:[%s234 + $0xf4] sm:$0xff]
      %v2759 = vld [vmem:[%s234 + $0xfc] sm:$0xff]
      %v2760 = vld [vmem:[%s234 + $0x104] sm:$0xff]
      %v2761 = vld [vmem:[%s234 + $0x10c] sm:$0xff]
      %v2762 = vld [vmem:[%s234 + $0x114] sm:$0xff]
      %v2763 = vld [vmem:[%s234 + $0x11c] sm:$0xff]
      %v2764 = vld [vmem:[%s234 + $0x124] sm:$0xff]
      %v2765 = vld [vmem:[%s234 + $0x12c] sm:$0xff]
      %v2766 = vld [vmem:[%s234 + $0x134] sm:$0xff]
      %v2767 = vld [vmem:[%s234 + $0x13c] sm:$0xff]
      %s2768 = scalar_lea.vmem %s1, 48
      %v2769 = vld [vmem:[%s2768] sm:$0xff]
      %v2771 = vsel %vm317, %v2732, 0
      %v2774 = vsel %vm317, %v2733, 0
      %v2777 = vsel %vm317, %v2734, 0
      %v2780 = vsel %vm317, %v2735, 0
      %v2783 = vsel %vm317, %v2736, 0
      %v2786 = vsel %vm317, %v2737, 0
      %v2789 = vsel %vm317, %v2738, 0
      %v2792 = vsel %vm317, %v2739, 0
      %v2795 = vsel %vm317, %v2740, 0
      %v2798 = vsel %vm317, %v2741, 0
      %v2801 = vsel %vm317, %v2742, 0
      %v2804 = vsel %vm317, %v2743, 0
      %v2807 = vsel %vm317, %v2744, 0
      %v2810 = vsel %vm317, %v2745, 0
      %v2813 = vsel %vm317, %v2746, 0
      %v2816 = vsel %vm317, %v2747, 0
      %v2819 = vsel %vm317, %v2748, 0
      %v2822 = vsel %vm317, %v2749, 0
      %v2825 = vsel %vm317, %v2750, 0
      %v2828 = vsel %vm317, %v2751, 0
      %v2831 = vsel %vm317, %v2752, 0
      %v2834 = vsel %vm317, %v2753, 0
      %v2837 = vsel %vm317, %v2754, 0
      %v2840 = vsel %vm317, %v2755, 0
      %v2843 = vsel %vm317, %v2756, 0
      %v2846 = vsel %vm317, %v2757, 0
      %v2849 = vsel %vm317, %v2758, 0
      %v2852 = vsel %vm317, %v2759, 0
      %v2855 = vsel %vm317, %v2760, 0
      %v2858 = vsel %vm317, %v2761, 0
      %v2861 = vsel %vm317, %v2762, 0
      %v2864 = vsel %vm317, %v2763, 0
      %v2867 = vsel %vm317, %v2764, 0
      %v2870 = vsel %vm317, %v2765, 0
      %v2873 = vsel %vm317, %v2766, 0
      %v2876 = vsel %vm317, %v2767, 0
      %2878 = vmatprep.subr.mxu0 0.0
      %2879 = vmatpush1.msra.mxu0 %v2769
      %2880 = vmatprep.subr.mxu0 0.0
      %2881 = vmatpush1.msra.mxu0 0.0
      %2882 = vmatprep.subr.mxu0 0.0
      %2883 = vmatpush1.msra.mxu0 0.0
      %2884 = vmatprep.subr.mxu0 0.0
      %2885 = vmatpush1.msra.mxu0 0.0
      %2886 = vmatprep.subr.mxu0 0.0
      %2887 = vmatpush1.msra.mxu0 0.0
      %2888 = vmatprep.subr.mxu0 0.0
      %2889 = vmatpush1.msra.mxu0 0.0
      %2890 = vmatprep.subr.mxu0 0.0
      %2891 = vmatpush1.msra.mxu0 0.0
      %2892 = vmatprep.subr.mxu0 0.0
      %2893 = vmatpush1.msra.mxu0 0.0
      %2894 = vmatprep.subr.mxu0 0.0
      %2895 = vmatpush1.msra.mxu0 0.0
      %2896 = vmatprep.subr.mxu0 0.0
      %2897 = vmatpush1.msra.mxu0 0.0
      %2898 = vmatprep.subr.mxu0 0.0
      %2899 = vmatpush1.msra.mxu0 0.0
      %2900 = vmatprep.subr.mxu0 0.0
      %2901 = vmatpush1.msra.mxu0 0.0
      %2902 = vmatprep.subr.mxu0 0.0
      %2903 = vmatpush1.msra.mxu0 0.0
      %2904 = vmatprep.subr.mxu0 0.0
      %2905 = vmatpush1.msra.mxu0 0.0
      %2906 = vmatprep.subr.mxu0 0.0
      %2907 = vmatpush1.msra.mxu0 0.0
      %2908 = vmatprep.subr.mxu0 0.0
      %2909 = vmatpush1.msra.mxu0 0.0
      %2910 = vmatprep.subr.mxu0 0.0
      %2911 = vmatpush1.msra.mxu0 0.0
      %2912 = vmatprep.subr.mxu0 0.0
      %2913 = vmatpush1.msra.mxu0 0.0
      %2914 = vmatprep.subr.mxu0 0.0
      %2915 = vmatpush1.msra.mxu0 0.0
      %2916 = vmatprep.subr.mxu0 0.0
      %2917 = vmatpush1.msra.mxu0 0.0
      %2918 = vmatprep.subr.mxu0 0.0
      %2919 = vmatpush1.msra.mxu0 0.0
      %2920 = vmatprep.subr.mxu0 0.0
      %2921 = vmatpush1.msra.mxu0 0.0
      %2922 = vmatprep.subr.mxu0 0.0
      %2923 = vmatpush1.msra.mxu0 0.0
      %2924 = vmatprep.subr.mxu0 0.0
      %2925 = vmatpush1.msra.mxu0 0.0
      %2926 = vmatprep.subr.mxu0 0.0
      %2927 = vmatpush1.msra.mxu0 0.0
      %2928 = vmatprep.subr.mxu0 0.0
      %2929 = vmatpush1.msra.mxu0 0.0
      %2930 = vmatprep.subr.mxu0 0.0
      %2931 = vmatpush1.msra.mxu0 0.0
      %2932 = vmatprep.subr.mxu0 0.0
      %2933 = vmatpush1.msra.mxu0 0.0
      %2934 = vmatprep.subr.mxu0 0.0
      %2935 = vmatpush1.msra.mxu0 0.0
      %2936 = vmatprep.subr.mxu0 0.0
      %2937 = vmatpush1.msra.mxu0 0.0
      %2938 = vmatprep.subr.mxu0 0.0
      %2939 = vmatpush1.msra.mxu0 0.0
      %2940 = vmatprep.subr.mxu0 0.0
      %2941 = vmatpush1.msra.mxu0 0.0
      %2942 = vmatprep.mubr.f32.mxu0 0.0
      %2943 = vmatmul.mubr.f32.gmra.mrb[0].mxu0 %v2771
      %v2944 = vpop.f32.mrb[0].mxu0
      %v2945 = vadd.f32 0.0, %v2944
      %v2946 = vpop.f32.mrb[0].mxu0
      %2947 = vmatprep.mubr.f32.mxu0 0.0
      %2948 = vmatmul.mubr.f32.gmra.mrb[0].mxu0 %v2774
      %v2949 = vpop.f32.mrb[0].mxu0
      %v2950 = vadd.f32 0.0, %v2949
      %v2951 = vpop.f32.mrb[0].mxu0
      %2952 = vmatprep.mubr.f32.mxu0 0.0
      %2953 = vmatmul.mubr.f32.gmra.mrb[0].mxu0 %v2777
      %v2954 = vpop.f32.mrb[0].mxu0
      %v2955 = vadd.f32 0.0, %v2954
      %v2956 = vpop.f32.mrb[0].mxu0
      %2957 = vmatprep.mubr.f32.mxu0 0.0
      %2958 = vmatmul.mubr.f32.gmra.mrb[0].mxu0 %v2780
      %v2959 = vpop.f32.mrb[0].mxu0
      %v2960 = vadd.f32 0.0, %v2959
      %v2961 = vpop.f32.mrb[0].mxu0
      %2962 = vmatprep.mubr.f32.mxu0 0.0
      %2963 = vmatmul.mubr.f32.gmra.mrb[0].mxu0 %v2783
      %v2964 = vpop.f32.mrb[0].mxu0
      %v2965 = vadd.f32 0.0, %v2964
      %v2966 = vpop.f32.mrb[0].mxu0
      %2967 = vmatprep.mubr.f32.mxu0 0.0
      %2968 = vmatmul.mubr.f32.gmra.mrb[0].mxu0 %v2786
      %v2969 = vpop.f32.mrb[0].mxu0
      %v2970 = vadd.f32 0.0, %v2969
      %v2971 = vpop.f32.mrb[0].mxu0
      %2972 = vmatprep.mubr.f32.mxu0 0.0
      %2973 = vmatmul.mubr.f32.gmra.mrb[0].mxu0 %v2789
      %v2974 = vpop.f32.mrb[0].mxu0
      %v2975 = vadd.f32 0.0, %v2974
      %v2976 = vpop.f32.mrb[0].mxu0
      %2977 = vmatprep.mubr.f32.mxu0 0.0
      %2978 = vmatmul.mubr.f32.gmra.mrb[0].mxu0 %v2792
      %v2979 = vpop.f32.mrb[0].mxu0
      %v2980 = vadd.f32 0.0, %v2979
      %v2981 = vpop.f32.mrb[0].mxu0
      %2982 = vmatprep.mubr.f32.mxu0 0.0
      %2983 = vmatmul.mubr.f32.gmra.mrb[0].mxu0 %v2795
      %v2984 = vpop.f32.mrb[0].mxu0
      %v2985 = vadd.f32 0.0, %v2984
      %v2986 = vpop.f32.mrb[0].mxu0
      %2987 = vmatprep.mubr.f32.mxu0 0.0
      %2988 = vmatmul.mubr.f32.gmra.mrb[0].mxu0 %v2798
      %v2989 = vpop.f32.mrb[0].mxu0
      %v2990 = vadd.f32 0.0, %v2989
      %v2991 = vpop.f32.mrb[0].mxu0
      %2992 = vmatprep.mubr.f32.mxu0 0.0
      %2993 = vmatmul.mubr.f32.gmra.mrb[0].mxu0 %v2801
      %v2994 = vpop.f32.mrb[0].mxu0
      %v2995 = vadd.f32 0.0, %v2994
      %v2996 = vpop.f32.mrb[0].mxu0
      %2997 = vmatprep.mubr.f32.mxu0 0.0
      %2998 = vmatmul.mubr.f32.gmra.mrb[0].mxu0 %v2804
      %v2999 = vpop.f32.mrb[0].mxu0
      %v3000 = vadd.f32 0.0, %v2999
      %v3001 = vpop.f32.mrb[0].mxu0
      %3002 = vmatprep.mubr.f32.mxu0 0.0
      %3003 = vmatmul.mubr.f32.gmra.mrb[0].mxu0 %v2807
      %v3004 = vpop.f32.mrb[0].mxu0
      %v3005 = vadd.f32 0.0, %v3004
      %v3006 = vpop.f32.mrb[0].mxu0
      %3007 = vmatprep.mubr.f32.mxu0 0.0
      %3008 = vmatmul.mubr.f32.gmra.mrb[0].mxu0 %v2810
      %v3009 = vpop.f32.mrb[0].mxu0
      %v3010 = vadd.f32 0.0, %v3009
      %v3011 = vpop.f32.mrb[0].mxu0
      %3012 = vmatprep.mubr.f32.mxu0 0.0
      %3013 = vmatmul.mubr.f32.gmra.mrb[0].mxu0 %v2813
      %v3014 = vpop.f32.mrb[0].mxu0
      %v3015 = vadd.f32 0.0, %v3014
      %v3016 = vpop.f32.mrb[0].mxu0
      %3017 = vmatprep.mubr.f32.mxu0 0.0
      %3018 = vmatmul.mubr.f32.gmra.mrb[0].mxu0 %v2816
      %v3019 = vpop.f32.mrb[0].mxu0
      %v3020 = vadd.f32 0.0, %v3019
      %v3021 = vpop.f32.mrb[0].mxu0
      %3022 = vmatprep.mubr.f32.mxu0 0.0
      %3023 = vmatmul.mubr.f32.gmra.mrb[0].mxu0 %v2819
      %v3024 = vpop.f32.mrb[0].mxu0
      %v3025 = vadd.f32 0.0, %v3024
      %v3026 = vpop.f32.mrb[0].mxu0
      %3027 = vmatprep.mubr.f32.mxu0 0.0
      %3028 = vmatmul.mubr.f32.gmra.mrb[0].mxu0 %v2822
      %v3029 = vpop.f32.mrb[0].mxu0
      %v3030 = vadd.f32 0.0, %v3029
      %v3031 = vpop.f32.mrb[0].mxu0
      %3032 = vmatprep.mubr.f32.mxu0 0.0
      %3033 = vmatmul.mubr.f32.gmra.mrb[0].mxu0 %v2825
      %v3034 = vpop.f32.mrb[0].mxu0
      %v3035 = vadd.f32 0.0, %v3034
      %v3036 = vpop.f32.mrb[0].mxu0
      %3037 = vmatprep.mubr.f32.mxu0 0.0
      %3038 = vmatmul.mubr.f32.gmra.mrb[0].mxu0 %v2828
      %v3039 = vpop.f32.mrb[0].mxu0
      %v3040 = vadd.f32 0.0, %v3039
      %v3041 = vpop.f32.mrb[0].mxu0
      %3042 = vmatprep.mubr.f32.mxu0 0.0
      %3043 = vmatmul.mubr.f32.gmra.mrb[0].mxu0 %v2831
      %v3044 = vpop.f32.mrb[0].mxu0
      %v3045 = vadd.f32 0.0, %v3044
      %v3046 = vpop.f32.mrb[0].mxu0
      %3047 = vmatprep.mubr.f32.mxu0 0.0
      %3048 = vmatmul.mubr.f32.gmra.mrb[0].mxu0 %v2834
      %v3049 = vpop.f32.mrb[0].mxu0
      %v3050 = vadd.f32 0.0, %v3049
      %v3051 = vpop.f32.mrb[0].mxu0
      %3052 = vmatprep.mubr.f32.mxu0 0.0
      %3053 = vmatmul.mubr.f32.gmra.mrb[0].mxu0 %v2837
      %v3054 = vpop.f32.mrb[0].mxu0
      %v3055 = vadd.f32 0.0, %v3054
      %v3056 = vpop.f32.mrb[0].mxu0
      %3057 = vmatprep.mubr.f32.mxu0 0.0
      %3058 = vmatmul.mubr.f32.gmra.mrb[0].mxu0 %v2840
      %v3059 = vpop.f32.mrb[0].mxu0
      %v3060 = vadd.f32 0.0, %v3059
      %v3061 = vpop.f32.mrb[0].mxu0
      %3062 = vmatprep.mubr.f32.mxu0 0.0
      %3063 = vmatmul.mubr.f32.gmra.mrb[0].mxu0 %v2843
      %v3064 = vpop.f32.mrb[0].mxu0
      %v3065 = vadd.f32 0.0, %v3064
      %v3066 = vpop.f32.mrb[0].mxu0
      %3067 = vmatprep.mubr.f32.mxu0 0.0
      %3068 = vmatmul.mubr.f32.gmra.mrb[0].mxu0 %v2846
      %v3069 = vpop.f32.mrb[0].mxu0
      %v3070 = vadd.f32 0.0, %v3069
      %v3071 = vpop.f32.mrb[0].mxu0
      %3072 = vmatprep.mubr.f32.mxu0 0.0
      %3073 = vmatmul.mubr.f32.gmra.mrb[0].mxu0 %v2849
      %v3074 = vpop.f32.mrb[0].mxu0
      %v3075 = vadd.f32 0.0, %v3074
      %v3076 = vpop.f32.mrb[0].mxu0
      %3077 = vmatprep.mubr.f32.mxu0 0.0
      %3078 = vmatmul.mubr.f32.gmra.mrb[0].mxu0 %v2852
      %v3079 = vpop.f32.mrb[0].mxu0
      %v3080 = vadd.f32 0.0, %v3079
      %v3081 = vpop.f32.mrb[0].mxu0
      %3082 = vmatprep.mubr.f32.mxu0 0.0
      %3083 = vmatmul.mubr.f32.gmra.mrb[0].mxu0 %v2855
      %v3084 = vpop.f32.mrb[0].mxu0
      %v3085 = vadd.f32 0.0, %v3084
      %v3086 = vpop.f32.mrb[0].mxu0
      %3087 = vmatprep.mubr.f32.mxu0 0.0
      %3088 = vmatmul.mubr.f32.gmra.mrb[0].mxu0 %v2858
      %v3089 = vpop.f32.mrb[0].mxu0
      %v3090 = vadd.f32 0.0, %v3089
      %v3091 = vpop.f32.mrb[0].mxu0
      %3092 = vmatprep.mubr.f32.mxu0 0.0
      %3093 = vmatmul.mubr.f32.gmra.mrb[0].mxu0 %v2861
      %v3094 = vpop.f32.mrb[0].mxu0
      %v3095 = vadd.f32 0.0, %v3094
      %v3096 = vpop.f32.mrb[0].mxu0
      %3097 = vmatprep.mubr.f32.mxu0 0.0
      %3098 = vmatmul.mubr.f32.gmra.mrb[0].mxu0 %v2864
      %v3099 = vpop.f32.mrb[0].mxu0
      %v3100 = vadd.f32 0.0, %v3099
      %v3101 = vpop.f32.mrb[0].mxu0
      %3102 = vmatprep.mubr.f32.mxu0 0.0
      %3103 = vmatmul.mubr.f32.gmra.mrb[0].mxu0 %v2867
      %v3104 = vpop.f32.mrb[0].mxu0
      %v3105 = vadd.f32 0.0, %v3104
      %v3106 = vpop.f32.mrb[0].mxu0
      %3107 = vmatprep.mubr.f32.mxu0 0.0
      %3108 = vmatmul.mubr.f32.gmra.mrb[0].mxu0 %v2870
      %v3109 = vpop.f32.mrb[0].mxu0
      %v3110 = vadd.f32 0.0, %v3109
      %v3111 = vpop.f32.mrb[0].mxu0
      %3112 = vmatprep.mubr.f32.mxu0 0.0
      %3113 = vmatmul.mubr.f32.gmra.mrb[0].mxu0 %v2873
      %v3114 = vpop.f32.mrb[0].mxu0
      %v3115 = vadd.f32 0.0, %v3114
      %v3116 = vpop.f32.mrb[0].mxu0
      %3117 = vmatprep.mubr.f32.mxu0 0.0
      %3118 = vmatmul.mubr.f32.gmra.mrb[0].mxu0 %v2876
      %v3119 = vpop.f32.mrb[0].mxu0
      %v3120 = vadd.f32 0.0, %v3119
      %v3121 = vpop.f32.mrb[0].mxu0
      %3122 = vdwg.mxu0
      %v3123 = vadd.f32 %v2696, %v2945
      %v3124 = vadd.f32 %v2697, %v2950
      %v3125 = vadd.f32 %v2698, %v2955
      %v3126 = vadd.f32 %v2699, %v2960
      %v3127 = vadd.f32 %v2700, %v2965
      %v3128 = vadd.f32 %v2701, %v2970
      %v3129 = vadd.f32 %v2702, %v2975
      %v3130 = vadd.f32 %v2703, %v2980
      %v3131 = vadd.f32 %v2704, %v2985
      %v3132 = vadd.f32 %v2705, %v2990
      %v3133 = vadd.f32 %v2706, %v2995
      %v3134 = vadd.f32 %v2707, %v3000
      %v3135 = vadd.f32 %v2708, %v3005
      %v3136 = vadd.f32 %v2709, %v3010
      %v3137 = vadd.f32 %v2710, %v3015
      %v3138 = vadd.f32 %v2711, %v3020
      %v3139 = vadd.f32 %v2712, %v3025
      %v3140 = vadd.f32 %v2713, %v3030
      %v3141 = vadd.f32 %v2714, %v3035
      %v3142 = vadd.f32 %v2715, %v3040
      %v3143 = vadd.f32 %v2716, %v3045
      %v3144 = vadd.f32 %v2717, %v3050
      %v3145 = vadd.f32 %v2718, %v3055
      %v3146 = vadd.f32 %v2719, %v3060
      %v3147 = vadd.f32 %v2720, %v3065
      %v3148 = vadd.f32 %v2721, %v3070
      %v3149 = vadd.f32 %v2722, %v3075
      %v3150 = vadd.f32 %v2723, %v3080
      %v3151 = vadd.f32 %v2724, %v3085
      %v3152 = vadd.f32 %v2725, %v3090
      %v3153 = vadd.f32 %v2726, %v3095
      %v3154 = vadd.f32 %v2727, %v3100
      %v3155 = vadd.f32 %v2728, %v3105
      %v3156 = vadd.f32 %v2729, %v3110
      %v3157 = vadd.f32 %v2730, %v3115
      %v3158 = vadd.f32 %v2731, %v3120
      %v3159 = vld [vmem:[%s234 + $0x25] sm:$0xff]
      %v3160 = vld [vmem:[%s234 + $0x2d] sm:$0xff]
      %v3161 = vld [vmem:[%s234 + $0x35] sm:$0xff]
      %v3162 = vld [vmem:[%s234 + $0x3d] sm:$0xff]
      %v3163 = vld [vmem:[%s234 + $0x45] sm:$0xff]
      %v3164 = vld [vmem:[%s234 + $0x4d] sm:$0xff]
      %v3165 = vld [vmem:[%s234 + $0x55] sm:$0xff]
      %v3166 = vld [vmem:[%s234 + $0x5d] sm:$0xff]
      %v3167 = vld [vmem:[%s234 + $0x65] sm:$0xff]
      %v3168 = vld [vmem:[%s234 + $0x6d] sm:$0xff]
      %v3169 = vld [vmem:[%s234 + $0x75] sm:$0xff]
      %v3170 = vld [vmem:[%s234 + $0x7d] sm:$0xff]
      %v3171 = vld [vmem:[%s234 + $0x85] sm:$0xff]
      %v3172 = vld [vmem:[%s234 + $0x8d] sm:$0xff]
      %v3173 = vld [vmem:[%s234 + $0x95] sm:$0xff]
      %v3174 = vld [vmem:[%s234 + $0x9d] sm:$0xff]
      %v3175 = vld [vmem:[%s234 + $0xa5] sm:$0xff]
      %v3176 = vld [vmem:[%s234 + $0xad] sm:$0xff]
      %v3177 = vld [vmem:[%s234 + $0xb5] sm:$0xff]
      %v3178 = vld [vmem:[%s234 + $0xbd] sm:$0xff]
      %v3179 = vld [vmem:[%s234 + $0xc5] sm:$0xff]
      %v3180 = vld [vmem:[%s234 + $0xcd] sm:$0xff]
      %v3181 = vld [vmem:[%s234 + $0xd5] sm:$0xff]
      %v3182 = vld [vmem:[%s234 + $0xdd] sm:$0xff]
      %v3183 = vld [vmem:[%s234 + $0xe5] sm:$0xff]
      %v3184 = vld [vmem:[%s234 + $0xed] sm:$0xff]
      %v3185 = vld [vmem:[%s234 + $0xf5] sm:$0xff]
      %v3186 = vld [vmem:[%s234 + $0xfd] sm:$0xff]
      %v3187 = vld [vmem:[%s234 + $0x105] sm:$0xff]
      %v3188 = vld [vmem:[%s234 + $0x10d] sm:$0xff]
      %v3189 = vld [vmem:[%s234 + $0x115] sm:$0xff]
      %v3190 = vld [vmem:[%s234 + $0x11d] sm:$0xff]
      %v3191 = vld [vmem:[%s234 + $0x125] sm:$0xff]
      %v3192 = vld [vmem:[%s234 + $0x12d] sm:$0xff]
      %v3193 = vld [vmem:[%s234 + $0x135] sm:$0xff]
      %v3194 = vld [vmem:[%s234 + $0x13d] sm:$0xff]
      %s3195 = scalar_lea.vmem %s1, 56
      %v3196 = vld [vmem:[%s3195] sm:$0xff]
      %v3198 = vsel %vm317, %v3159, 0
      %v3201 = vsel %vm317, %v3160, 0
      %v3204 = vsel %vm317, %v3161, 0
      %v3207 = vsel %vm317, %v3162, 0
      %v3210 = vsel %vm317, %v3163, 0
      %v3213 = vsel %vm317, %v3164, 0
      %v3216 = vsel %vm317, %v3165, 0
      %v3219 = vsel %vm317, %v3166, 0
      %v3222 = vsel %vm317, %v3167, 0
      %v3225 = vsel %vm317, %v3168, 0
      %v3228 = vsel %vm317, %v3169, 0
      %v3231 = vsel %vm317, %v3170, 0
      %v3234 = vsel %vm317, %v3171, 0
      %v3237 = vsel %vm317, %v3172, 0
      %v3240 = vsel %vm317, %v3173, 0
      %v3243 = vsel %vm317, %v3174, 0
      %v3246 = vsel %vm317, %v3175, 0
      %v3249 = vsel %vm317, %v3176, 0
      %v3252 = vsel %vm317, %v3177, 0
      %v3255 = vsel %vm317, %v3178, 0
      %v3258 = vsel %vm317, %v3179, 0
      %v3261 = vsel %vm317, %v3180, 0
      %v3264 = vsel %vm317, %v3181, 0
      %v3267 = vsel %vm317, %v3182, 0
      %v3270 = vsel %vm317, %v3183, 0
      %v3273 = vsel %vm317, %v3184, 0
      %v3276 = vsel %vm317, %v3185, 0
      %v3279 = vsel %vm317, %v3186, 0
      %v3282 = vsel %vm317, %v3187, 0
      %v3285 = vsel %vm317, %v3188, 0
      %v3288 = vsel %vm317, %v3189, 0
      %v3291 = vsel %vm317, %v3190, 0
      %v3294 = vsel %vm317, %v3191, 0
      %v3297 = vsel %vm317, %v3192, 0
      %v3300 = vsel %vm317, %v3193, 0
      %v3303 = vsel %vm317, %v3194, 0
      %3305 = vmatprep.subr.mxu0 0.0
      %3306 = vmatpush1.msra.mxu0 %v3196
      %3307 = vmatprep.subr.mxu0 0.0
      %3308 = vmatpush1.msra.mxu0 0.0
      %3309 = vmatprep.subr.mxu0 0.0
      %3310 = vmatpush1.msra.mxu0 0.0
      %3311 = vmatprep.subr.mxu0 0.0
      %3312 = vmatpush1.msra.mxu0 0.0
      %3313 = vmatprep.subr.mxu0 0.0
      %3314 = vmatpush1.msra.mxu0 0.0
      %3315 = vmatprep.subr.mxu0 0.0
      %3316 = vmatpush1.msra.mxu0 0.0
      %3317 = vmatprep.subr.mxu0 0.0
      %3318 = vmatpush1.msra.mxu0 0.0
      %3319 = vmatprep.subr.mxu0 0.0
      %3320 = vmatpush1.msra.mxu0 0.0
      %3321 = vmatprep.subr.mxu0 0.0
      %3322 = vmatpush1.msra.mxu0 0.0
      %3323 = vmatprep.subr.mxu0 0.0
      %3324 = vmatpush1.msra.mxu0 0.0
      %3325 = vmatprep.subr.mxu0 0.0
      %3326 = vmatpush1.msra.mxu0 0.0
      %3327 = vmatprep.subr.mxu0 0.0
      %3328 = vmatpush1.msra.mxu0 0.0
      %3329 = vmatprep.subr.mxu0 0.0
      %3330 = vmatpush1.msra.mxu0 0.0
      %3331 = vmatprep.subr.mxu0 0.0
      %3332 = vmatpush1.msra.mxu0 0.0
      %3333 = vmatprep.subr.mxu0 0.0
      %3334 = vmatpush1.msra.mxu0 0.0
      %3335 = vmatprep.subr.mxu0 0.0
      %3336 = vmatpush1.msra.mxu0 0.0
      %3337 = vmatprep.subr.mxu0 0.0
      %3338 = vmatpush1.msra.mxu0 0.0
      %3339 = vmatprep.subr.mxu0 0.0
      %3340 = vmatpush1.msra.mxu0 0.0
      %3341 = vmatprep.subr.mxu0 0.0
      %3342 = vmatpush1.msra.mxu0 0.0
      %3343 = vmatprep.subr.mxu0 0.0
      %3344 = vmatpush1.msra.mxu0 0.0
      %3345 = vmatprep.subr.mxu0 0.0
      %3346 = vmatpush1.msra.mxu0 0.0
      %3347 = vmatprep.subr.mxu0 0.0
      %3348 = vmatpush1.msra.mxu0 0.0
      %3349 = vmatprep.subr.mxu0 0.0
      %3350 = vmatpush1.msra.mxu0 0.0
      %3351 = vmatprep.subr.mxu0 0.0
      %3352 = vmatpush1.msra.mxu0 0.0
      %3353 = vmatprep.subr.mxu0 0.0
      %3354 = vmatpush1.msra.mxu0 0.0
      %3355 = vmatprep.subr.mxu0 0.0
      %3356 = vmatpush1.msra.mxu0 0.0
      %3357 = vmatprep.subr.mxu0 0.0
      %3358 = vmatpush1.msra.mxu0 0.0
      %3359 = vmatprep.subr.mxu0 0.0
      %3360 = vmatpush1.msra.mxu0 0.0
      %3361 = vmatprep.subr.mxu0 0.0
      %3362 = vmatpush1.msra.mxu0 0.0
      %3363 = vmatprep.subr.mxu0 0.0
      %3364 = vmatpush1.msra.mxu0 0.0
      %3365 = vmatprep.subr.mxu0 0.0
      %3366 = vmatpush1.msra.mxu0 0.0
      %3367 = vmatprep.subr.mxu0 0.0
      %3368 = vmatpush1.msra.mxu0 0.0
      %3369 = vmatprep.mubr.f32.mxu0 0.0
      %3370 = vmatmul.mubr.f32.gmra.mrb[0].mxu0 %v3198
      %v3371 = vpop.f32.mrb[0].mxu0
      %v3372 = vadd.f32 0.0, %v3371
      %v3373 = vpop.f32.mrb[0].mxu0
      %3374 = vmatprep.mubr.f32.mxu0 0.0
      %3375 = vmatmul.mubr.f32.gmra.mrb[0].mxu0 %v3201
      %v3376 = vpop.f32.mrb[0].mxu0
      %v3377 = vadd.f32 0.0, %v3376
      %v3378 = vpop.f32.mrb[0].mxu0
      %3379 = vmatprep.mubr.f32.mxu0 0.0
      %3380 = vmatmul.mubr.f32.gmra.mrb[0].mxu0 %v3204
      %v3381 = vpop.f32.mrb[0].mxu0
      %v3382 = vadd.f32 0.0, %v3381
      %v3383 = vpop.f32.mrb[0].mxu0
      %3384 = vmatprep.mubr.f32.mxu0 0.0
      %3385 = vmatmul.mubr.f32.gmra.mrb[0].mxu0 %v3207
      %v3386 = vpop.f32.mrb[0].mxu0
      %v3387 = vadd.f32 0.0, %v3386
      %v3388 = vpop.f32.mrb[0].mxu0
      %3389 = vmatprep.mubr.f32.mxu0 0.0
      %3390 = vmatmul.mubr.f32.gmra.mrb[0].mxu0 %v3210
      %v3391 = vpop.f32.mrb[0].mxu0
      %v3392 = vadd.f32 0.0, %v3391
      %v3393 = vpop.f32.mrb[0].mxu0
      %3394 = vmatprep.mubr.f32.mxu0 0.0
      %3395 = vmatmul.mubr.f32.gmra.mrb[0].mxu0 %v3213
      %v3396 = vpop.f32.mrb[0].mxu0
      %v3397 = vadd.f32 0.0, %v3396
      %v3398 = vpop.f32.mrb[0].mxu0
      %3399 = vmatprep.mubr.f32.mxu0 0.0
      %3400 = vmatmul.mubr.f32.gmra.mrb[0].mxu0 %v3216
      %v3401 = vpop.f32.mrb[0].mxu0
      %v3402 = vadd.f32 0.0, %v3401
      %v3403 = vpop.f32.mrb[0].mxu0
      %3404 = vmatprep.mubr.f32.mxu0 0.0
      %3405 = vmatmul.mubr.f32.gmra.mrb[0].mxu0 %v3219
      %v3406 = vpop.f32.mrb[0].mxu0
      %v3407 = vadd.f32 0.0, %v3406
      %v3408 = vpop.f32.mrb[0].mxu0
      %3409 = vmatprep.mubr.f32.mxu0 0.0
      %3410 = vmatmul.mubr.f32.gmra.mrb[0].mxu0 %v3222
      %v3411 = vpop.f32.mrb[0].mxu0
      %v3412 = vadd.f32 0.0, %v3411
      %v3413 = vpop.f32.mrb[0].mxu0
      %3414 = vmatprep.mubr.f32.mxu0 0.0
      %3415 = vmatmul.mubr.f32.gmra.mrb[0].mxu0 %v3225
      %v3416 = vpop.f32.mrb[0].mxu0
      %v3417 = vadd.f32 0.0, %v3416
      %v3418 = vpop.f32.mrb[0].mxu0
      %3419 = vmatprep.mubr.f32.mxu0 0.0
      %3420 = vmatmul.mubr.f32.gmra.mrb[0].mxu0 %v3228
      %v3421 = vpop.f32.mrb[0].mxu0
      %v3422 = vadd.f32 0.0, %v3421
      %v3423 = vpop.f32.mrb[0].mxu0
      %3424 = vmatprep.mubr.f32.mxu0 0.0
      %3425 = vmatmul.mubr.f32.gmra.mrb[0].mxu0 %v3231
      %v3426 = vpop.f32.mrb[0].mxu0
      %v3427 = vadd.f32 0.0, %v3426
      %v3428 = vpop.f32.mrb[0].mxu0
      %3429 = vmatprep.mubr.f32.mxu0 0.0
      %3430 = vmatmul.mubr.f32.gmra.mrb[0].mxu0 %v3234
      %v3431 = vpop.f32.mrb[0].mxu0
      %v3432 = vadd.f32 0.0, %v3431
      %v3433 = vpop.f32.mrb[0].mxu0
      %3434 = vmatprep.mubr.f32.mxu0 0.0
      %3435 = vmatmul.mubr.f32.gmra.mrb[0].mxu0 %v3237
      %v3436 = vpop.f32.mrb[0].mxu0
      %v3437 = vadd.f32 0.0, %v3436
      %v3438 = vpop.f32.mrb[0].mxu0
      %3439 = vmatprep.mubr.f32.mxu0 0.0
      %3440 = vmatmul.mubr.f32.gmra.mrb[0].mxu0 %v3240
      %v3441 = vpop.f32.mrb[0].mxu0
      %v3442 = vadd.f32 0.0, %v3441
      %v3443 = vpop.f32.mrb[0].mxu0
      %3444 = vmatprep.mubr.f32.mxu0 0.0
      %3445 = vmatmul.mubr.f32.gmra.mrb[0].mxu0 %v3243
      %v3446 = vpop.f32.mrb[0].mxu0
      %v3447 = vadd.f32 0.0, %v3446
      %v3448 = vpop.f32.mrb[0].mxu0
      %3449 = vmatprep.mubr.f32.mxu0 0.0
      %3450 = vmatmul.mubr.f32.gmra.mrb[0].mxu0 %v3246
      %v3451 = vpop.f32.mrb[0].mxu0
      %v3452 = vadd.f32 0.0, %v3451
      %v3453 = vpop.f32.mrb[0].mxu0
      %3454 = vmatprep.mubr.f32.mxu0 0.0
      %3455 = vmatmul.mubr.f32.gmra.mrb[0].mxu0 %v3249
      %v3456 = vpop.f32.mrb[0].mxu0
      %v3457 = vadd.f32 0.0, %v3456
      %v3458 = vpop.f32.mrb[0].mxu0
      %3459 = vmatprep.mubr.f32.mxu0 0.0
      %3460 = vmatmul.mubr.f32.gmra.mrb[0].mxu0 %v3252
      %v3461 = vpop.f32.mrb[0].mxu0
      %v3462 = vadd.f32 0.0, %v3461
      %v3463 = vpop.f32.mrb[0].mxu0
      %3464 = vmatprep.mubr.f32.mxu0 0.0
      %3465 = vmatmul.mubr.f32.gmra.mrb[0].mxu0 %v3255
      %v3466 = vpop.f32.mrb[0].mxu0
      %v3467 = vadd.f32 0.0, %v3466
      %v3468 = vpop.f32.mrb[0].mxu0
      %3469 = vmatprep.mubr.f32.mxu0 0.0
      %3470 = vmatmul.mubr.f32.gmra.mrb[0].mxu0 %v3258
      %v3471 = vpop.f32.mrb[0].mxu0
      %v3472 = vadd.f32 0.0, %v3471
      %v3473 = vpop.f32.mrb[0].mxu0
      %3474 = vmatprep.mubr.f32.mxu0 0.0
      %3475 = vmatmul.mubr.f32.gmra.mrb[0].mxu0 %v3261
      %v3476 = vpop.f32.mrb[0].mxu0
      %v3477 = vadd.f32 0.0, %v3476
      %v3478 = vpop.f32.mrb[0].mxu0
      %3479 = vmatprep.mubr.f32.mxu0 0.0
      %3480 = vmatmul.mubr.f32.gmra.mrb[0].mxu0 %v3264
      %v3481 = vpop.f32.mrb[0].mxu0
      %v3482 = vadd.f32 0.0, %v3481
      %v3483 = vpop.f32.mrb[0].mxu0
      %3484 = vmatprep.mubr.f32.mxu0 0.0
      %3485 = vmatmul.mubr.f32.gmra.mrb[0].mxu0 %v3267
      %v3486 = vpop.f32.mrb[0].mxu0
      %v3487 = vadd.f32 0.0, %v3486
      %v3488 = vpop.f32.mrb[0].mxu0
      %3489 = vmatprep.mubr.f32.mxu0 0.0
      %3490 = vmatmul.mubr.f32.gmra.mrb[0].mxu0 %v3270
      %v3491 = vpop.f32.mrb[0].mxu0
      %v3492 = vadd.f32 0.0, %v3491
      %v3493 = vpop.f32.mrb[0].mxu0
      %3494 = vmatprep.mubr.f32.mxu0 0.0
      %3495 = vmatmul.mubr.f32.gmra.mrb[0].mxu0 %v3273
      %v3496 = vpop.f32.mrb[0].mxu0
      %v3497 = vadd.f32 0.0, %v3496
      %v3498 = vpop.f32.mrb[0].mxu0
      %3499 = vmatprep.mubr.f32.mxu0 0.0
      %3500 = vmatmul.mubr.f32.gmra.mrb[0].mxu0 %v3276
      %v3501 = vpop.f32.mrb[0].mxu0
      %v3502 = vadd.f32 0.0, %v3501
      %v3503 = vpop.f32.mrb[0].mxu0
      %3504 = vmatprep.mubr.f32.mxu0 0.0
      %3505 = vmatmul.mubr.f32.gmra.mrb[0].mxu0 %v3279
      %v3506 = vpop.f32.mrb[0].mxu0
      %v3507 = vadd.f32 0.0, %v3506
      %v3508 = vpop.f32.mrb[0].mxu0
      %3509 = vmatprep.mubr.f32.mxu0 0.0
      %3510 = vmatmul.mubr.f32.gmra.mrb[0].mxu0 %v3282
      %v3511 = vpop.f32.mrb[0].mxu0
      %v3512 = vadd.f32 0.0, %v3511
      %v3513 = vpop.f32.mrb[0].mxu0
      %3514 = vmatprep.mubr.f32.mxu0 0.0
      %3515 = vmatmul.mubr.f32.gmra.mrb[0].mxu0 %v3285
      %v3516 = vpop.f32.mrb[0].mxu0
      %v3517 = vadd.f32 0.0, %v3516
      %v3518 = vpop.f32.mrb[0].mxu0
      %3519 = vmatprep.mubr.f32.mxu0 0.0
      %3520 = vmatmul.mubr.f32.gmra.mrb[0].mxu0 %v3288
      %v3521 = vpop.f32.mrb[0].mxu0
      %v3522 = vadd.f32 0.0, %v3521
      %v3523 = vpop.f32.mrb[0].mxu0
      %3524 = vmatprep.mubr.f32.mxu0 0.0
      %3525 = vmatmul.mubr.f32.gmra.mrb[0].mxu0 %v3291
      %v3526 = vpop.f32.mrb[0].mxu0
      %v3527 = vadd.f32 0.0, %v3526
      %v3528 = vpop.f32.mrb[0].mxu0
      %3529 = vmatprep.mubr.f32.mxu0 0.0
      %3530 = vmatmul.mubr.f32.gmra.mrb[0].mxu0 %v3294
      %v3531 = vpop.f32.mrb[0].mxu0
      %v3532 = vadd.f32 0.0, %v3531
      %v3533 = vpop.f32.mrb[0].mxu0
      %3534 = vmatprep.mubr.f32.mxu0 0.0
      %3535 = vmatmul.mubr.f32.gmra.mrb[0].mxu0 %v3297
      %v3536 = vpop.f32.mrb[0].mxu0
      %v3537 = vadd.f32 0.0, %v3536
      %v3538 = vpop.f32.mrb[0].mxu0
      %3539 = vmatprep.mubr.f32.mxu0 0.0
      %3540 = vmatmul.mubr.f32.gmra.mrb[0].mxu0 %v3300
      %v3541 = vpop.f32.mrb[0].mxu0
      %v3542 = vadd.f32 0.0, %v3541
      %v3543 = vpop.f32.mrb[0].mxu0
      %3544 = vmatprep.mubr.f32.mxu0 0.0
      %3545 = vmatmul.mubr.f32.gmra.mrb[0].mxu0 %v3303
      %v3546 = vpop.f32.mrb[0].mxu0
      %v3547 = vadd.f32 0.0, %v3546
      %v3548 = vpop.f32.mrb[0].mxu0
      %3549 = vdwg.mxu0
      %v3550 = vadd.f32 %v3123, %v3372
      %v3551 = vadd.f32 %v3124, %v3377
      %v3552 = vadd.f32 %v3125, %v3382
      %v3553 = vadd.f32 %v3126, %v3387
      %v3554 = vadd.f32 %v3127, %v3392
      %v3555 = vadd.f32 %v3128, %v3397
      %v3556 = vadd.f32 %v3129, %v3402
      %v3557 = vadd.f32 %v3130, %v3407
      %v3558 = vadd.f32 %v3131, %v3412
      %v3559 = vadd.f32 %v3132, %v3417
      %v3560 = vadd.f32 %v3133, %v3422
      %v3561 = vadd.f32 %v3134, %v3427
      %v3562 = vadd.f32 %v3135, %v3432
      %v3563 = vadd.f32 %v3136, %v3437
      %v3564 = vadd.f32 %v3137, %v3442
      %v3565 = vadd.f32 %v3138, %v3447
      %v3566 = vadd.f32 %v3139, %v3452
      %v3567 = vadd.f32 %v3140, %v3457
      %v3568 = vadd.f32 %v3141, %v3462
      %v3569 = vadd.f32 %v3142, %v3467
      %v3570 = vadd.f32 %v3143, %v3472
      %v3571 = vadd.f32 %v3144, %v3477
      %v3572 = vadd.f32 %v3145, %v3482
      %v3573 = vadd.f32 %v3146, %v3487
      %v3574 = vadd.f32 %v3147, %v3492
      %v3575 = vadd.f32 %v3148, %v3497
      %v3576 = vadd.f32 %v3149, %v3502
      %v3577 = vadd.f32 %v3150, %v3507
      %v3578 = vadd.f32 %v3151, %v3512
      %v3579 = vadd.f32 %v3152, %v3517
      %v3580 = vadd.f32 %v3153, %v3522
      %v3581 = vadd.f32 %v3154, %v3527
      %v3582 = vadd.f32 %v3155, %v3532
      %v3583 = vadd.f32 %v3156, %v3537
      %v3584 = vadd.f32 %v3157, %v3542
      %v3585 = vadd.f32 %v3158, %v3547
      %v3586 = vld [vmem:[%s234 + $0x26] sm:$0xff]
      %v3587 = vld [vmem:[%s234 + $0x2e] sm:$0xff]
      %v3588 = vld [vmem:[%s234 + $0x36] sm:$0xff]
      %v3589 = vld [vmem:[%s234 + $0x3e] sm:$0xff]
      %v3590 = vld [vmem:[%s234 + $0x46] sm:$0xff]
      %v3591 = vld [vmem:[%s234 + $0x4e] sm:$0xff]
      %v3592 = vld [vmem:[%s234 + $0x56] sm:$0xff]
      %v3593 = vld [vmem:[%s234 + $0x5e] sm:$0xff]
      %v3594 = vld [vmem:[%s234 + $0x66] sm:$0xff]
      %v3595 = vld [vmem:[%s234 + $0x6e] sm:$0xff]
      %v3596 = vld [vmem:[%s234 + $0x76] sm:$0xff]
      %v3597 = vld [vmem:[%s234 + $0x7e] sm:$0xff]
      %v3598 = vld [vmem:[%s234 + $0x86] sm:$0xff]
      %v3599 = vld [vmem:[%s234 + $0x8e] sm:$0xff]
      %v3600 = vld [vmem:[%s234 + $0x96] sm:$0xff]
      %v3601 = vld [vmem:[%s234 + $0x9e] sm:$0xff]
      %v3602 = vld [vmem:[%s234 + $0xa6] sm:$0xff]
      %v3603 = vld [vmem:[%s234 + $0xae] sm:$0xff]
      %v3604 = vld [vmem:[%s234 + $0xb6] sm:$0xff]
      %v3605 = vld [vmem:[%s234 + $0xbe] sm:$0xff]
      %v3606 = vld [vmem:[%s234 + $0xc6] sm:$0xff]
      %v3607 = vld [vmem:[%s234 + $0xce] sm:$0xff]
      %v3608 = vld [vmem:[%s234 + $0xd6] sm:$0xff]
      %v3609 = vld [vmem:[%s234 + $0xde] sm:$0xff]
      %v3610 = vld [vmem:[%s234 + $0xe6] sm:$0xff]
      %v3611 = vld [vmem:[%s234 + $0xee] sm:$0xff]
      %v3612 = vld [vmem:[%s234 + $0xf6] sm:$0xff]
      %v3613 = vld [vmem:[%s234 + $0xfe] sm:$0xff]
      %v3614 = vld [vmem:[%s234 + $0x106] sm:$0xff]
      %v3615 = vld [vmem:[%s234 + $0x10e] sm:$0xff]
      %v3616 = vld [vmem:[%s234 + $0x116] sm:$0xff]
      %v3617 = vld [vmem:[%s234 + $0x11e] sm:$0xff]
      %v3618 = vld [vmem:[%s234 + $0x126] sm:$0xff]
      %v3619 = vld [vmem:[%s234 + $0x12e] sm:$0xff]
      %v3620 = vld [vmem:[%s234 + $0x136] sm:$0xff]
      %v3621 = vld [vmem:[%s234 + $0x13e] sm:$0xff]
      %s3622 = scalar_lea.vmem %s1, 64
      %v3623 = vld [vmem:[%s3622] sm:$0xff]
      %v3625 = vsel %vm317, %v3586, 0
      %v3628 = vsel %vm317, %v3587, 0
      %v3631 = vsel %vm317, %v3588, 0
      %v3634 = vsel %vm317, %v3589, 0
      %v3637 = vsel %vm317, %v3590, 0
      %v3640 = vsel %vm317, %v3591, 0
      %v3643 = vsel %vm317, %v3592, 0
      %v3646 = vsel %vm317, %v3593, 0
      %v3649 = vsel %vm317, %v3594, 0
      %v3652 = vsel %vm317, %v3595, 0
      %v3655 = vsel %vm317, %v3596, 0
      %v3658 = vsel %vm317, %v3597, 0
      %v3661 = vsel %vm317, %v3598, 0
      %v3664 = vsel %vm317, %v3599, 0
      %v3667 = vsel %vm317, %v3600, 0
      %v3670 = vsel %vm317, %v3601, 0
      %v3673 = vsel %vm317, %v3602, 0
      %v3676 = vsel %vm317, %v3603, 0
      %v3679 = vsel %vm317, %v3604, 0
      %v3682 = vsel %vm317, %v3605, 0
      %v3685 = vsel %vm317, %v3606, 0
      %v3688 = vsel %vm317, %v3607, 0
      %v3691 = vsel %vm317, %v3608, 0
      %v3694 = vsel %vm317, %v3609, 0
      %v3697 = vsel %vm317, %v3610, 0
      %v3700 = vsel %vm317, %v3611, 0
      %v3703 = vsel %vm317, %v3612, 0
      %v3706 = vsel %vm317, %v3613, 0
      %v3709 = vsel %vm317, %v3614, 0
      %v3712 = vsel %vm317, %v3615, 0
      %v3715 = vsel %vm317, %v3616, 0
      %v3718 = vsel %vm317, %v3617, 0
      %v3721 = vsel %vm317, %v3618, 0
      %v3724 = vsel %vm317, %v3619, 0
      %v3727 = vsel %vm317, %v3620, 0
      %v3730 = vsel %vm317, %v3621, 0
      %3732 = vmatprep.subr.mxu0 0.0
      %3733 = vmatpush1.msra.mxu0 %v3623
      %3734 = vmatprep.subr.mxu0 0.0
      %3735 = vmatpush1.msra.mxu0 0.0
      %3736 = vmatprep.subr.mxu0 0.0
      %3737 = vmatpush1.msra.mxu0 0.0
      %3738 = vmatprep.subr.mxu0 0.0
      %3739 = vmatpush1.msra.mxu0 0.0
      %3740 = vmatprep.subr.mxu0 0.0
      %3741 = vmatpush1.msra.mxu0 0.0
      %3742 = vmatprep.subr.mxu0 0.0
      %3743 = vmatpush1.msra.mxu0 0.0
      %3744 = vmatprep.subr.mxu0 0.0
      %3745 = vmatpush1.msra.mxu0 0.0
      %3746 = vmatprep.subr.mxu0 0.0
      %3747 = vmatpush1.msra.mxu0 0.0
      %3748 = vmatprep.subr.mxu0 0.0
      %3749 = vmatpush1.msra.mxu0 0.0
      %3750 = vmatprep.subr.mxu0 0.0
      %3751 = vmatpush1.msra.mxu0 0.0
      %3752 = vmatprep.subr.mxu0 0.0
      %3753 = vmatpush1.msra.mxu0 0.0
      %3754 = vmatprep.subr.mxu0 0.0
      %3755 = vmatpush1.msra.mxu0 0.0
      %3756 = vmatprep.subr.mxu0 0.0
      %3757 = vmatpush1.msra.mxu0 0.0
      %3758 = vmatprep.subr.mxu0 0.0
      %3759 = vmatpush1.msra.mxu0 0.0
      %3760 = vmatprep.subr.mxu0 0.0
      %3761 = vmatpush1.msra.mxu0 0.0
      %3762 = vmatprep.subr.mxu0 0.0
      %3763 = vmatpush1.msra.mxu0 0.0
      %3764 = vmatprep.subr.mxu0 0.0
      %3765 = vmatpush1.msra.mxu0 0.0
      %3766 = vmatprep.subr.mxu0 0.0
      %3767 = vmatpush1.msra.mxu0 0.0
      %3768 = vmatprep.subr.mxu0 0.0
      %3769 = vmatpush1.msra.mxu0 0.0
      %3770 = vmatprep.subr.mxu0 0.0
      %3771 = vmatpush1.msra.mxu0 0.0
      %3772 = vmatprep.subr.mxu0 0.0
      %3773 = vmatpush1.msra.mxu0 0.0
      %3774 = vmatprep.subr.mxu0 0.0
      %3775 = vmatpush1.msra.mxu0 0.0
      %3776 = vmatprep.subr.mxu0 0.0
      %3777 = vmatpush1.msra.mxu0 0.0
      %3778 = vmatprep.subr.mxu0 0.0
      %3779 = vmatpush1.msra.mxu0 0.0
      %3780 = vmatprep.subr.mxu0 0.0
      %3781 = vmatpush1.msra.mxu0 0.0
      %3782 = vmatprep.subr.mxu0 0.0
      %3783 = vmatpush1.msra.mxu0 0.0
      %3784 = vmatprep.subr.mxu0 0.0
      %3785 = vmatpush1.msra.mxu0 0.0
      %3786 = vmatprep.subr.mxu0 0.0
      %3787 = vmatpush1.msra.mxu0 0.0
      %3788 = vmatprep.subr.mxu0 0.0
      %3789 = vmatpush1.msra.mxu0 0.0
      %3790 = vmatprep.subr.mxu0 0.0
      %3791 = vmatpush1.msra.mxu0 0.0
      %3792 = vmatprep.subr.mxu0 0.0
      %3793 = vmatpush1.msra.mxu0 0.0
      %3794 = vmatprep.subr.mxu0 0.0
      %3795 = vmatpush1.msra.mxu0 0.0
      %3796 = vmatprep.mubr.f32.mxu0 0.0
      %3797 = vmatmul.mubr.f32.gmra.mrb[0].mxu0 %v3625
      %v3798 = vpop.f32.mrb[0].mxu0
      %v3799 = vadd.f32 0.0, %v3798
      %v3800 = vpop.f32.mrb[0].mxu0
      %3801 = vmatprep.mubr.f32.mxu0 0.0
      %3802 = vmatmul.mubr.f32.gmra.mrb[0].mxu0 %v3628
      %v3803 = vpop.f32.mrb[0].mxu0
      %v3804 = vadd.f32 0.0, %v3803
      %v3805 = vpop.f32.mrb[0].mxu0
      %3806 = vmatprep.mubr.f32.mxu0 0.0
      %3807 = vmatmul.mubr.f32.gmra.mrb[0].mxu0 %v3631
      %v3808 = vpop.f32.mrb[0].mxu0
      %v3809 = vadd.f32 0.0, %v3808
      %v3810 = vpop.f32.mrb[0].mxu0
      %3811 = vmatprep.mubr.f32.mxu0 0.0
      %3812 = vmatmul.mubr.f32.gmra.mrb[0].mxu0 %v3634
      %v3813 = vpop.f32.mrb[0].mxu0
      %v3814 = vadd.f32 0.0, %v3813
      %v3815 = vpop.f32.mrb[0].mxu0
      %3816 = vmatprep.mubr.f32.mxu0 0.0
      %3817 = vmatmul.mubr.f32.gmra.mrb[0].mxu0 %v3637
      %v3818 = vpop.f32.mrb[0].mxu0
      %v3819 = vadd.f32 0.0, %v3818
      %v3820 = vpop.f32.mrb[0].mxu0
      %3821 = vmatprep.mubr.f32.mxu0 0.0
      %3822 = vmatmul.mubr.f32.gmra.mrb[0].mxu0 %v3640
      %v3823 = vpop.f32.mrb[0].mxu0
      %v3824 = vadd.f32 0.0, %v3823
      %v3825 = vpop.f32.mrb[0].mxu0
      %3826 = vmatprep.mubr.f32.mxu0 0.0
      %3827 = vmatmul.mubr.f32.gmra.mrb[0].mxu0 %v3643
      %v3828 = vpop.f32.mrb[0].mxu0
      %v3829 = vadd.f32 0.0, %v3828
      %v3830 = vpop.f32.mrb[0].mxu0
      %3831 = vmatprep.mubr.f32.mxu0 0.0
      %3832 = vmatmul.mubr.f32.gmra.mrb[0].mxu0 %v3646
      %v3833 = vpop.f32.mrb[0].mxu0
      %v3834 = vadd.f32 0.0, %v3833
      %v3835 = vpop.f32.mrb[0].mxu0
      %3836 = vmatprep.mubr.f32.mxu0 0.0
      %3837 = vmatmul.mubr.f32.gmra.mrb[0].mxu0 %v3649
      %v3838 = vpop.f32.mrb[0].mxu0
      %v3839 = vadd.f32 0.0, %v3838
      %v3840 = vpop.f32.mrb[0].mxu0
      %3841 = vmatprep.mubr.f32.mxu0 0.0
      %3842 = vmatmul.mubr.f32.gmra.mrb[0].mxu0 %v3652
      %v3843 = vpop.f32.mrb[0].mxu0
      %v3844 = vadd.f32 0.0, %v3843
      %v3845 = vpop.f32.mrb[0].mxu0
      %3846 = vmatprep.mubr.f32.mxu0 0.0
      %3847 = vmatmul.mubr.f32.gmra.mrb[0].mxu0 %v3655
      %v3848 = vpop.f32.mrb[0].mxu0
      %v3849 = vadd.f32 0.0, %v3848
      %v3850 = vpop.f32.mrb[0].mxu0
      %3851 = vmatprep.mubr.f32.mxu0 0.0
      %3852 = vmatmul.mubr.f32.gmra.mrb[0].mxu0 %v3658
      %v3853 = vpop.f32.mrb[0].mxu0
      %v3854 = vadd.f32 0.0, %v3853
      %v3855 = vpop.f32.mrb[0].mxu0
      %3856 = vmatprep.mubr.f32.mxu0 0.0
      %3857 = vmatmul.mubr.f32.gmra.mrb[0].mxu0 %v3661
      %v3858 = vpop.f32.mrb[0].mxu0
      %v3859 = vadd.f32 0.0, %v3858
      %v3860 = vpop.f32.mrb[0].mxu0
      %3861 = vmatprep.mubr.f32.mxu0 0.0
      %3862 = vmatmul.mubr.f32.gmra.mrb[0].mxu0 %v3664
      %v3863 = vpop.f32.mrb[0].mxu0
      %v3864 = vadd.f32 0.0, %v3863
      %v3865 = vpop.f32.mrb[0].mxu0
      %3866 = vmatprep.mubr.f32.mxu0 0.0
      %3867 = vmatmul.mubr.f32.gmra.mrb[0].mxu0 %v3667
      %v3868 = vpop.f32.mrb[0].mxu0
      %v3869 = vadd.f32 0.0, %v3868
      %v3870 = vpop.f32.mrb[0].mxu0
      %3871 = vmatprep.mubr.f32.mxu0 0.0
      %3872 = vmatmul.mubr.f32.gmra.mrb[0].mxu0 %v3670
      %v3873 = vpop.f32.mrb[0].mxu0
      %v3874 = vadd.f32 0.0, %v3873
      %v3875 = vpop.f32.mrb[0].mxu0
      %3876 = vmatprep.mubr.f32.mxu0 0.0
      %3877 = vmatmul.mubr.f32.gmra.mrb[0].mxu0 %v3673
      %v3878 = vpop.f32.mrb[0].mxu0
      %v3879 = vadd.f32 0.0, %v3878
      %v3880 = vpop.f32.mrb[0].mxu0
      %3881 = vmatprep.mubr.f32.mxu0 0.0
      %3882 = vmatmul.mubr.f32.gmra.mrb[0].mxu0 %v3676
      %v3883 = vpop.f32.mrb[0].mxu0
      %v3884 = vadd.f32 0.0, %v3883
      %v3885 = vpop.f32.mrb[0].mxu0
      %3886 = vmatprep.mubr.f32.mxu0 0.0
      %3887 = vmatmul.mubr.f32.gmra.mrb[0].mxu0 %v3679
      %v3888 = vpop.f32.mrb[0].mxu0
      %v3889 = vadd.f32 0.0, %v3888
      %v3890 = vpop.f32.mrb[0].mxu0
      %3891 = vmatprep.mubr.f32.mxu0 0.0
      %3892 = vmatmul.mubr.f32.gmra.mrb[0].mxu0 %v3682
      %v3893 = vpop.f32.mrb[0].mxu0
      %v3894 = vadd.f32 0.0, %v3893
      %v3895 = vpop.f32.mrb[0].mxu0
      %3896 = vmatprep.mubr.f32.mxu0 0.0
      %3897 = vmatmul.mubr.f32.gmra.mrb[0].mxu0 %v3685
      %v3898 = vpop.f32.mrb[0].mxu0
      %v3899 = vadd.f32 0.0, %v3898
      %v3900 = vpop.f32.mrb[0].mxu0
      %3901 = vmatprep.mubr.f32.mxu0 0.0
      %3902 = vmatmul.mubr.f32.gmra.mrb[0].mxu0 %v3688
      %v3903 = vpop.f32.mrb[0].mxu0
      %v3904 = vadd.f32 0.0, %v3903
      %v3905 = vpop.f32.mrb[0].mxu0
      %3906 = vmatprep.mubr.f32.mxu0 0.0
      %3907 = vmatmul.mubr.f32.gmra.mrb[0].mxu0 %v3691
      %v3908 = vpop.f32.mrb[0].mxu0
      %v3909 = vadd.f32 0.0, %v3908
      %v3910 = vpop.f32.mrb[0].mxu0
      %3911 = vmatprep.mubr.f32.mxu0 0.0
      %3912 = vmatmul.mubr.f32.gmra.mrb[0].mxu0 %v3694
      %v3913 = vpop.f32.mrb[0].mxu0
      %v3914 = vadd.f32 0.0, %v3913
      %v3915 = vpop.f32.mrb[0].mxu0
      %3916 = vmatprep.mubr.f32.mxu0 0.0
      %3917 = vmatmul.mubr.f32.gmra.mrb[0].mxu0 %v3697
      %v3918 = vpop.f32.mrb[0].mxu0
      %v3919 = vadd.f32 0.0, %v3918
      %v3920 = vpop.f32.mrb[0].mxu0
      %3921 = vmatprep.mubr.f32.mxu0 0.0
      %3922 = vmatmul.mubr.f32.gmra.mrb[0].mxu0 %v3700
      %v3923 = vpop.f32.mrb[0].mxu0
      %v3924 = vadd.f32 0.0, %v3923
      %v3925 = vpop.f32.mrb[0].mxu0
      %3926 = vmatprep.mubr.f32.mxu0 0.0
      %3927 = vmatmul.mubr.f32.gmra.mrb[0].mxu0 %v3703
      %v3928 = vpop.f32.mrb[0].mxu0
      %v3929 = vadd.f32 0.0, %v3928
      %v3930 = vpop.f32.mrb[0].mxu0
      %3931 = vmatprep.mubr.f32.mxu0 0.0
      %3932 = vmatmul.mubr.f32.gmra.mrb[0].mxu0 %v3706
      %v3933 = vpop.f32.mrb[0].mxu0
      %v3934 = vadd.f32 0.0, %v3933
      %v3935 = vpop.f32.mrb[0].mxu0
      %3936 = vmatprep.mubr.f32.mxu0 0.0
      %3937 = vmatmul.mubr.f32.gmra.mrb[0].mxu0 %v3709
      %v3938 = vpop.f32.mrb[0].mxu0
      %v3939 = vadd.f32 0.0, %v3938
      %v3940 = vpop.f32.mrb[0].mxu0
      %3941 = vmatprep.mubr.f32.mxu0 0.0
      %3942 = vmatmul.mubr.f32.gmra.mrb[0].mxu0 %v3712
      %v3943 = vpop.f32.mrb[0].mxu0
      %v3944 = vadd.f32 0.0, %v3943
      %v3945 = vpop.f32.mrb[0].mxu0
      %3946 = vmatprep.mubr.f32.mxu0 0.0
      %3947 = vmatmul.mubr.f32.gmra.mrb[0].mxu0 %v3715
      %v3948 = vpop.f32.mrb[0].mxu0
      %v3949 = vadd.f32 0.0, %v3948
      %v3950 = vpop.f32.mrb[0].mxu0
      %3951 = vmatprep.mubr.f32.mxu0 0.0
      %3952 = vmatmul.mubr.f32.gmra.mrb[0].mxu0 %v3718
      %v3953 = vpop.f32.mrb[0].mxu0
      %v3954 = vadd.f32 0.0, %v3953
      %v3955 = vpop.f32.mrb[0].mxu0
      %3956 = vmatprep.mubr.f32.mxu0 0.0
      %3957 = vmatmul.mubr.f32.gmra.mrb[0].mxu0 %v3721
      %v3958 = vpop.f32.mrb[0].mxu0
      %v3959 = vadd.f32 0.0, %v3958
      %v3960 = vpop.f32.mrb[0].mxu0
      %3961 = vmatprep.mubr.f32.mxu0 0.0
      %3962 = vmatmul.mubr.f32.gmra.mrb[0].mxu0 %v3724
      %v3963 = vpop.f32.mrb[0].mxu0
      %v3964 = vadd.f32 0.0, %v3963
      %v3965 = vpop.f32.mrb[0].mxu0
      %3966 = vmatprep.mubr.f32.mxu0 0.0
      %3967 = vmatmul.mubr.f32.gmra.mrb[0].mxu0 %v3727
      %v3968 = vpop.f32.mrb[0].mxu0
      %v3969 = vadd.f32 0.0, %v3968
      %v3970 = vpop.f32.mrb[0].mxu0
      %3971 = vmatprep.mubr.f32.mxu0 0.0
      %3972 = vmatmul.mubr.f32.gmra.mrb[0].mxu0 %v3730
      %v3973 = vpop.f32.mrb[0].mxu0
      %v3974 = vadd.f32 0.0, %v3973
      %v3975 = vpop.f32.mrb[0].mxu0
      %3976 = vdwg.mxu0
      %v3977 = vadd.f32 %v3550, %v3799
      %v3978 = vadd.f32 %v3551, %v3804
      %v3979 = vadd.f32 %v3552, %v3809
      %v3980 = vadd.f32 %v3553, %v3814
      %v3981 = vadd.f32 %v3554, %v3819
      %v3982 = vadd.f32 %v3555, %v3824
      %v3983 = vadd.f32 %v3556, %v3829
      %v3984 = vadd.f32 %v3557, %v3834
      %v3985 = vadd.f32 %v3558, %v3839
      %v3986 = vadd.f32 %v3559, %v3844
      %v3987 = vadd.f32 %v3560, %v3849
      %v3988 = vadd.f32 %v3561, %v3854
      %v3989 = vadd.f32 %v3562, %v3859
      %v3990 = vadd.f32 %v3563, %v3864
      %v3991 = vadd.f32 %v3564, %v3869
      %v3992 = vadd.f32 %v3565, %v3874
      %v3993 = vadd.f32 %v3566, %v3879
      %v3994 = vadd.f32 %v3567, %v3884
      %v3995 = vadd.f32 %v3568, %v3889
      %v3996 = vadd.f32 %v3569, %v3894
      %v3997 = vadd.f32 %v3570, %v3899
      %v3998 = vadd.f32 %v3571, %v3904
      %v3999 = vadd.f32 %v3572, %v3909
      %v4000 = vadd.f32 %v3573, %v3914
      %v4001 = vadd.f32 %v3574, %v3919
      %v4002 = vadd.f32 %v3575, %v3924
      %v4003 = vadd.f32 %v3576, %v3929
      %v4004 = vadd.f32 %v3577, %v3934
      %v4005 = vadd.f32 %v3578, %v3939
      %v4006 = vadd.f32 %v3579, %v3944
      %v4007 = vadd.f32 %v3580, %v3949
      %v4008 = vadd.f32 %v3581, %v3954
      %v4009 = vadd.f32 %v3582, %v3959
      %v4010 = vadd.f32 %v3583, %v3964
      %v4011 = vadd.f32 %v3584, %v3969
      %v4012 = vadd.f32 %v3585, %v3974
      %v4013 = vld [vmem:[%s2] sm:$0x1]
      %v4015 = vlaneseq
      %v4016 = vshrl.u32 %v4015, 7
      %v4017 = vsub.s32 0, %v4016
      %v4018 = vrot.slane %v4013, %v4017
      %v4020 = vadd.f32 %v3977, %v4018
      %v4021 = vadd.f32 %v3978, %v4018
      %v4022 = vadd.f32 %v3979, %v4018
      %v4023 = vadd.f32 %v3980, %v4018
      %v4024 = vadd.f32 %v3981, %v4018
      %v4025 = vadd.f32 %v3982, %v4018
      %v4026 = vadd.f32 %v3983, %v4018
      %v4027 = vadd.f32 %v3984, %v4018
      %v4028 = vadd.f32 %v3985, %v4018
      %v4029 = vadd.f32 %v3986, %v4018
      %v4030 = vadd.f32 %v3987, %v4018
      %v4031 = vadd.f32 %v3988, %v4018
      %v4032 = vadd.f32 %v3989, %v4018
      %v4033 = vadd.f32 %v3990, %v4018
      %v4034 = vadd.f32 %v3991, %v4018
      %v4035 = vadd.f32 %v3992, %v4018
      %v4036 = vadd.f32 %v3993, %v4018
      %v4037 = vadd.f32 %v3994, %v4018
      %v4038 = vadd.f32 %v3995, %v4018
      %v4039 = vadd.f32 %v3996, %v4018
      %v4040 = vadd.f32 %v3997, %v4018
      %v4041 = vadd.f32 %v3998, %v4018
      %v4042 = vadd.f32 %v3999, %v4018
      %v4043 = vadd.f32 %v4000, %v4018
      %v4044 = vadd.f32 %v4001, %v4018
      %v4045 = vadd.f32 %v4002, %v4018
      %v4046 = vadd.f32 %v4003, %v4018
      %v4047 = vadd.f32 %v4004, %v4018
      %v4048 = vadd.f32 %v4005, %v4018
      %v4049 = vadd.f32 %v4006, %v4018
      %v4050 = vadd.f32 %v4007, %v4018
      %v4051 = vadd.f32 %v4008, %v4018
      %v4052 = vadd.f32 %v4009, %v4018
      %v4053 = vadd.f32 %v4010, %v4018
      %v4054 = vadd.f32 %v4011, %v4018
      %v4055 = vadd.f32 %v4012, %v4018
      %p4056 = scmp.eq.s32.totalorder %s20, 0
      %p4057 = scmp.eq.s32.totalorder %s21, 0
      %p4058 = pnand %p4056, %p4057
      %p4059 = pneg %p4058
      // Predicated region
      $region41: #{tpu_custom_call.1} parent=39 // pred_check
        _
      $region42: #{tpu_custom_call.1} parent=39 // pred_check_branch
        %4061 = sbr.rel (%p4058) target = $region44
      $region43: #{tpu_custom_call.1} parent=39 // pred_region
        %4062 = vst [vmem:[#allocation2] sm:$0x1] 0.0
        %4063 = vst [vmem:[#allocation3] sm:$0x1] 0.0
      $region44: #{tpu_custom_call.1} parent=39 // pred_fallthru
        _
      // Predicated region
      $region45: #{tpu_custom_call.1} parent=39 // pred_check
        %p4064 = pneg %p4056
      $region46: #{tpu_custom_call.1} parent=39 // pred_check_branch
        %4066 = sbr.rel (%p4064) target = $region48
      $region47: #{tpu_custom_call.1} parent=39 // pred_region
        %v4067 = vlaneseq
        %v4068 = vshrl.u32 %v4067, 7
        %v4069 = vadd.s32 %v4068, 8
        %v4070 = vadd.s32 %v4068, 16
        %v4071 = vadd.s32 %v4068, 24
        %v4072 = vadd.s32 %v4068, 32
        %v4073 = vadd.s32 %v4068, 40
        %v4074 = vadd.s32 %v4068, 48
        %v4075 = vadd.s32 %v4068, 56
        %v4076 = vadd.s32 %v4068, 64
        %v4077 = vadd.s32 %v4068, 72
        %v4078 = vadd.s32 %v4068, 80
        %v4079 = vadd.s32 %v4068, 88
        %v4080 = vadd.s32 %v4068, 96
        %v4081 = vadd.s32 %v4068, 104
        %v4082 = vadd.s32 %v4068, 112
        %v4083 = vadd.s32 %v4068, 120
        %v4084 = vadd.s32 %v4068, 128
        %v4085 = vadd.s32 %v4068, 136
        %v4086 = vadd.s32 %v4068, 144
        %v4087 = vadd.s32 %v4068, 152
        %v4088 = vadd.s32 %v4068, 160
        %v4089 = vadd.s32 %v4068, 168
        %v4090 = vadd.s32 %v4068, 176
        %v4091 = vadd.s32 %v4068, 184
        %v4092 = vadd.s32 %v4068, 192
        %v4093 = vadd.s32 %v4068, 200
        %v4094 = vadd.s32 %v4068, 208
        %v4095 = vadd.s32 %v4068, 216
        %v4096 = vadd.s32 %v4068, 224
        %v4097 = vadd.s32 %v4068, 232
        %v4098 = vadd.s32 %v4068, 240
        %v4099 = vadd.s32 %v4068, 248
        %v4100 = vadd.s32 %v4068, 256
        %v4101 = vadd.s32 %v4068, 264
        %v4102 = vadd.s32 %v4068, 272
        %v4103 = vadd.s32 %v4068, 280
        %vm4104 = vcmp.lt.s32.totalorder %v4068, 0
        %v4105 = vsub.s32 0, %v4068
        %v4106 = vsel %vm4104, %v4105, %v4068
        %v4107 = vmul.u32.u64.compose %v4106, 3817748708
        %v4108 = vextract.low.u32 %v4107
        %v4109 = vextract.high.u32 %v4107
        %v4110 = vshrl.u32 %v4109, 4
        %v4111 = vmul.u32 %v4110, 18
        %v4112 = vsub.s32 %v4106, %v4111
        %v4113 = vsub.s32 0, %v4112
        %v4114 = vsel %vm4104, %v4113, %v4112
        %vm4115 = vcmp.lt.s32.totalorder %v4069, 0
        %v4116 = vsub.s32 0, %v4069
        %v4117 = vsel %vm4115, %v4116, %v4069
        %v4118 = vmul.u32.u64.compose %v4117, 3817748708
        %v4119 = vextract.low.u32 %v4118
        %v4120 = vextract.high.u32 %v4118
        %v4121 = vshrl.u32 %v4120, 4
        %v4122 = vmul.u32 %v4121, 18
        %v4123 = vsub.s32 %v4117, %v4122
        %v4124 = vsub.s32 0, %v4123
        %v4125 = vsel %vm4115, %v4124, %v4123
        %vm4126 = vcmp.lt.s32.totalorder %v4070, 0
        %v4127 = vsub.s32 0, %v4070
        %v4128 = vsel %vm4126, %v4127, %v4070
        %v4129 = vmul.u32.u64.compose %v4128, 3817748708
        %v4130 = vextract.low.u32 %v4129
        %v4131 = vextract.high.u32 %v4129
        %v4132 = vshrl.u32 %v4131, 4
        %v4133 = vmul.u32 %v4132, 18
        %v4134 = vsub.s32 %v4128, %v4133
        %v4135 = vsub.s32 0, %v4134
        %v4136 = vsel %vm4126, %v4135, %v4134
        %vm4137 = vcmp.lt.s32.totalorder %v4071, 0
        %v4138 = vsub.s32 0, %v4071
        %v4139 = vsel %vm4137, %v4138, %v4071
        %v4140 = vmul.u32.u64.compose %v4139, 3817748708
        %v4141 = vextract.low.u32 %v4140
        %v4142 = vextract.high.u32 %v4140
        %v4143 = vshrl.u32 %v4142, 4
        %v4144 = vmul.u32 %v4143, 18
        %v4145 = vsub.s32 %v4139, %v4144
        %v4146 = vsub.s32 0, %v4145
        %v4147 = vsel %vm4137, %v4146, %v4145
        %vm4148 = vcmp.lt.s32.totalorder %v4072, 0
        %v4149 = vsub.s32 0, %v4072
        %v4150 = vsel %vm4148, %v4149, %v4072
        %v4151 = vmul.u32.u64.compose %v4150, 3817748708
        %v4152 = vextract.low.u32 %v4151
        %v4153 = vextract.high.u32 %v4151
        %v4154 = vshrl.u32 %v4153, 4
        %v4155 = vmul.u32 %v4154, 18
        %v4156 = vsub.s32 %v4150, %v4155
        %v4157 = vsub.s32 0, %v4156
        %v4158 = vsel %vm4148, %v4157, %v4156
        %vm4159 = vcmp.lt.s32.totalorder %v4073, 0
        %v4160 = vsub.s32 0, %v4073
        %v4161 = vsel %vm4159, %v4160, %v4073
        %v4162 = vmul.u32.u64.compose %v4161, 3817748708
        %v4163 = vextract.low.u32 %v4162
        %v4164 = vextract.high.u32 %v4162
        %v4165 = vshrl.u32 %v4164, 4
        %v4166 = vmul.u32 %v4165, 18
        %v4167 = vsub.s32 %v4161, %v4166
        %v4168 = vsub.s32 0, %v4167
        %v4169 = vsel %vm4159, %v4168, %v4167
        %vm4170 = vcmp.lt.s32.totalorder %v4074, 0
        %v4171 = vsub.s32 0, %v4074
        %v4172 = vsel %vm4170, %v4171, %v4074
        %v4173 = vmul.u32.u64.compose %v4172, 3817748708
        %v4174 = vextract.low.u32 %v4173
        %v4175 = vextract.high.u32 %v4173
        %v4176 = vshrl.u32 %v4175, 4
        %v4177 = vmul.u32 %v4176, 18
        %v4178 = vsub.s32 %v4172, %v4177
        %v4179 = vsub.s32 0, %v4178
        %v4180 = vsel %vm4170, %v4179, %v4178
        %vm4181 = vcmp.lt.s32.totalorder %v4075, 0
        %v4182 = vsub.s32 0, %v4075
        %v4183 = vsel %vm4181, %v4182, %v4075
        %v4184 = vmul.u32.u64.compose %v4183, 3817748708
        %v4185 = vextract.low.u32 %v4184
        %v4186 = vextract.high.u32 %v4184
        %v4187 = vshrl.u32 %v4186, 4
        %v4188 = vmul.u32 %v4187, 18
        %v4189 = vsub.s32 %v4183, %v4188
        %v4190 = vsub.s32 0, %v4189
        %v4191 = vsel %vm4181, %v4190, %v4189
        %vm4192 = vcmp.lt.s32.totalorder %v4076, 0
        %v4193 = vsub.s32 0, %v4076
        %v4194 = vsel %vm4192, %v4193, %v4076
        %v4195 = vmul.u32.u64.compose %v4194, 3817748708
        %v4196 = vextract.low.u32 %v4195
        %v4197 = vextract.high.u32 %v4195
        %v4198 = vshrl.u32 %v4197, 4
        %v4199 = vmul.u32 %v4198, 18
        %v4200 = vsub.s32 %v4194, %v4199
        %v4201 = vsub.s32 0, %v4200
        %v4202 = vsel %vm4192, %v4201, %v4200
        %vm4203 = vcmp.lt.s32.totalorder %v4077, 0
        %v4204 = vsub.s32 0, %v4077
        %v4205 = vsel %vm4203, %v4204, %v4077
        %v4206 = vmul.u32.u64.compose %v4205, 3817748708
        %v4207 = vextract.low.u32 %v4206
        %v4208 = vextract.high.u32 %v4206
        %v4209 = vshrl.u32 %v4208, 4
        %v4210 = vmul.u32 %v4209, 18
        %v4211 = vsub.s32 %v4205, %v4210
        %v4212 = vsub.s32 0, %v4211
        %v4213 = vsel %vm4203, %v4212, %v4211
        %vm4214 = vcmp.lt.s32.totalorder %v4078, 0
        %v4215 = vsub.s32 0, %v4078
        %v4216 = vsel %vm4214, %v4215, %v4078
        %v4217 = vmul.u32.u64.compose %v4216, 3817748708
        %v4218 = vextract.low.u32 %v4217
        %v4219 = vextract.high.u32 %v4217
        %v4220 = vshrl.u32 %v4219, 4
        %v4221 = vmul.u32 %v4220, 18
        %v4222 = vsub.s32 %v4216, %v4221
        %v4223 = vsub.s32 0, %v4222
        %v4224 = vsel %vm4214, %v4223, %v4222
        %vm4225 = vcmp.lt.s32.totalorder %v4079, 0
        %v4226 = vsub.s32 0, %v4079
        %v4227 = vsel %vm4225, %v4226, %v4079
        %v4228 = vmul.u32.u64.compose %v4227, 3817748708
        %v4229 = vextract.low.u32 %v4228
        %v4230 = vextract.high.u32 %v4228
        %v4231 = vshrl.u32 %v4230, 4
        %v4232 = vmul.u32 %v4231, 18
        %v4233 = vsub.s32 %v4227, %v4232
        %v4234 = vsub.s32 0, %v4233
        %v4235 = vsel %vm4225, %v4234, %v4233
        %vm4236 = vcmp.lt.s32.totalorder %v4080, 0
        %v4237 = vsub.s32 0, %v4080
        %v4238 = vsel %vm4236, %v4237, %v4080
        %v4239 = vmul.u32.u64.compose %v4238, 3817748708
        %v4240 = vextract.low.u32 %v4239
        %v4241 = vextract.high.u32 %v4239
        %v4242 = vshrl.u32 %v4241, 4
        %v4243 = vmul.u32 %v4242, 18
        %v4244 = vsub.s32 %v4238, %v4243
        %v4245 = vsub.s32 0, %v4244
        %v4246 = vsel %vm4236, %v4245, %v4244
        %vm4247 = vcmp.lt.s32.totalorder %v4081, 0
        %v4248 = vsub.s32 0, %v4081
        %v4249 = vsel %vm4247, %v4248, %v4081
        %v4250 = vmul.u32.u64.compose %v4249, 3817748708
        %v4251 = vextract.low.u32 %v4250
        %v4252 = vextract.high.u32 %v4250
        %v4253 = vshrl.u32 %v4252, 4
        %v4254 = vmul.u32 %v4253, 18
        %v4255 = vsub.s32 %v4249, %v4254
        %v4256 = vsub.s32 0, %v4255
        %v4257 = vsel %vm4247, %v4256, %v4255
        %vm4258 = vcmp.lt.s32.totalorder %v4082, 0
        %v4259 = vsub.s32 0, %v4082
        %v4260 = vsel %vm4258, %v4259, %v4082
        %v4261 = vmul.u32.u64.compose %v4260, 3817748708
        %v4262 = vextract.low.u32 %v4261
        %v4263 = vextract.high.u32 %v4261
        %v4264 = vshrl.u32 %v4263, 4
        %v4265 = vmul.u32 %v4264, 18
        %v4266 = vsub.s32 %v4260, %v4265
        %v4267 = vsub.s32 0, %v4266
        %v4268 = vsel %vm4258, %v4267, %v4266
        %vm4269 = vcmp.lt.s32.totalorder %v4083, 0
        %v4270 = vsub.s32 0, %v4083
        %v4271 = vsel %vm4269, %v4270, %v4083
        %v4272 = vmul.u32.u64.compose %v4271, 3817748708
        %v4273 = vextract.low.u32 %v4272
        %v4274 = vextract.high.u32 %v4272
        %v4275 = vshrl.u32 %v4274, 4
        %v4276 = vmul.u32 %v4275, 18
        %v4277 = vsub.s32 %v4271, %v4276
        %v4278 = vsub.s32 0, %v4277
        %v4279 = vsel %vm4269, %v4278, %v4277
        %vm4280 = vcmp.lt.s32.totalorder %v4084, 0
        %v4281 = vsub.s32 0, %v4084
        %v4282 = vsel %vm4280, %v4281, %v4084
        %v4283 = vmul.u32.u64.compose %v4282, 3817748708
        %v4284 = vextract.low.u32 %v4283
        %v4285 = vextract.high.u32 %v4283
        %v4286 = vshrl.u32 %v4285, 4
        %v4287 = vmul.u32 %v4286, 18
        %v4288 = vsub.s32 %v4282, %v4287
        %v4289 = vsub.s32 0, %v4288
        %v4290 = vsel %vm4280, %v4289, %v4288
        %vm4291 = vcmp.lt.s32.totalorder %v4085, 0
        %v4292 = vsub.s32 0, %v4085
        %v4293 = vsel %vm4291, %v4292, %v4085
        %v4294 = vmul.u32.u64.compose %v4293, 3817748708
        %v4295 = vextract.low.u32 %v4294
        %v4296 = vextract.high.u32 %v4294
        %v4297 = vshrl.u32 %v4296, 4
        %v4298 = vmul.u32 %v4297, 18
        %v4299 = vsub.s32 %v4293, %v4298
        %v4300 = vsub.s32 0, %v4299
        %v4301 = vsel %vm4291, %v4300, %v4299
        %vm4302 = vcmp.lt.s32.totalorder %v4086, 0
        %v4303 = vsub.s32 0, %v4086
        %v4304 = vsel %vm4302, %v4303, %v4086
        %v4305 = vmul.u32.u64.compose %v4304, 3817748708
        %v4306 = vextract.low.u32 %v4305
        %v4307 = vextract.high.u32 %v4305
        %v4308 = vshrl.u32 %v4307, 4
        %v4309 = vmul.u32 %v4308, 18
        %v4310 = vsub.s32 %v4304, %v4309
        %v4311 = vsub.s32 0, %v4310
        %v4312 = vsel %vm4302, %v4311, %v4310
        %vm4313 = vcmp.lt.s32.totalorder %v4087, 0
        %v4314 = vsub.s32 0, %v4087
        %v4315 = vsel %vm4313, %v4314, %v4087
        %v4316 = vmul.u32.u64.compose %v4315, 3817748708
        %v4317 = vextract.low.u32 %v4316
        %v4318 = vextract.high.u32 %v4316
        %v4319 = vshrl.u32 %v4318, 4
        %v4320 = vmul.u32 %v4319, 18
        %v4321 = vsub.s32 %v4315, %v4320
        %v4322 = vsub.s32 0, %v4321
        %v4323 = vsel %vm4313, %v4322, %v4321
        %vm4324 = vcmp.lt.s32.totalorder %v4088, 0
        %v4325 = vsub.s32 0, %v4088
        %v4326 = vsel %vm4324, %v4325, %v4088
        %v4327 = vmul.u32.u64.compose %v4326, 3817748708
        %v4328 = vextract.low.u32 %v4327
        %v4329 = vextract.high.u32 %v4327
        %v4330 = vshrl.u32 %v4329, 4
        %v4331 = vmul.u32 %v4330, 18
        %v4332 = vsub.s32 %v4326, %v4331
        %v4333 = vsub.s32 0, %v4332
        %v4334 = vsel %vm4324, %v4333, %v4332
        %vm4335 = vcmp.lt.s32.totalorder %v4089, 0
        %v4336 = vsub.s32 0, %v4089
        %v4337 = vsel %vm4335, %v4336, %v4089
        %v4338 = vmul.u32.u64.compose %v4337, 3817748708
        %v4339 = vextract.low.u32 %v4338
        %v4340 = vextract.high.u32 %v4338
        %v4341 = vshrl.u32 %v4340, 4
        %v4342 = vmul.u32 %v4341, 18
        %v4343 = vsub.s32 %v4337, %v4342
        %v4344 = vsub.s32 0, %v4343
        %v4345 = vsel %vm4335, %v4344, %v4343
        %vm4346 = vcmp.lt.s32.totalorder %v4090, 0
        %v4347 = vsub.s32 0, %v4090
        %v4348 = vsel %vm4346, %v4347, %v4090
        %v4349 = vmul.u32.u64.compose %v4348, 3817748708
        %v4350 = vextract.low.u32 %v4349
        %v4351 = vextract.high.u32 %v4349
        %v4352 = vshrl.u32 %v4351, 4
        %v4353 = vmul.u32 %v4352, 18
        %v4354 = vsub.s32 %v4348, %v4353
        %v4355 = vsub.s32 0, %v4354
        %v4356 = vsel %vm4346, %v4355, %v4354
        %vm4357 = vcmp.lt.s32.totalorder %v4091, 0
        %v4358 = vsub.s32 0, %v4091
        %v4359 = vsel %vm4357, %v4358, %v4091
        %v4360 = vmul.u32.u64.compose %v4359, 3817748708
        %v4361 = vextract.low.u32 %v4360
        %v4362 = vextract.high.u32 %v4360
        %v4363 = vshrl.u32 %v4362, 4
        %v4364 = vmul.u32 %v4363, 18
        %v4365 = vsub.s32 %v4359, %v4364
        %v4366 = vsub.s32 0, %v4365
        %v4367 = vsel %vm4357, %v4366, %v4365
        %vm4368 = vcmp.lt.s32.totalorder %v4092, 0
        %v4369 = vsub.s32 0, %v4092
        %v4370 = vsel %vm4368, %v4369, %v4092
        %v4371 = vmul.u32.u64.compose %v4370, 3817748708
        %v4372 = vextract.low.u32 %v4371
        %v4373 = vextract.high.u32 %v4371
        %v4374 = vshrl.u32 %v4373, 4
        %v4375 = vmul.u32 %v4374, 18
        %v4376 = vsub.s32 %v4370, %v4375
        %v4377 = vsub.s32 0, %v4376
        %v4378 = vsel %vm4368, %v4377, %v4376
        %vm4379 = vcmp.lt.s32.totalorder %v4093, 0
        %v4380 = vsub.s32 0, %v4093
        %v4381 = vsel %vm4379, %v4380, %v4093
        %v4382 = vmul.u32.u64.compose %v4381, 3817748708
        %v4383 = vextract.low.u32 %v4382
        %v4384 = vextract.high.u32 %v4382
        %v4385 = vshrl.u32 %v4384, 4
        %v4386 = vmul.u32 %v4385, 18
        %v4387 = vsub.s32 %v4381, %v4386
        %v4388 = vsub.s32 0, %v4387
        %v4389 = vsel %vm4379, %v4388, %v4387
        %vm4390 = vcmp.lt.s32.totalorder %v4094, 0
        %v4391 = vsub.s32 0, %v4094
        %v4392 = vsel %vm4390, %v4391, %v4094
        %v4393 = vmul.u32.u64.compose %v4392, 3817748708
        %v4394 = vextract.low.u32 %v4393
        %v4395 = vextract.high.u32 %v4393
        %v4396 = vshrl.u32 %v4395, 4
        %v4397 = vmul.u32 %v4396, 18
        %v4398 = vsub.s32 %v4392, %v4397
        %v4399 = vsub.s32 0, %v4398
        %v4400 = vsel %vm4390, %v4399, %v4398
        %vm4401 = vcmp.lt.s32.totalorder %v4095, 0
        %v4402 = vsub.s32 0, %v4095
        %v4403 = vsel %vm4401, %v4402, %v4095
        %v4404 = vmul.u32.u64.compose %v4403, 3817748708
        %v4405 = vextract.low.u32 %v4404
        %v4406 = vextract.high.u32 %v4404
        %v4407 = vshrl.u32 %v4406, 4
        %v4408 = vmul.u32 %v4407, 18
        %v4409 = vsub.s32 %v4403, %v4408
        %v4410 = vsub.s32 0, %v4409
        %v4411 = vsel %vm4401, %v4410, %v4409
        %vm4412 = vcmp.lt.s32.totalorder %v4096, 0
        %v4413 = vsub.s32 0, %v4096
        %v4414 = vsel %vm4412, %v4413, %v4096
        %v4415 = vmul.u32.u64.compose %v4414, 3817748708
        %v4416 = vextract.low.u32 %v4415
        %v4417 = vextract.high.u32 %v4415
        %v4418 = vshrl.u32 %v4417, 4
        %v4419 = vmul.u32 %v4418, 18
        %v4420 = vsub.s32 %v4414, %v4419
        %v4421 = vsub.s32 0, %v4420
        %v4422 = vsel %vm4412, %v4421, %v4420
        %vm4423 = vcmp.lt.s32.totalorder %v4097, 0
        %v4424 = vsub.s32 0, %v4097
        %v4425 = vsel %vm4423, %v4424, %v4097
        %v4426 = vmul.u32.u64.compose %v4425, 3817748708
        %v4427 = vextract.low.u32 %v4426
        %v4428 = vextract.high.u32 %v4426
        %v4429 = vshrl.u32 %v4428, 4
        %v4430 = vmul.u32 %v4429, 18
        %v4431 = vsub.s32 %v4425, %v4430
        %v4432 = vsub.s32 0, %v4431
        %v4433 = vsel %vm4423, %v4432, %v4431
        %vm4434 = vcmp.lt.s32.totalorder %v4098, 0
        %v4435 = vsub.s32 0, %v4098
        %v4436 = vsel %vm4434, %v4435, %v4098
        %v4437 = vmul.u32.u64.compose %v4436, 3817748708
        %v4438 = vextract.low.u32 %v4437
        %v4439 = vextract.high.u32 %v4437
        %v4440 = vshrl.u32 %v4439, 4
        %v4441 = vmul.u32 %v4440, 18
        %v4442 = vsub.s32 %v4436, %v4441
        %v4443 = vsub.s32 0, %v4442
        %v4444 = vsel %vm4434, %v4443, %v4442
        %vm4445 = vcmp.lt.s32.totalorder %v4099, 0
        %v4446 = vsub.s32 0, %v4099
        %v4447 = vsel %vm4445, %v4446, %v4099
        %v4448 = vmul.u32.u64.compose %v4447, 3817748708
        %v4449 = vextract.low.u32 %v4448
        %v4450 = vextract.high.u32 %v4448
        %v4451 = vshrl.u32 %v4450, 4
        %v4452 = vmul.u32 %v4451, 18
        %v4453 = vsub.s32 %v4447, %v4452
        %v4454 = vsub.s32 0, %v4453
        %v4455 = vsel %vm4445, %v4454, %v4453
        %vm4456 = vcmp.lt.s32.totalorder %v4100, 0
        %v4457 = vsub.s32 0, %v4100
        %v4458 = vsel %vm4456, %v4457, %v4100
        %v4459 = vmul.u32.u64.compose %v4458, 3817748708
        %v4460 = vextract.low.u32 %v4459
        %v4461 = vextract.high.u32 %v4459
        %v4462 = vshrl.u32 %v4461, 4
        %v4463 = vmul.u32 %v4462, 18
        %v4464 = vsub.s32 %v4458, %v4463
        %v4465 = vsub.s32 0, %v4464
        %v4466 = vsel %vm4456, %v4465, %v4464
        %vm4467 = vcmp.lt.s32.totalorder %v4101, 0
        %v4468 = vsub.s32 0, %v4101
        %v4469 = vsel %vm4467, %v4468, %v4101
        %v4470 = vmul.u32.u64.compose %v4469, 3817748708
        %v4471 = vextract.low.u32 %v4470
        %v4472 = vextract.high.u32 %v4470
        %v4473 = vshrl.u32 %v4472, 4
        %v4474 = vmul.u32 %v4473, 18
        %v4475 = vsub.s32 %v4469, %v4474
        %v4476 = vsub.s32 0, %v4475
        %v4477 = vsel %vm4467, %v4476, %v4475
        %vm4478 = vcmp.lt.s32.totalorder %v4102, 0
        %v4479 = vsub.s32 0, %v4102
        %v4480 = vsel %vm4478, %v4479, %v4102
        %v4481 = vmul.u32.u64.compose %v4480, 3817748708
        %v4482 = vextract.low.u32 %v4481
        %v4483 = vextract.high.u32 %v4481
        %v4484 = vshrl.u32 %v4483, 4
        %v4485 = vmul.u32 %v4484, 18
        %v4486 = vsub.s32 %v4480, %v4485
        %v4487 = vsub.s32 0, %v4486
        %v4488 = vsel %vm4478, %v4487, %v4486
        %vm4489 = vcmp.lt.s32.totalorder %v4103, 0
        %v4490 = vsub.s32 0, %v4103
        %v4491 = vsel %vm4489, %v4490, %v4103
        %v4492 = vmul.u32.u64.compose %v4491, 3817748708
        %v4493 = vextract.low.u32 %v4492
        %v4494 = vextract.high.u32 %v4492
        %v4495 = vshrl.u32 %v4494, 4
        %v4496 = vmul.u32 %v4495, 18
        %v4497 = vsub.s32 %v4491, %v4496
        %v4498 = vsub.s32 0, %v4497
        %v4499 = vsel %vm4489, %v4498, %v4497
        %vm4500 = vcmp.ne.s32.totalorder %v4114, 0
        %vm4501 = vcmp.ne.s32.totalorder %v4125, 0
        %vm4502 = vcmp.ne.s32.totalorder %v4136, 0
        %vm4503 = vcmp.ne.s32.totalorder %v4147, 0
        %vm4504 = vcmp.ne.s32.totalorder %v4158, 0
        %vm4505 = vcmp.ne.s32.totalorder %v4169, 0
        %vm4506 = vcmp.ne.s32.totalorder %v4180, 0
        %vm4507 = vcmp.ne.s32.totalorder %v4191, 0
        %vm4508 = vcmp.ne.s32.totalorder %v4202, 0
        %vm4509 = vcmp.ne.s32.totalorder %v4213, 0
        %vm4510 = vcmp.ne.s32.totalorder %v4224, 0
        %vm4511 = vcmp.ne.s32.totalorder %v4235, 0
        %vm4512 = vcmp.ne.s32.totalorder %v4246, 0
        %vm4513 = vcmp.ne.s32.totalorder %v4257, 0
        %vm4514 = vcmp.ne.s32.totalorder %v4268, 0
        %vm4515 = vcmp.ne.s32.totalorder %v4279, 0
        %vm4516 = vcmp.ne.s32.totalorder %v4290, 0
        %vm4517 = vcmp.ne.s32.totalorder %v4301, 0
        %vm4518 = vcmp.ne.s32.totalorder %v4312, 0
        %vm4519 = vcmp.ne.s32.totalorder %v4323, 0
        %vm4520 = vcmp.ne.s32.totalorder %v4334, 0
        %vm4521 = vcmp.ne.s32.totalorder %v4345, 0
        %vm4522 = vcmp.ne.s32.totalorder %v4356, 0
        %vm4523 = vcmp.ne.s32.totalorder %v4367, 0
        %vm4524 = vcmp.ne.s32.totalorder %v4378, 0
        %vm4525 = vcmp.ne.s32.totalorder %v4389, 0
        %vm4526 = vcmp.ne.s32.totalorder %v4400, 0
        %vm4527 = vcmp.ne.s32.totalorder %v4411, 0
        %vm4528 = vcmp.ne.s32.totalorder %v4422, 0
        %vm4529 = vcmp.ne.s32.totalorder %v4433, 0
        %vm4530 = vcmp.ne.s32.totalorder %v4444, 0
        %vm4531 = vcmp.ne.s32.totalorder %v4455, 0
        %vm4532 = vcmp.ne.s32.totalorder %v4466, 0
        %vm4533 = vcmp.ne.s32.totalorder %v4477, 0
        %vm4534 = vcmp.ne.s32.totalorder %v4488, 0
        %vm4535 = vcmp.ne.s32.totalorder %v4499, 0
        %vm4536 = vcmp.lt.s32.totalorder %v4114, 0
        %vm4537 = vcmp.lt.s32.totalorder %v4125, 0
        %vm4538 = vcmp.lt.s32.totalorder %v4136, 0
        %vm4539 = vcmp.lt.s32.totalorder %v4147, 0
        %vm4540 = vcmp.lt.s32.totalorder %v4158, 0
        %vm4541 = vcmp.lt.s32.totalorder %v4169, 0
        %vm4542 = vcmp.lt.s32.totalorder %v4180, 0
        %vm4543 = vcmp.lt.s32.totalorder %v4191, 0
        %vm4544 = vcmp.lt.s32.totalorder %v4202, 0
        %vm4545 = vcmp.lt.s32.totalorder %v4213, 0
        %vm4546 = vcmp.lt.s32.totalorder %v4224, 0
        %vm4547 = vcmp.lt.s32.totalorder %v4235, 0
        %vm4548 = vcmp.lt.s32.totalorder %v4246, 0
        %vm4549 = vcmp.lt.s32.totalorder %v4257, 0
        %vm4550 = vcmp.lt.s32.totalorder %v4268, 0
        %vm4551 = vcmp.lt.s32.totalorder %v4279, 0
        %vm4552 = vcmp.lt.s32.totalorder %v4290, 0
        %vm4553 = vcmp.lt.s32.totalorder %v4301, 0
        %vm4554 = vcmp.lt.s32.totalorder %v4312, 0
        %vm4555 = vcmp.lt.s32.totalorder %v4323, 0
        %vm4556 = vcmp.lt.s32.totalorder %v4334, 0
        %vm4557 = vcmp.lt.s32.totalorder %v4345, 0
        %vm4558 = vcmp.lt.s32.totalorder %v4356, 0
        %vm4559 = vcmp.lt.s32.totalorder %v4367, 0
        %vm4560 = vcmp.lt.s32.totalorder %v4378, 0
        %vm4561 = vcmp.lt.s32.totalorder %v4389, 0
        %vm4562 = vcmp.lt.s32.totalorder %v4400, 0
        %vm4563 = vcmp.lt.s32.totalorder %v4411, 0
        %vm4564 = vcmp.lt.s32.totalorder %v4422, 0
        %vm4565 = vcmp.lt.s32.totalorder %v4433, 0
        %vm4566 = vcmp.lt.s32.totalorder %v4444, 0
        %vm4567 = vcmp.lt.s32.totalorder %v4455, 0
        %vm4568 = vcmp.lt.s32.totalorder %v4466, 0
        %vm4569 = vcmp.lt.s32.totalorder %v4477, 0
        %vm4570 = vcmp.lt.s32.totalorder %v4488, 0
        %vm4571 = vcmp.lt.s32.totalorder %v4499, 0
        %vm4572 = vmand %vm4536, %vm4500
        %vm4573 = vmand %vm4537, %vm4501
        %vm4574 = vmand %vm4538, %vm4502
        %vm4575 = vmand %vm4539, %vm4503
        %vm4576 = vmand %vm4540, %vm4504
        %vm4577 = vmand %vm4541, %vm4505
        %vm4578 = vmand %vm4542, %vm4506
        %vm4579 = vmand %vm4543, %vm4507
        %vm4580 = vmand %vm4544, %vm4508
        %vm4581 = vmand %vm4545, %vm4509
        %vm4582 = vmand %vm4546, %vm4510
        %vm4583 = vmand %vm4547, %vm4511
        %vm4584 = vmand %vm4548, %vm4512
        %vm4585 = vmand %vm4549, %vm4513
        %vm4586 = vmand %vm4550, %vm4514
        %vm4587 = vmand %vm4551, %vm4515
        %vm4588 = vmand %vm4552, %vm4516
        %vm4589 = vmand %vm4553, %vm4517
        %vm4590 = vmand %vm4554, %vm4518
        %vm4591 = vmand %vm4555, %vm4519
        %vm4592 = vmand %vm4556, %vm4520
        %vm4593 = vmand %vm4557, %vm4521
        %vm4594 = vmand %vm4558, %vm4522
        %vm4595 = vmand %vm4559, %vm4523
        %vm4596 = vmand %vm4560, %vm4524
        %vm4597 = vmand %vm4561, %vm4525
        %vm4598 = vmand %vm4562, %vm4526
        %vm4599 = vmand %vm4563, %vm4527
        %vm4600 = vmand %vm4564, %vm4528
        %vm4601 = vmand %vm4565, %vm4529
        %vm4602 = vmand %vm4566, %vm4530
        %vm4603 = vmand %vm4567, %vm4531
        %vm4604 = vmand %vm4568, %vm4532
        %vm4605 = vmand %vm4569, %vm4533
        %vm4606 = vmand %vm4570, %vm4534
        %vm4607 = vmand %vm4571, %vm4535
        %v4608 = vadd.s32 %v4114, 18
        %v4609 = vadd.s32 %v4125, 18
        %v4610 = vadd.s32 %v4136, 18
        %v4611 = vadd.s32 %v4147, 18
        %v4612 = vadd.s32 %v4158, 18
        %v4613 = vadd.s32 %v4169, 18
        %v4614 = vadd.s32 %v4180, 18
        %v4615 = vadd.s32 %v4191, 18
        %v4616 = vadd.s32 %v4202, 18
        %v4617 = vadd.s32 %v4213, 18
        %v4618 = vadd.s32 %v4224, 18
        %v4619 = vadd.s32 %v4235, 18
        %v4620 = vadd.s32 %v4246, 18
        %v4621 = vadd.s32 %v4257, 18
        %v4622 = vadd.s32 %v4268, 18
        %v4623 = vadd.s32 %v4279, 18
        %v4624 = vadd.s32 %v4290, 18
        %v4625 = vadd.s32 %v4301, 18
        %v4626 = vadd.s32 %v4312, 18
        %v4627 = vadd.s32 %v4323, 18
        %v4628 = vadd.s32 %v4334, 18
        %v4629 = vadd.s32 %v4345, 18
        %v4630 = vadd.s32 %v4356, 18
        %v4631 = vadd.s32 %v4367, 18
        %v4632 = vadd.s32 %v4378, 18
        %v4633 = vadd.s32 %v4389, 18
        %v4634 = vadd.s32 %v4400, 18
        %v4635 = vadd.s32 %v4411, 18
        %v4636 = vadd.s32 %v4422, 18
        %v4637 = vadd.s32 %v4433, 18
        %v4638 = vadd.s32 %v4444, 18
        %v4639 = vadd.s32 %v4455, 18
        %v4640 = vadd.s32 %v4466, 18
        %v4641 = vadd.s32 %v4477, 18
        %v4642 = vadd.s32 %v4488, 18
        %v4643 = vadd.s32 %v4499, 18
        %v4644 = vsel %vm4572, %v4608, %v4114
        %v4645 = vsel %vm4573, %v4609, %v4125
        %v4646 = vsel %vm4574, %v4610, %v4136
        %v4647 = vsel %vm4575, %v4611, %v4147
        %v4648 = vsel %vm4576, %v4612, %v4158
        %v4649 = vsel %vm4577, %v4613, %v4169
        %v4650 = vsel %vm4578, %v4614, %v4180
        %v4651 = vsel %vm4579, %v4615, %v4191
        %v4652 = vsel %vm4580, %v4616, %v4202
        %v4653 = vsel %vm4581, %v4617, %v4213
        %v4654 = vsel %vm4582, %v4618, %v4224
        %v4655 = vsel %vm4583, %v4619, %v4235
        %v4656 = vsel %vm4584, %v4620, %v4246
        %v4657 = vsel %vm4585, %v4621, %v4257
        %v4658 = vsel %vm4586, %v4622, %v4268
        %v4659 = vsel %vm4587, %v4623, %v4279
        %v4660 = vsel %vm4588, %v4624, %v4290
        %v4661 = vsel %vm4589, %v4625, %v4301
        %v4662 = vsel %vm4590, %v4626, %v4312
        %v4663 = vsel %vm4591, %v4627, %v4323
        %v4664 = vsel %vm4592, %v4628, %v4334
        %v4665 = vsel %vm4593, %v4629, %v4345
        %v4666 = vsel %vm4594, %v4630, %v4356
        %v4667 = vsel %vm4595, %v4631, %v4367
        %v4668 = vsel %vm4596, %v4632, %v4378
        %v4669 = vsel %vm4597, %v4633, %v4389
        %v4670 = vsel %vm4598, %v4634, %v4400
        %v4671 = vsel %vm4599, %v4635, %v4411
        %v4672 = vsel %vm4600, %v4636, %v4422
        %v4673 = vsel %vm4601, %v4637, %v4433
        %v4674 = vsel %vm4602, %v4638, %v4444
        %v4675 = vsel %vm4603, %v4639, %v4455
        %v4676 = vsel %vm4604, %v4640, %v4466
        %v4677 = vsel %vm4605, %v4641, %v4477
        %v4678 = vsel %vm4606, %v4642, %v4488
        %v4679 = vsel %vm4607, %v4643, %v4499
        %vm4680 = vcmp.lt.s32.totalorder %v4644, 16
        %vm4681 = vcmp.lt.s32.totalorder %v4645, 16
        %vm4682 = vcmp.lt.s32.totalorder %v4646, 16
        %vm4683 = vcmp.lt.s32.totalorder %v4647, 16
        %vm4684 = vcmp.lt.s32.totalorder %v4648, 16
        %vm4685 = vcmp.lt.s32.totalorder %v4649, 16
        %vm4686 = vcmp.lt.s32.totalorder %v4650, 16
        %vm4687 = vcmp.lt.s32.totalorder %v4651, 16
        %vm4688 = vcmp.lt.s32.totalorder %v4652, 16
        %vm4689 = vcmp.lt.s32.totalorder %v4653, 16
        %vm4690 = vcmp.lt.s32.totalorder %v4654, 16
        %vm4691 = vcmp.lt.s32.totalorder %v4655, 16
        %vm4692 = vcmp.lt.s32.totalorder %v4656, 16
        %vm4693 = vcmp.lt.s32.totalorder %v4657, 16
        %vm4694 = vcmp.lt.s32.totalorder %v4658, 16
        %vm4695 = vcmp.lt.s32.totalorder %v4659, 16
        %vm4696 = vcmp.lt.s32.totalorder %v4660, 16
        %vm4697 = vcmp.lt.s32.totalorder %v4661, 16
        %vm4698 = vcmp.lt.s32.totalorder %v4662, 16
        %vm4699 = vcmp.lt.s32.totalorder %v4663, 16
        %vm4700 = vcmp.lt.s32.totalorder %v4664, 16
        %vm4701 = vcmp.lt.s32.totalorder %v4665, 16
        %vm4702 = vcmp.lt.s32.totalorder %v4666, 16
        %vm4703 = vcmp.lt.s32.totalorder %v4667, 16
        %vm4704 = vcmp.lt.s32.totalorder %v4668, 16
        %vm4705 = vcmp.lt.s32.totalorder %v4669, 16
        %vm4706 = vcmp.lt.s32.totalorder %v4670, 16
        %vm4707 = vcmp.lt.s32.totalorder %v4671, 16
        %vm4708 = vcmp.lt.s32.totalorder %v4672, 16
        %vm4709 = vcmp.lt.s32.totalorder %v4673, 16
        %vm4710 = vcmp.lt.s32.totalorder %v4674, 16
        %vm4711 = vcmp.lt.s32.totalorder %v4675, 16
        %vm4712 = vcmp.lt.s32.totalorder %v4676, 16
        %vm4713 = vcmp.lt.s32.totalorder %v4677, 16
        %vm4714 = vcmp.lt.s32.totalorder %v4678, 16
        %vm4715 = vcmp.lt.s32.totalorder %v4679, 16
        %v4716 = vsel %vm4680, %v4020, 0.0
        %v4717 = vsel %vm4681, %v4021, 0.0
        %v4718 = vsel %vm4682, %v4022, 0.0
        %v4719 = vsel %vm4683, %v4023, 0.0
        %v4720 = vsel %vm4684, %v4024, 0.0
        %v4721 = vsel %vm4685, %v4025, 0.0
        %v4722 = vsel %vm4686, %v4026, 0.0
        %v4723 = vsel %vm4687, %v4027, 0.0
        %v4724 = vsel %vm4688, %v4028, 0.0
        %v4725 = vsel %vm4689, %v4029, 0.0
        %v4726 = vsel %vm4690, %v4030, 0.0
        %v4727 = vsel %vm4691, %v4031, 0.0
        %v4728 = vsel %vm4692, %v4032, 0.0
        %v4729 = vsel %vm4693, %v4033, 0.0
        %v4730 = vsel %vm4694, %v4034, 0.0
        %v4731 = vsel %vm4695, %v4035, 0.0
        %v4732 = vsel %vm4696, %v4036, 0.0
        %v4733 = vsel %vm4697, %v4037, 0.0
        %v4734 = vsel %vm4698, %v4038, 0.0
        %v4735 = vsel %vm4699, %v4039, 0.0
        %v4736 = vsel %vm4700, %v4040, 0.0
        %v4737 = vsel %vm4701, %v4041, 0.0
        %v4738 = vsel %vm4702, %v4042, 0.0
        %v4739 = vsel %vm4703, %v4043, 0.0
        %v4740 = vsel %vm4704, %v4044, 0.0
        %v4741 = vsel %vm4705, %v4045, 0.0
        %v4742 = vsel %vm4706, %v4046, 0.0
        %v4743 = vsel %vm4707, %v4047, 0.0
        %v4744 = vsel %vm4708, %v4048, 0.0
        %v4745 = vsel %vm4709, %v4049, 0.0
        %v4746 = vsel %vm4710, %v4050, 0.0
        %v4747 = vsel %vm4711, %v4051, 0.0
        %v4748 = vsel %vm4712, %v4052, 0.0
        %v4749 = vsel %vm4713, %v4053, 0.0
        %v4750 = vsel %vm4714, %v4054, 0.0
        %v4751 = vsel %vm4715, %v4055, 0.0
        %v4752 = vld [vmem:[#allocation2] sm:$0x1]
        %v4753 = vadd.f32 %v4716, %v4717
        %v4754 = vadd.f32 %v4753, %v4718
        %v4755 = vadd.f32 %v4754, %v4719
        %v4756 = vadd.f32 %v4755, %v4720
        %v4757 = vadd.f32 %v4756, %v4721
        %v4758 = vadd.f32 %v4757, %v4722
        %v4759 = vadd.f32 %v4758, %v4723
        %v4760 = vadd.f32 %v4759, %v4724
        %v4761 = vadd.f32 %v4760, %v4725
        %v4762 = vadd.f32 %v4761, %v4726
        %v4763 = vadd.f32 %v4762, %v4727
        %v4764 = vadd.f32 %v4763, %v4728
        %v4765 = vadd.f32 %v4764, %v4729
        %v4766 = vadd.f32 %v4765, %v4730
        %v4767 = vadd.f32 %v4766, %v4731
        %v4768 = vadd.f32 %v4767, %v4732
        %v4769 = vadd.f32 %v4768, %v4733
        %v4770 = vadd.f32 %v4769, %v4734
        %v4771 = vadd.f32 %v4770, %v4735
        %v4772 = vadd.f32 %v4771, %v4736
        %v4773 = vadd.f32 %v4772, %v4737
        %v4774 = vadd.f32 %v4773, %v4738
        %v4775 = vadd.f32 %v4774, %v4739
        %v4776 = vadd.f32 %v4775, %v4740
        %v4777 = vadd.f32 %v4776, %v4741
        %v4778 = vadd.f32 %v4777, %v4742
        %v4779 = vadd.f32 %v4778, %v4743
        %v4780 = vadd.f32 %v4779, %v4744
        %v4781 = vadd.f32 %v4780, %v4745
        %v4782 = vadd.f32 %v4781, %v4746
        %v4783 = vadd.f32 %v4782, %v4747
        %v4784 = vadd.f32 %v4783, %v4748
        %v4785 = vadd.f32 %v4784, %v4749
        %v4786 = vadd.f32 %v4785, %v4750
        %v4787 = vadd.f32 %v4786, %v4751
        %v4788 = vrot.slane %v4787, 4
        %v4789 = vadd.f32 %v4787, %v4788
        %v4790 = vrot.slane %v4789, 2
        %v4791 = vadd.f32 %v4789, %v4790
        %v4792 = vrot.slane %v4791, 1
        %v4793 = vadd.f32 %v4791, %v4792
        %v4794 = vadd.f32 %v4752, %v4793
        %4795 = vst [vmem:[#allocation2] sm:$0x1] %v4794
        %v4796 = vld [vmem:[#allocation3] sm:$0x1]
        %v4797 = vmul.f32 %v4716, %v4716
        %v4798 = vmul.f32 %v4717, %v4717
        %v4799 = vmul.f32 %v4718, %v4718
        %v4800 = vmul.f32 %v4719, %v4719
        %v4801 = vmul.f32 %v4720, %v4720
        %v4802 = vmul.f32 %v4721, %v4721
        %v4803 = vmul.f32 %v4722, %v4722
        %v4804 = vmul.f32 %v4723, %v4723
        %v4805 = vmul.f32 %v4724, %v4724
        %v4806 = vmul.f32 %v4725, %v4725
        %v4807 = vmul.f32 %v4726, %v4726
        %v4808 = vmul.f32 %v4727, %v4727
        %v4809 = vmul.f32 %v4728, %v4728
        %v4810 = vmul.f32 %v4729, %v4729
        %v4811 = vmul.f32 %v4730, %v4730
        %v4812 = vmul.f32 %v4731, %v4731
        %v4813 = vmul.f32 %v4732, %v4732
        %v4814 = vmul.f32 %v4733, %v4733
        %v4815 = vmul.f32 %v4734, %v4734
        %v4816 = vmul.f32 %v4735, %v4735
        %v4817 = vmul.f32 %v4736, %v4736
        %v4818 = vmul.f32 %v4737, %v4737
        %v4819 = vmul.f32 %v4738, %v4738
        %v4820 = vmul.f32 %v4739, %v4739
        %v4821 = vmul.f32 %v4740, %v4740
        %v4822 = vmul.f32 %v4741, %v4741
        %v4823 = vmul.f32 %v4742, %v4742
        %v4824 = vmul.f32 %v4743, %v4743
        %v4825 = vmul.f32 %v4744, %v4744
        %v4826 = vmul.f32 %v4745, %v4745
        %v4827 = vmul.f32 %v4746, %v4746
        %v4828 = vmul.f32 %v4747, %v4747
        %v4829 = vmul.f32 %v4748, %v4748
        %v4830 = vmul.f32 %v4749, %v4749
        %v4831 = vmul.f32 %v4750, %v4750
        %v4832 = vmul.f32 %v4751, %v4751
        %v4833 = vadd.f32 %v4797, %v4798
        %v4834 = vadd.f32 %v4833, %v4799
        %v4835 = vadd.f32 %v4834, %v4800
        %v4836 = vadd.f32 %v4835, %v4801
        %v4837 = vadd.f32 %v4836, %v4802
        %v4838 = vadd.f32 %v4837, %v4803
        %v4839 = vadd.f32 %v4838, %v4804
        %v4840 = vadd.f32 %v4839, %v4805
        %v4841 = vadd.f32 %v4840, %v4806
        %v4842 = vadd.f32 %v4841, %v4807
        %v4843 = vadd.f32 %v4842, %v4808
        %v4844 = vadd.f32 %v4843, %v4809
        %v4845 = vadd.f32 %v4844, %v4810
        %v4846 = vadd.f32 %v4845, %v4811
        %v4847 = vadd.f32 %v4846, %v4812
        %v4848 = vadd.f32 %v4847, %v4813
        %v4849 = vadd.f32 %v4848, %v4814
        %v4850 = vadd.f32 %v4849, %v4815
        %v4851 = vadd.f32 %v4850, %v4816
        %v4852 = vadd.f32 %v4851, %v4817
        %v4853 = vadd.f32 %v4852, %v4818
        %v4854 = vadd.f32 %v4853, %v4819
        %v4855 = vadd.f32 %v4854, %v4820
        %v4856 = vadd.f32 %v4855, %v4821
        %v4857 = vadd.f32 %v4856, %v4822
        %v4858 = vadd.f32 %v4857, %v4823
        %v4859 = vadd.f32 %v4858, %v4824
        %v4860 = vadd.f32 %v4859, %v4825
        %v4861 = vadd.f32 %v4860, %v4826
        %v4862 = vadd.f32 %v4861, %v4827
        %v4863 = vadd.f32 %v4862, %v4828
        %v4864 = vadd.f32 %v4863, %v4829
        %v4865 = vadd.f32 %v4864, %v4830
        %v4866 = vadd.f32 %v4865, %v4831
        %v4867 = vadd.f32 %v4866, %v4832
        %v4868 = vrot.slane %v4867, 4
        %v4869 = vadd.f32 %v4867, %v4868
        %v4870 = vrot.slane %v4869, 2
        %v4871 = vadd.f32 %v4869, %v4870
        %v4872 = vrot.slane %v4871, 1
        %v4873 = vadd.f32 %v4871, %v4872
        %v4874 = vadd.f32 %v4796, %v4873
        %4875 = vst [vmem:[#allocation3] sm:$0x1] %v4874
      $region48: #{tpu_custom_call.1} parent=39 // pred_fallthru
        _
      %p4876 = scmp.eq.s32.totalorder %s20, 1
      %p4877 = pnand %p4876, %p4057
      %p4878 = pneg %p4877
      // Predicated region
      $region49: #{tpu_custom_call.1} parent=39 // pred_check
        _
      $region50: #{tpu_custom_call.1} parent=39 // pred_check_branch
        %4880 = sbr.rel (%p4877) target = $region52
      $region51: #{tpu_custom_call.1} parent=39 // pred_region
        %v4881 = vld [vmem:[#allocation2] sm:$0x1]
        %v4882 = vmul.f32 %v4881, 0.001953125
        %v4883 = vld [vmem:[#allocation3] sm:$0x1]
        %v4884 = vmul.f32 %v4883, 0.001953125
        %v4885 = vmul.f32 %v4882, %v4882
        %v4886 = vsub.f32 %v4884, %v4885
        %v4887 = vmax.f32 %v4886, 0.0
        %v4888 = vadd.f32 %v4887, 1e-05
        %v4889 = vrsqrt.pop %v4888
        %v4890 = vld [vmem:[%s3] sm:$0x1]
        %v4891 = vmul.f32 %v4890, %v4889
        %4892 = vst [vmem:[#allocation4] sm:$0x1] %v4891
        %v4893 = vld [vmem:[%s4] sm:$0x1]
        %v4894 = vld [vmem:[%s3] sm:$0x1]
        %v4895 = vmul.f32 %v4882, %v4894
        %v4896 = vmul.f32 %v4895, %v4889
        %v4897 = vsub.f32 %v4893, %v4896
        %4898 = vst [vmem:[#allocation5] sm:$0x1] %v4897
      $region52: #{tpu_custom_call.1} parent=39 // pred_fallthru
        _
      // Predicated region
      $region53: #{tpu_custom_call.1} parent=39 // pred_check
        %p4899 = pneg %p4876
      $region54: #{tpu_custom_call.1} parent=39 // pred_check_branch
        %4901 = sbr.rel (%p4899) target = $region56
      $region55: #{tpu_custom_call.1} parent=39 // pred_region
        %v4902 = vld [vmem:[#allocation4] sm:$0x1]
        %v4904 = vlaneseq
        %v4905 = vshrl.u32 %v4904, 7
        %v4906 = vsub.s32 0, %v4905
        %v4907 = vrot.slane %v4902, %v4906
        %v4909 = vmul.f32 %v4020, %v4907
        %v4910 = vmul.f32 %v4021, %v4907
        %v4911 = vmul.f32 %v4022, %v4907
        %v4912 = vmul.f32 %v4023, %v4907
        %v4913 = vmul.f32 %v4024, %v4907
        %v4914 = vmul.f32 %v4025, %v4907
        %v4915 = vmul.f32 %v4026, %v4907
        %v4916 = vmul.f32 %v4027, %v4907
        %v4917 = vmul.f32 %v4028, %v4907
        %v4918 = vmul.f32 %v4029, %v4907
        %v4919 = vmul.f32 %v4030, %v4907
        %v4920 = vmul.f32 %v4031, %v4907
        %v4921 = vmul.f32 %v4032, %v4907
        %v4922 = vmul.f32 %v4033, %v4907
        %v4923 = vmul.f32 %v4034, %v4907
        %v4924 = vmul.f32 %v4035, %v4907
        %v4925 = vmul.f32 %v4036, %v4907
        %v4926 = vmul.f32 %v4037, %v4907
        %v4927 = vmul.f32 %v4038, %v4907
        %v4928 = vmul.f32 %v4039, %v4907
        %v4929 = vmul.f32 %v4040, %v4907
        %v4930 = vmul.f32 %v4041, %v4907
        %v4931 = vmul.f32 %v4042, %v4907
        %v4932 = vmul.f32 %v4043, %v4907
        %v4933 = vmul.f32 %v4044, %v4907
        %v4934 = vmul.f32 %v4045, %v4907
        %v4935 = vmul.f32 %v4046, %v4907
        %v4936 = vmul.f32 %v4047, %v4907
        %v4937 = vmul.f32 %v4048, %v4907
        %v4938 = vmul.f32 %v4049, %v4907
        %v4939 = vmul.f32 %v4050, %v4907
        %v4940 = vmul.f32 %v4051, %v4907
        %v4941 = vmul.f32 %v4052, %v4907
        %v4942 = vmul.f32 %v4053, %v4907
        %v4943 = vmul.f32 %v4054, %v4907
        %v4944 = vmul.f32 %v4055, %v4907
        %v4945 = vld [vmem:[#allocation5] sm:$0x1]
        %v4947 = vlaneseq
        %v4948 = vshrl.u32 %v4947, 7
        %v4949 = vsub.s32 0, %v4948
        %v4950 = vrot.slane %v4945, %v4949
        %v4952 = vadd.f32 %v4909, %v4950
        %v4953 = vadd.f32 %v4910, %v4950
        %v4954 = vadd.f32 %v4911, %v4950
        %v4955 = vadd.f32 %v4912, %v4950
        %v4956 = vadd.f32 %v4913, %v4950
        %v4957 = vadd.f32 %v4914, %v4950
        %v4958 = vadd.f32 %v4915, %v4950
        %v4959 = vadd.f32 %v4916, %v4950
        %v4960 = vadd.f32 %v4917, %v4950
        %v4961 = vadd.f32 %v4918, %v4950
        %v4962 = vadd.f32 %v4919, %v4950
        %v4963 = vadd.f32 %v4920, %v4950
        %v4964 = vadd.f32 %v4921, %v4950
        %v4965 = vadd.f32 %v4922, %v4950
        %v4966 = vadd.f32 %v4923, %v4950
        %v4967 = vadd.f32 %v4924, %v4950
        %v4968 = vadd.f32 %v4925, %v4950
        %v4969 = vadd.f32 %v4926, %v4950
        %v4970 = vadd.f32 %v4927, %v4950
        %v4971 = vadd.f32 %v4928, %v4950
        %v4972 = vadd.f32 %v4929, %v4950
        %v4973 = vadd.f32 %v4930, %v4950
        %v4974 = vadd.f32 %v4931, %v4950
        %v4975 = vadd.f32 %v4932, %v4950
        %v4976 = vadd.f32 %v4933, %v4950
        %v4977 = vadd.f32 %v4934, %v4950
        %v4978 = vadd.f32 %v4935, %v4950
        %v4979 = vadd.f32 %v4936, %v4950
        %v4980 = vadd.f32 %v4937, %v4950
        %v4981 = vadd.f32 %v4938, %v4950
        %v4982 = vadd.f32 %v4939, %v4950
        %v4983 = vadd.f32 %v4940, %v4950
        %v4984 = vadd.f32 %v4941, %v4950
        %v4985 = vadd.f32 %v4942, %v4950
        %v4986 = vadd.f32 %v4943, %v4950
        %v4987 = vadd.f32 %v4944, %v4950
        %v4988 = vmax.f32 %v4952, 0.0
        %v4989 = vmax.f32 %v4953, 0.0
        %v4990 = vmax.f32 %v4954, 0.0
        %v4991 = vmax.f32 %v4955, 0.0
        %v4992 = vmax.f32 %v4956, 0.0
        %v4993 = vmax.f32 %v4957, 0.0
        %v4994 = vmax.f32 %v4958, 0.0
        %v4995 = vmax.f32 %v4959, 0.0
        %v4996 = vmax.f32 %v4960, 0.0
        %v4997 = vmax.f32 %v4961, 0.0
        %v4998 = vmax.f32 %v4962, 0.0
        %v4999 = vmax.f32 %v4963, 0.0
        %v5000 = vmax.f32 %v4964, 0.0
        %v5001 = vmax.f32 %v4965, 0.0
        %v5002 = vmax.f32 %v4966, 0.0
        %v5003 = vmax.f32 %v4967, 0.0
        %v5004 = vmax.f32 %v4968, 0.0
        %v5005 = vmax.f32 %v4969, 0.0
        %v5006 = vmax.f32 %v4970, 0.0
        %v5007 = vmax.f32 %v4971, 0.0
        %v5008 = vmax.f32 %v4972, 0.0
        %v5009 = vmax.f32 %v4973, 0.0
        %v5010 = vmax.f32 %v4974, 0.0
        %v5011 = vmax.f32 %v4975, 0.0
        %v5012 = vmax.f32 %v4976, 0.0
        %v5013 = vmax.f32 %v4977, 0.0
        %v5014 = vmax.f32 %v4978, 0.0
        %v5015 = vmax.f32 %v4979, 0.0
        %v5016 = vmax.f32 %v4980, 0.0
        %v5017 = vmax.f32 %v4981, 0.0
        %v5018 = vmax.f32 %v4982, 0.0
        %v5019 = vmax.f32 %v4983, 0.0
        %v5020 = vmax.f32 %v4984, 0.0
        %v5021 = vmax.f32 %v4985, 0.0
        %v5022 = vmax.f32 %v4986, 0.0
        %v5023 = vmax.f32 %v4987, 0.0
        %5024 = vst.msk [vmem:[%s240] sm:$0xff] %vm317, %v4988
        %5025 = vst.msk [vmem:[%s240 + $0x8] sm:$0xff] %vm317, %v4989
        %5026 = vst.msk [vmem:[%s240 + $0x10] sm:$0xff] %vm317, %v4990
        %5027 = vst.msk [vmem:[%s240 + $0x18] sm:$0xff] %vm317, %v4991
        %5028 = vst.msk [vmem:[%s240 + $0x20] sm:$0xff] %vm317, %v4992
        %5029 = vst.msk [vmem:[%s240 + $0x28] sm:$0xff] %vm317, %v4993
        %5030 = vst.msk [vmem:[%s240 + $0x30] sm:$0xff] %vm317, %v4994
        %5031 = vst.msk [vmem:[%s240 + $0x38] sm:$0xff] %vm317, %v4995
        %5032 = vst.msk [vmem:[%s240 + $0x40] sm:$0xff] %vm317, %v4996
        %5033 = vst.msk [vmem:[%s240 + $0x48] sm:$0xff] %vm317, %v4997
        %5034 = vst.msk [vmem:[%s240 + $0x50] sm:$0xff] %vm317, %v4998
        %5035 = vst.msk [vmem:[%s240 + $0x58] sm:$0xff] %vm317, %v4999
        %5036 = vst.msk [vmem:[%s240 + $0x60] sm:$0xff] %vm317, %v5000
        %5037 = vst.msk [vmem:[%s240 + $0x68] sm:$0xff] %vm317, %v5001
        %5038 = vst.msk [vmem:[%s240 + $0x70] sm:$0xff] %vm317, %v5002
        %5039 = vst.msk [vmem:[%s240 + $0x78] sm:$0xff] %vm317, %v5003
        %5040 = vst.msk [vmem:[%s240 + $0x80] sm:$0xff] %vm317, %v5004
        %5041 = vst.msk [vmem:[%s240 + $0x88] sm:$0xff] %vm317, %v5005
        %5042 = vst.msk [vmem:[%s240 + $0x90] sm:$0xff] %vm317, %v5006
        %5043 = vst.msk [vmem:[%s240 + $0x98] sm:$0xff] %vm317, %v5007
        %5044 = vst.msk [vmem:[%s240 + $0xa0] sm:$0xff] %vm317, %v5008
        %5045 = vst.msk [vmem:[%s240 + $0xa8] sm:$0xff] %vm317, %v5009
        %5046 = vst.msk [vmem:[%s240 + $0xb0] sm:$0xff] %vm317, %v5010
        %5047 = vst.msk [vmem:[%s240 + $0xb8] sm:$0xff] %vm317, %v5011
        %5048 = vst.msk [vmem:[%s240 + $0xc0] sm:$0xff] %vm317, %v5012
        %5049 = vst.msk [vmem:[%s240 + $0xc8] sm:$0xff] %vm317, %v5013
        %5050 = vst.msk [vmem:[%s240 + $0xd0] sm:$0xff] %vm317, %v5014
        %5051 = vst.msk [vmem:[%s240 + $0xd8] sm:$0xff] %vm317, %v5015
        %5052 = vst.msk [vmem:[%s240 + $0xe0] sm:$0xff] %vm317, %v5016
        %5053 = vst.msk [vmem:[%s240 + $0xe8] sm:$0xff] %vm317, %v5017
        %5054 = vst.msk [vmem:[%s240 + $0xf0] sm:$0xff] %vm317, %v5018
        %5055 = vst.msk [vmem:[%s240 + $0xf8] sm:$0xff] %vm317, %v5019
        %5056 = vst.msk [vmem:[%s240 + $0x100] sm:$0xff] %vm317, %v5020
        %5057 = vst.msk [vmem:[%s240 + $0x108] sm:$0xff] %vm317, %v5021
        %5058 = vst.msk [vmem:[%s240 + $0x110] sm:$0xff] %vm317, %v5022
        %5059 = vst.msk [vmem:[%s240 + $0x118] sm:$0xff] %vm317, %v5023
      $region56: #{tpu_custom_call.1} parent=39 // pred_fallthru
        _
      %s5060 = smul.u32 %s20, %s21
      %p5061 = scmp.lt.s32.totalorder %s5060, 1
      %s5062 = scalar_select %p5061, %s5060, 1
      %s5063 = smul.addr %s5062, 36
      %s5064 = smul.addr %s5063, 8
      %s5065 = scalar_lea.vmem %s5, %s5064
      // Predicated region
      $region57: #{tpu_custom_call.1} parent=39 // pred_check
        %p5066 = pneg %p158
      $region58: #{tpu_custom_call.1} parent=39 // pred_check_branch
        %5068 = sbr.rel (%p5066) target = $region60
      $region59: #{tpu_custom_call.1} parent=39 // pred_region
        %s5069 = smul.u32 %s20, %s21
      $region60: #{tpu_custom_call.1} parent=39 // pred_fallthru
        _
    $region40: #{tpu_custom_call.1} parent=5 // pred_fallthru
      _
    %p5070 = scmp.le.s32.totalorder 2, %s11
    // Predicated region
    $region61: #{tpu_custom_call.1} parent=5 // pred_check
      %p5071 = pneg %p5070
    $region62: #{tpu_custom_call.1} parent=5 // pred_check_branch
      %5073 = sbr.rel (%p5071) target = $region64
    $region63: #{tpu_custom_call.1} parent=5 // pred_region
      %s5074 = ssub.s32 %s11, 2
      // Predicated region
      $region65: #{tpu_custom_call.1} parent=63 // pred_check
        %p5075 = pneg %p164
      $region66: #{tpu_custom_call.1} parent=63 // pred_check_branch
        %5077 = sbr.rel (%p5075) target = $region68
      $region67: #{tpu_custom_call.1} parent=63 // pred_region
        %s5078 = smul.u32 %s22, %s23
        %p5079 = scmp.lt.s32.totalorder %s5078, 1
        %s5080 = scalar_select %p5079, %s5078, 1
        %s5081 = smul.addr %s5080, 36
        %s5082 = smul.addr %s5081, 8
        %s5083 = scalar_lea.vmem %s5, %s5082
      $region68: #{tpu_custom_call.1} parent=63 // pred_fallthru
        _
    $region64: #{tpu_custom_call.1} parent=5 // pred_fallthru
      _
  $region6: #{tpu_custom_call.1} parent=0 // loop_footer
    %s15 = sadd.s32 1, %s11
  $region7: #{tpu_custom_call.1} parent=0 // loop_footer_branch
    %10 = sbr.rel target = $region3
  $region8: #{tpu_custom_call.1} parent=0 // loop_exit
    _

</llo_original>
